<compile_context>
chip_gen: v5e
topology: v5e:2x2
jax: 0.10.0
libtpu: 0.0.40
codegen_flags: <defaults>
</compile_context>

<pallas_src>
import math

import jax
import jax.numpy as jnp
from jax.experimental import pallas as pl
from jax.experimental.pallas import tpu as pltpu

# ----------------------- scaled-down ViT configuration -----------------------
BATCH = 2
IN_CH = 3
IMG = 32            # (real ViT: 224)
PATCH = 16          # patch16, as in google/vit-base-patch16-224
HIDDEN = 128        # (real ViT: 768)
HEADS = 2           # (real ViT: 12)
HEAD_DIM = HIDDEN // HEADS             # 64
HEAD_PAD = 128                         # per-head q/k/v slab zero-padded to 128 lanes
QKV_W = HEADS * 3 * HEAD_PAD           # 768 (per-head [q|k|v] slabs, 128-lane aligned)
WO_K = HEADS * HEAD_PAD                # 256 (padded ctx width feeding fused wo matmul)
MLP = 256           # (real ViT: 3072)
LAYERS = 2          # (real ViT: 12)
EMBED_SIZE = 64     # EncoderViT(embed_size)
N_PATCH = (IMG // PATCH) ** 2          # 4
SEQ = N_PATCH + 1                      # CLS + patches = 5
SEQ_PAD = 8                            # pad each batch's tokens to a sublane group
TOK = BATCH * SEQ_PAD                  # 16 token rows (batch flattened into rows)
PATCH_DIM = IN_CH * PATCH * PATCH      # 768
OUT_PAD = 128                          # lane-dense head output width
LN_EPS = 1e-12                         # HF ViT layer_norm_eps
ATTN_SCALE = 1.0 / math.sqrt(HEAD_DIM)
NEG_INF = -1e30


# --------------------------------- kernel -----------------------------------
def _layernorm(x, g, b):
    mu = jnp.mean(x, axis=-1, keepdims=True)
    var = jnp.mean(jnp.square(x - mu), axis=-1, keepdims=True)
    return (x - mu) * jax.lax.rsqrt(var + LN_EPS) * g + b


def vit_fused_kernel(patches_ref, addend_ref, mask_ref, pw_ref,
                     wqkv_ref, wo_ref, wi_ref, w2_ref,
                     vecd_ref, bqkv_ref, bi_ref,
                     hln_ref, hw_ref, hb_ref,
                     out_ref):
    # ---- patch embedding + CLS/pos assembly (bf16 MXU, f32 accumulation) ----
    # addend carries cls+pos on CLS rows, pos+patch_b on patch rows, 0 on pads.
    x = jnp.dot(patches_ref[...], pw_ref[...],
                preferred_element_type=jnp.float32) + addend_ref[...]      # (TOK, D) f32

    # additive mask: 0 where (same batch block AND key token < SEQ), -1e30 otherwise
    mask = mask_ref[...]                                                   # (TOK, TOK) f32

    # ---- encoder layers: static unroll, all weights resident in VMEM ----
    for l in range(LAYERS):
        vecd = vecd_ref[l]                                                 # (8, D) f32 slab
        g1, b1 = vecd[0:1], vecd[1:2]
        bo, g2 = vecd[2:3], vecd[3:4]
        b2, b2m = vecd[4:5], vecd[5:6]
        bqkv = bqkv_ref[l]                                                 # (1, QKV_W) f32
        bi = bi_ref[l]                                                     # (1, MLP) f32
        wqkv = wqkv_ref[l]                                                 # (D, QKV_W) bf16
        wo = wo_ref[l]                                                     # (WO_K, D) bf16
        wi = wi_ref[l]                                                     # (D, MLP) bf16
        w2 = w2_ref[l]                                                     # (MLP, D) bf16

        # ---- attention block (pre-LN), fused QKV, per-head full-TOK matmuls ----
        h1 = _layernorm(x, g1, b1)
        # ATTN_SCALE is pre-folded into the q columns of wqkv / bqkv host-side.
        qkv = jnp.dot(h1.astype(jnp.bfloat16), wqkv,
                      preferred_element_type=jnp.float32) + bqkv           # (TOK, QKV_W)

        ctx_parts = []
        for h in range(HEADS):                     # static unroll, 128-lane-aligned slices
            base = h * 3 * HEAD_PAD
            qh = qkv[:, base:base + HEAD_PAD]                              # (TOK, 128)
            kh = qkv[:, base + HEAD_PAD:base + 2 * HEAD_PAD]               # (TOK, 128)
            vh = qkv[:, base + 2 * HEAD_PAD:base + 3 * HEAD_PAD]           # (TOK, 128)
            s = jnp.einsum('qd,kd->qk', qh.astype(jnp.bfloat16),
                           kh.astype(jnp.bfloat16),
                           preferred_element_type=jnp.float32) + mask      # (TOK, TOK)
            s = s - jnp.max(s, axis=-1, keepdims=True)
            p = jnp.exp(s)
            p = p * pl.reciprocal(jnp.sum(p, axis=-1, keepdims=True), approx=True)
            ctx_parts.append(jnp.dot(p.astype(jnp.bfloat16), vh.astype(jnp.bfloat16),
                                     preferred_element_type=jnp.float32))  # (TOK, 128)
        # padded per-head ctx tiles concatenate at 128-aligned offsets; one fused
        # (TOK, WO_K) x (WO_K, D) output projection replaces per-head wo slab matmuls.
        ctx = jnp.concatenate(ctx_parts, axis=-1)                          # (TOK, WO_K)
        attn_out = jnp.dot(ctx.astype(jnp.bfloat16), wo,
                           preferred_element_type=jnp.float32) + bo
        x = x + attn_out                                                   # residual

        # ---- MLP block (pre-LN) ----
        h2 = _layernorm(x, g2, b2)
        inter = jnp.dot(h2.astype(jnp.bfloat16), wi,
                        preferred_element_type=jnp.float32) + bi
        # TODO(synk): HF ViT uses exact erf-GELU; tanh approximation kept for Mosaic-safe lowering.
        inter = jax.nn.gelu(inter, approximate=True)
        x = x + jnp.dot(inter.astype(jnp.bfloat16), w2,
                        preferred_element_type=jnp.float32) + b2m          # residual

    # ---- final LayerNorm + classifier, lane-dense (TOK, 128) store ----
    hfin = _layernorm(x, hln_ref[0:1, :], hln_ref[1:2, :])
    out_ref[...] = jnp.dot(hfin.astype(jnp.bfloat16), hw_ref[...],
                           preferred_element_type=jnp.float32) + hb_ref[...]


# ------------------------------ host-side glue --------------------------------
def extract_patches(images):
    """NCHW image -> (B, N_PATCH, C*ph*pw), bit-exact with Conv2d(C,D,P,stride=P)."""
    B, C, H, W = images.shape
    hn, wn = H // PATCH, W // PATCH
    x = images.reshape(B, C, hn, PATCH, wn, PATCH)
    x = x.transpose(0, 2, 4, 1, 3, 5)              # (B, hn, wn, C, ph, pw)
    return x.reshape(B, hn * wn, C * PATCH * PATCH)


def build_patch_matrix(images):
    """Padded (TOK, PATCH_DIM) bf16: row b*8 is the CLS slot, rows 5..7 are pad."""
    p = extract_patches(images)                                # (B, N_PATCH, PATCH_DIM)
    pad = jnp.zeros((BATCH, SEQ_PAD, PATCH_DIM), jnp.float32)
    pad = pad.at[:, 1:1 + N_PATCH, :].set(p)
    return pad.reshape(TOK, PATCH_DIM).astype(jnp.bfloat16)    # pre-cast for the MXU


def build_attn_mask():
    """(TOK, TOK) additive mask: valid iff same batch block AND key token < SEQ."""
    rows = jnp.arange(TOK)
    cols = jnp.arange(TOK)
    same_batch = (rows[:, None] // SEQ_PAD) == (cols[None, :] // SEQ_PAD)
    key_valid = (cols[None, :] % SEQ_PAD) < SEQ
    return jnp.where(same_batch & key_valid, 0.0, NEG_INF).astype(jnp.float32)


def prepare_params(p):
    """Pack raw params into the fused-kernel layout (bf16 MXU operands, f32 vectors)."""
    bf = lambda a: a.astype(jnp.bfloat16)
    addend = jnp.zeros((SEQ_PAD, HIDDEN), jnp.float32)
    addend = addend.at[0].set(p['cls'][0, 0] + p['pos'][0, 0])          # CLS row
    addend = addend.at[1:SEQ].set(p['pos'][0, 1:] + p['patch_b'])       # patch rows
    prep = {
        'addend': jnp.tile(addend, (BATCH, 1)),                         # (TOK, D)
        'mask': build_attn_mask(),                                      # (TOK, TOK)
        'patch_w': bf(p['patch_w']),                                    # (PATCH_DIM, D)
        'head_ln': jnp.stack([p['ln_g'], p['ln_b']]),                   # (2, D)
        'head_w': bf(jnp.zeros((HIDDEN, OUT_PAD), jnp.float32)
                     .at[:, :EMBED_SIZE].set(p['cls_w'])),              # (D, 128)
        'head_b': jnp.zeros((1, OUT_PAD), jnp.float32)
                  .at[0, :EMBED_SIZE].set(p['cls_b']),                  # (1, 128)
    }
    wqkv, bqkv, wo, wi, w2, vecd, bi = [], [], [], [], [], [], []
    for lp in p['layers']:
        # per-head [q|k|v] slabs, each zero-padded to 128 lanes; ATTN_SCALE folded into q
        wq_s, bq_s = lp['wq'] * ATTN_SCALE, lp['bq'] * ATTN_SCALE
        w_l = jnp.zeros((HIDDEN, QKV_W), jnp.float32)
        b_l = jnp.zeros((QKV_W,), jnp.float32)
        wo_l = jnp.zeros((WO_K, HIDDEN), jnp.float32)   # rows match padded ctx layout
        for h in range(HEADS):
            c0 = h * HEAD_DIM
            base = h * 3 * HEAD_PAD
            w_l = w_l.at[:, base:base + HEAD_DIM].set(wq_s[:, c0:c0 + HEAD_DIM])
            w_l = w_l.at[:, base + HEAD_PAD:base + HEAD_PAD + HEAD_DIM].set(
                lp['wk'][:, c0:c0 + HEAD_DIM])
            w_l = w_l.at[:, base + 2 * HEAD_PAD:base + 2 * HEAD_PAD + HEAD_DIM].set(
                lp['wv'][:, c0:c0 + HEAD_DIM])
            b_l = b_l.at[base:base + HEAD_DIM].set(bq_s[c0:c0 + HEAD_DIM])
            b_l = b_l.at[base + HEAD_PAD:base + HEAD_PAD + HEAD_DIM].set(
                lp['bk'][c0:c0 + HEAD_DIM])
            b_l = b_l.at[base + 2 * HEAD_PAD:base + 2 * HEAD_PAD + HEAD_DIM].set(
                lp['bv'][c0:c0 + HEAD_DIM])
            wo_l = wo_l.at[h * HEAD_PAD:h * HEAD_PAD + HEAD_DIM, :].set(
                lp['wo'][c0:c0 + HEAD_DIM, :])
        wqkv.append(w_l)
        bqkv.append(b_l[None, :])
        wo.append(wo_l)
        wi.append(lp['wi'])
        w2.append(lp['w2'])
        bi.append(lp['bi'][None, :])
        z = jnp.zeros_like(lp['g1'])
        vecd.append(jnp.stack([lp['g1'], lp['b1'], lp['bo'], lp['g2'],
                               lp['b2'], lp['b2m'], z, z]))
    prep.update({
        'wqkv': bf(jnp.stack(wqkv)),      # (L, D, QKV_W)
        'bqkv': jnp.stack(bqkv),          # (L, 1, QKV_W)
        'wo': bf(jnp.stack(wo)),          # (L, WO_K, D)
        'wi': bf(jnp.stack(wi)),          # (L, D, MLP)
        'w2': bf(jnp.stack(w2)),          # (L, MLP, D)
        'vec_d': jnp.stack(vecd),         # (L, 8, D)
        'bi': jnp.stack(bi),              # (L, 1, MLP)
    })
    return prep


def encoder_vit_forward(images, prep):
    patches = build_patch_matrix(images)
    vmem_specs = [pl.BlockSpec(memory_space=pltpu.MemorySpace.VMEM) for _ in range(14)]
    out = pl.pallas_call(
        vit_fused_kernel,
        out_shape=jax.ShapeDtypeStruct((TOK, OUT_PAD), jnp.float32),
        in_specs=vmem_specs,
        out_specs=pl.BlockSpec(memory_space=pltpu.MemorySpace.VMEM),
        # Single invocation: all weights (~0.6 MiB) stay VMEM-resident across layers.
        # TODO(synk): at real-ViT scale, reintroduce a ("parallel" token-tile,
        # "arbitrary" layer) grid with streamed per-layer weights and explicit
        # vmem_limit_bytes (64 MiB VMEM budget on v7x, deeper buffering on v6e).
    )(patches, prep['addend'], prep['mask'], prep['patch_w'],
      prep['wqkv'], prep['wo'], prep['wi'], prep['w2'],
      prep['vec_d'], prep['bqkv'], prep['bi'],
      prep['head_ln'], prep['head_w'], prep['head_b'])
    # CLS rows are b*SEQ_PAD; real embedding dims are the first EMBED_SIZE lanes.
    return out[::SEQ_PAD, :EMBED_SIZE]


# ------------------------- pure-JAX f32 reference -----------------------------
def encoder_vit_reference(images, p):
    patches = extract_patches(images)
    pe = patches @ p['patch_w'] + p['patch_b']
    cls = jnp.broadcast_to(p['cls'], (BATCH, 1, HIDDEN))
    x = jnp.concatenate([cls, pe], axis=1) + p['pos']

    def ln(v, g, b):
        mu = v.mean(-1, keepdims=True)
        var = ((v - mu) ** 2).mean(-1, keepdims=True)
        return (v - mu) * jax.lax.rsqrt(var + LN_EPS) * g + b

    for lp in p['layers']:
        h1 = ln(x, lp['g1'], lp['b1'])
        q = h1 @ lp['wq'] + lp['bq']
        k = h1 @ lp['wk'] + lp['bk']
        v = h1 @ lp['wv'] + lp['bv']
        qh = q.reshape(BATCH, SEQ, HEADS, HEAD_DIM).transpose(0, 2, 1, 3)
        kh = k.reshape(BATCH, SEQ, HEADS, HEAD_DIM).transpose(0, 2, 1, 3)
        vh = v.reshape(BATCH, SEQ, HEADS, HEAD_DIM).transpose(0, 2, 1, 3)
        s = jnp.einsum('bhqd,bhkd->bhqk', qh, kh) * ATTN_SCALE
        pm = jax.nn.softmax(s, axis=-1)
        ctx = jnp.einsum('bhqk,bhkd->bhqd', pm, vh)
        ctx = ctx.transpose(0, 2, 1, 3).reshape(BATCH, SEQ, HIDDEN)
        x = x + ctx @ lp['wo'] + lp['bo']
        h2 = ln(x, lp['g2'], lp['b2'])
        inter = jax.nn.gelu(h2 @ lp['wi'] + lp['bi'], approximate=True)
        x = x + inter @ lp['w2'] + lp['b2m']
    cls_tok = x[:, 0, :]
    return ln(cls_tok, p['ln_g'], p['ln_b']) @ p['cls_w'] + p['cls_b']


# ---------------------------- synthetic weights --------------------------------
def init_params(key):
    ks = jax.random.split(key, 4 + 6 * LAYERS)
    it = iter(ks)
    n = lambda shape, scale=0.02: jax.random.normal(next(it), shape, jnp.float32) * scale
    params = {
        'patch_w': n((PATCH_DIM, HIDDEN)),
        'patch_b': jnp.zeros((HIDDEN,), jnp.float32),
        'cls': n((1, 1, HIDDEN)),
        'pos': n((1, SEQ, HIDDEN)),
        'ln_g': jnp.ones((HIDDEN,), jnp.float32),
        'ln_b': jnp.zeros((HIDDEN,), jnp.float32),
        'cls_w': n((HIDDEN, EMBED_SIZE)),
        'cls_b': jnp.zeros((EMBED_SIZE,), jnp.float32),
        'layers': [],
    }
    for _ in range(LAYERS):
        params['layers'].append({
            'g1': jnp.ones((HIDDEN,), jnp.float32),
            'b1': jnp.zeros((HIDDEN,), jnp.float32),
            'wq': n((HIDDEN, HIDDEN)), 'bq': jnp.zeros((HIDDEN,), jnp.float32),
            'wk': n((HIDDEN, HIDDEN)), 'bk': jnp.zeros((HIDDEN,), jnp.float32),
            'wv': n((HIDDEN, HIDDEN)), 'bv': jnp.zeros((HIDDEN,), jnp.float32),
            'wo': n((HIDDEN, HIDDEN)), 'bo': jnp.zeros((HIDDEN,), jnp.float32),
            'g2': jnp.ones((HIDDEN,), jnp.float32),
            'b2': jnp.zeros((HIDDEN,), jnp.float32),
            'wi': n((HIDDEN, MLP)), 'bi': jnp.zeros((MLP,), jnp.float32),
            'w2': n((MLP, HIDDEN)), 'b2m': jnp.zeros((HIDDEN,), jnp.float32),
        })
    return params


if __name__ == "__main__":
    key = jax.random.PRNGKey(0)
    pkey, xkey = jax.random.split(key)
    params = init_params(pkey)
    prep = prepare_params(params)
    images = jax.random.normal(xkey, (BATCH, IN_CH, IMG, IMG), dtype=jnp.float32)

    fwd = jax.jit(encoder_vit_forward)
    features = jax.block_until_ready(fwd(images, prep))

    assert features.shape == (BATCH, EMBED_SIZE), features.shape
    assert jnp.all(jnp.isfinite(features))

    ref = encoder_vit_reference(images, params)
    max_err = float(jnp.max(jnp.abs(features - ref)))
    assert max_err < 5e-2, f"max abs err vs f32 reference: {max_err}"

    print("KERNEL_OK")
</pallas_src>

<mosaic_0001>
module attributes {stable_mosaic.version = 11 : i64} {
  func.func @vit_fused_kernel(%arg0: memref<16x768xbf16, #tpu.memory_space<vmem>>, %arg1: memref<16x128xf32, #tpu.memory_space<vmem>>, %arg2: memref<16x16xf32, #tpu.memory_space<vmem>>, %arg3: memref<768x128xbf16, #tpu.memory_space<vmem>>, %arg4: memref<2x128x768xbf16, #tpu.memory_space<vmem>>, %arg5: memref<2x256x128xbf16, #tpu.memory_space<vmem>>, %arg6: memref<2x128x256xbf16, #tpu.memory_space<vmem>>, %arg7: memref<2x256x128xbf16, #tpu.memory_space<vmem>>, %arg8: memref<2x8x128xf32, #tpu.memory_space<vmem>>, %arg9: memref<2x1x768xf32, #tpu.memory_space<vmem>>, %arg10: memref<2x1x256xf32, #tpu.memory_space<vmem>>, %arg11: memref<2x128xf32, #tpu.memory_space<vmem>>, %arg12: memref<128x128xbf16, #tpu.memory_space<vmem>>, %arg13: memref<1x128xf32, #tpu.memory_space<vmem>>, %arg14: memref<16x128xf32, #tpu.memory_space<vmem>>) attributes {dimension_semantics = [], scalar_prefetch = 0 : i64, scratch_operands = 0 : i64, tpu.core_type = #tpu.core_type<tc>} {
    %c0 = arith.constant 0 : index
    %c0_0 = arith.constant 0 : index
    %0 = vector.load %arg0[%c0, %c0_0] : memref<16x768xbf16, #tpu.memory_space<vmem>>, vector<16x768xbf16>
    %c0_1 = arith.constant 0 : index
    %c0_2 = arith.constant 0 : index
    %1 = vector.load %arg3[%c0_1, %c0_2] : memref<768x128xbf16, #tpu.memory_space<vmem>>, vector<768x128xbf16>
    %cst = arith.constant dense<0.000000e+00> : vector<16x128xf32>
    %2 = tpu.matmul %0, %1, %cst {dimension_numbers = #tpu.dot_dimension_numbers<[1], [0], [0], [1], [0, 0, 1, 1], [], []>} : vector<16x768xbf16>, vector<768x128xbf16>, vector<16x128xf32> -> vector<16x128xf32>
    %c0_3 = arith.constant 0 : index
    %c0_4 = arith.constant 0 : index
    %3 = vector.load %arg1[%c0_3, %c0_4] : memref<16x128xf32, #tpu.memory_space<vmem>>, vector<16x128xf32>
    %4 = arith.addf %2, %3 : vector<16x128xf32>
    %c0_5 = arith.constant 0 : index
    %c0_6 = arith.constant 0 : index
    %5 = vector.load %arg2[%c0_5, %c0_6] : memref<16x16xf32, #tpu.memory_space<vmem>>, vector<16x16xf32>
    %c0_7 = arith.constant 0 : index
    %c0_8 = arith.constant 0 : index
    %c0_9 = arith.constant 0 : index
    %6 = vector.load %arg8[%c0_7, %c0_8, %c0_9] : memref<2x8x128xf32, #tpu.memory_space<vmem>>, vector<1x8x128xf32>
    %7 = vector.shape_cast %6 : vector<1x8x128xf32> to vector<8x128xf32>
    %8 = vector.extract_strided_slice %7 {offsets = [0, 0], sizes = [1, 128], strides = [1, 1]} : vector<8x128xf32> to vector<1x128xf32>
    %9 = vector.extract_strided_slice %7 {offsets = [1, 0], sizes = [1, 128], strides = [1, 1]} : vector<8x128xf32> to vector<1x128xf32>
    %10 = vector.extract_strided_slice %7 {offsets = [2, 0], sizes = [1, 128], strides = [1, 1]} : vector<8x128xf32> to vector<1x128xf32>
    %11 = vector.extract_strided_slice %7 {offsets = [3, 0], sizes = [1, 128], strides = [1, 1]} : vector<8x128xf32> to vector<1x128xf32>
    %12 = vector.extract_strided_slice %7 {offsets = [4, 0], sizes = [1, 128], strides = [1, 1]} : vector<8x128xf32> to vector<1x128xf32>
    %13 = vector.extract_strided_slice %7 {offsets = [5, 0], sizes = [1, 128], strides = [1, 1]} : vector<8x128xf32> to vector<1x128xf32>
    %c0_10 = arith.constant 0 : index
    %c0_11 = arith.constant 0 : index
    %c0_12 = arith.constant 0 : index
    %14 = vector.load %arg9[%c0_10, %c0_11, %c0_12] : memref<2x1x768xf32, #tpu.memory_space<vmem>>, vector<1x1x768xf32>
    %15 = vector.shape_cast %14 : vector<1x1x768xf32> to vector<1x768xf32>
    %c0_13 = arith.constant 0 : index
    %c0_14 = arith.constant 0 : index
    %c0_15 = arith.constant 0 : index
    %16 = vector.load %arg10[%c0_13, %c0_14, %c0_15] : memref<2x1x256xf32, #tpu.memory_space<vmem>>, vector<1x1x256xf32>
    %17 = vector.shape_cast %16 : vector<1x1x256xf32> to vector<1x256xf32>
    %c0_16 = arith.constant 0 : index
    %c0_17 = arith.constant 0 : index
    %c0_18 = arith.constant 0 : index
    %18 = vector.load %arg4[%c0_16, %c0_17, %c0_18] : memref<2x128x768xbf16, #tpu.memory_space<vmem>>, vector<1x128x768xbf16>
    %19 = vector.shape_cast %18 : vector<1x128x768xbf16> to vector<128x768xbf16>
    %c0_19 = arith.constant 0 : index
    %c0_20 = arith.constant 0 : index
    %c0_21 = arith.constant 0 : index
    %20 = vector.load %arg5[%c0_19, %c0_20, %c0_21] : memref<2x256x128xbf16, #tpu.memory_space<vmem>>, vector<1x256x128xbf16>
    %21 = vector.shape_cast %20 : vector<1x256x128xbf16> to vector<256x128xbf16>
    %c0_22 = arith.constant 0 : index
    %c0_23 = arith.constant 0 : index
    %c0_24 = arith.constant 0 : index
    %22 = vector.load %arg6[%c0_22, %c0_23, %c0_24] : memref<2x128x256xbf16, #tpu.memory_space<vmem>>, vector<1x128x256xbf16>
    %23 = vector.shape_cast %22 : vector<1x128x256xbf16> to vector<128x256xbf16>
    %c0_25 = arith.constant 0 : index
    %c0_26 = arith.constant 0 : index
    %c0_27 = arith.constant 0 : index
    %24 = vector.load %arg7[%c0_25, %c0_26, %c0_27] : memref<2x256x128xbf16, #tpu.memory_space<vmem>>, vector<1x256x128xbf16>
    %25 = vector.shape_cast %24 : vector<1x256x128xbf16> to vector<256x128xbf16>
    %cst_28 = arith.constant dense<0.000000e+00> : vector<16xf32>
    %26 = vector.multi_reduction <add>, %4, %cst_28 [1] : vector<16x128xf32> to vector<16xf32>
    %27 = vector.shape_cast %26 : vector<16xf32> to vector<16x1xf32>
    %cst_29 = arith.constant 1.280000e+02 : f32
    %28 = vector.broadcast %cst_29 : f32 to vector<16x1xf32>
    %29 = arith.divf %27, %28 : vector<16x1xf32>
    %30 = vector.broadcast %29 : vector<16x1xf32> to vector<16x128xf32>
    %31 = arith.subf %4, %30 : vector<16x128xf32>
    %32 = arith.mulf %31, %31 : vector<16x128xf32>
    %cst_30 = arith.constant dense<0.000000e+00> : vector<16xf32>
    %33 = vector.multi_reduction <add>, %32, %cst_30 [1] : vector<16x128xf32> to vector<16xf32>
    %34 = vector.shape_cast %33 : vector<16xf32> to vector<16x1xf32>
    %cst_31 = arith.constant 1.280000e+02 : f32
    %35 = vector.broadcast %cst_31 : f32 to vector<16x1xf32>
    %36 = arith.divf %34, %35 : vector<16x1xf32>
    %37 = vector.broadcast %29 : vector<16x1xf32> to vector<16x128xf32>
    %38 = arith.subf %4, %37 : vector<16x128xf32>
    %cst_32 = arith.constant 9.99999996E-13 : f32
    %39 = vector.broadcast %cst_32 : f32 to vector<16x1xf32>
    %40 = arith.addf %36, %39 : vector<16x1xf32>
    %41 = math.rsqrt %40 : vector<16x1xf32>
    %42 = vector.broadcast %41 : vector<16x1xf32> to vector<16x128xf32>
    %43 = arith.mulf %38, %42 : vector<16x128xf32>
    %44 = vector.broadcast %8 : vector<1x128xf32> to vector<16x128xf32>
    %45 = arith.mulf %43, %44 : vector<16x128xf32>
    %46 = vector.broadcast %9 : vector<1x128xf32> to vector<16x128xf32>
    %47 = arith.addf %45, %46 : vector<16x128xf32>
    %48 = arith.truncf %47 : vector<16x128xf32> to vector<16x128xbf16>
    %cst_33 = arith.constant dense<0.000000e+00> : vector<16x768xf32>
    %49 = tpu.matmul %48, %19, %cst_33 {dimension_numbers = #tpu.dot_dimension_numbers<[1], [0], [0], [1], [0, 0, 1, 1], [], []>} : vector<16x128xbf16>, vector<128x768xbf16>, vector<16x768xf32> -> vector<16x768xf32>
    %50 = vector.broadcast %15 : vector<1x768xf32> to vector<16x768xf32>
    %51 = arith.addf %49, %50 : vector<16x768xf32>
    %52 = vector.extract_strided_slice %51 {offsets = [0, 0], sizes = [16, 128], strides = [1, 1]} : vector<16x768xf32> to vector<16x128xf32>
    %53 = vector.extract_strided_slice %51 {offsets = [0, 128], sizes = [16, 128], strides = [1, 1]} : vector<16x768xf32> to vector<16x128xf32>
    %54 = vector.extract_strided_slice %51 {offsets = [0, 256], sizes = [16, 128], strides = [1, 1]} : vector<16x768xf32> to vector<16x128xf32>
    %55 = arith.truncf %52 : vector<16x128xf32> to vector<16x128xbf16>
    %56 = arith.truncf %53 : vector<16x128xf32> to vector<16x128xbf16>
    "tpu.trace_start"() <{level = 10 : i32, message = "qd,kd->qk"}> : () -> ()
    %cst_34 = arith.constant dense<0.000000e+00> : vector<16x16xf32>
    %57 = tpu.matmul %55, %56, %cst_34 {dimension_numbers = #tpu.dot_dimension_numbers<[1], [1], [0], [0], [0, 0, 1, 0], [], []>} : vector<16x128xbf16>, vector<16x128xbf16>, vector<16x16xf32> -> vector<16x16xf32>
    "tpu.trace_stop"() : () -> ()
    %58 = arith.addf %57, %5 : vector<16x16xf32>
    %cst_35 = arith.constant dense<0xFF800000> : vector<16xf32>
    %59 = vector.multi_reduction <maximumf>, %58, %cst_35 [1] : vector<16x16xf32> to vector<16xf32>
    %60 = vector.shape_cast %59 : vector<16xf32> to vector<16x1xf32>
    %61 = vector.broadcast %60 : vector<16x1xf32> to vector<16x16xf32>
    %62 = arith.subf %58, %61 : vector<16x16xf32>
    %63 = math.exp %62 : vector<16x16xf32>
    %cst_36 = arith.constant dense<0.000000e+00> : vector<16xf32>
    %64 = vector.multi_reduction <add>, %63, %cst_36 [1] : vector<16x16xf32> to vector<16xf32>
    %65 = vector.shape_cast %64 : vector<16xf32> to vector<16x1xf32>
    %66 = tpu.reciprocal %65 {approx = true} : vector<16x1xf32> -> vector<16x1xf32>
    %67 = vector.broadcast %66 : vector<16x1xf32> to vector<16x16xf32>
    %68 = arith.mulf %63, %67 : vector<16x16xf32>
    %69 = arith.truncf %68 : vector<16x16xf32> to vector<16x16xbf16>
    %70 = arith.truncf %54 : vector<16x128xf32> to vector<16x128xbf16>
    %cst_37 = arith.constant dense<0.000000e+00> : vector<16x128xf32>
    %71 = tpu.matmul %69, %70, %cst_37 {dimension_numbers = #tpu.dot_dimension_numbers<[1], [0], [0], [1], [0, 0, 1, 1], [], []>} : vector<16x16xbf16>, vector<16x128xbf16>, vector<16x128xf32> -> vector<16x128xf32>
    %72 = vector.extract_strided_slice %51 {offsets = [0, 384], sizes = [16, 128], strides = [1, 1]} : vector<16x768xf32> to vector<16x128xf32>
    %73 = vector.extract_strided_slice %51 {offsets = [0, 512], sizes = [16, 128], strides = [1, 1]} : vector<16x768xf32> to vector<16x128xf32>
    %74 = vector.extract_strided_slice %51 {offsets = [0, 640], sizes = [16, 128], strides = [1, 1]} : vector<16x768xf32> to vector<16x128xf32>
    %75 = arith.truncf %72 : vector<16x128xf32> to vector<16x128xbf16>
    %76 = arith.truncf %73 : vector<16x128xf32> to vector<16x128xbf16>
    "tpu.trace_start"() <{level = 10 : i32, message = "qd,kd->qk"}> : () -> ()
    %cst_38 = arith.constant dense<0.000000e+00> : vector<16x16xf32>
    %77 = tpu.matmul %75, %76, %cst_38 {dimension_numbers = #tpu.dot_dimension_numbers<[1], [1], [0], [0], [0, 0, 1, 0], [], []>} : vector<16x128xbf16>, vector<16x128xbf16>, vector<16x16xf32> -> vector<16x16xf32>
    "tpu.trace_stop"() : () -> ()
    %78 = arith.addf %77, %5 : vector<16x16xf32>
    %cst_39 = arith.constant dense<0xFF800000> : vector<16xf32>
    %79 = vector.multi_reduction <maximumf>, %78, %cst_39 [1] : vector<16x16xf32> to vector<16xf32>
    %80 = vector.shape_cast %79 : vector<16xf32> to vector<16x1xf32>
    %81 = vector.broadcast %80 : vector<16x1xf32> to vector<16x16xf32>
    %82 = arith.subf %78, %81 : vector<16x16xf32>
    %83 = math.exp %82 : vector<16x16xf32>
    %cst_40 = arith.constant dense<0.000000e+00> : vector<16xf32>
    %84 = vector.multi_reduction <add>, %83, %cst_40 [1] : vector<16x16xf32> to vector<16xf32>
    %85 = vector.shape_cast %84 : vector<16xf32> to vector<16x1xf32>
    %86 = tpu.reciprocal %85 {approx = true} : vector<16x1xf32> -> vector<16x1xf32>
    %87 = vector.broadcast %86 : vector<16x1xf32> to vector<16x16xf32>
    %88 = arith.mulf %83, %87 : vector<16x16xf32>
    %89 = arith.truncf %88 : vector<16x16xf32> to vector<16x16xbf16>
    %90 = arith.truncf %74 : vector<16x128xf32> to vector<16x128xbf16>
    %cst_41 = arith.constant dense<0.000000e+00> : vector<16x128xf32>
    %91 = tpu.matmul %89, %90, %cst_41 {dimension_numbers = #tpu.dot_dimension_numbers<[1], [0], [0], [1], [0, 0, 1, 1], [], []>} : vector<16x16xbf16>, vector<16x128xbf16>, vector<16x128xf32> -> vector<16x128xf32>
    %92 = tpu.concatenate %71, %91 in 1 : vector<16x128xf32>, vector<16x128xf32> -> vector<16x256xf32>
    %93 = arith.truncf %92 : vector<16x256xf32> to vector<16x256xbf16>
    %cst_42 = arith.constant dense<0.000000e+00> : vector<16x128xf32>
    %94 = tpu.matmul %93, %21, %cst_42 {dimension_numbers = #tpu.dot_dimension_numbers<[1], [0], [0], [1], [0, 0, 1, 1], [], []>} : vector<16x256xbf16>, vector<256x128xbf16>, vector<16x128xf32> -> vector<16x128xf32>
    %95 = vector.broadcast %10 : vector<1x128xf32> to vector<16x128xf32>
    %96 = arith.addf %94, %95 : vector<16x128xf32>
    %97 = arith.addf %4, %96 : vector<16x128xf32>
    %cst_43 = arith.constant dense<0.000000e+00> : vector<16xf32>
    %98 = vector.multi_reduction <add>, %97, %cst_43 [1] : vector<16x128xf32> to vector<16xf32>
    %99 = vector.shape_cast %98 : vector<16xf32> to vector<16x1xf32>
    %cst_44 = arith.constant 1.280000e+02 : f32
    %100 = vector.broadcast %cst_44 : f32 to vector<16x1xf32>
    %101 = arith.divf %99, %100 : vector<16x1xf32>
    %102 = vector.broadcast %101 : vector<16x1xf32> to vector<16x128xf32>
    %103 = arith.subf %97, %102 : vector<16x128xf32>
    %104 = arith.mulf %103, %103 : vector<16x128xf32>
    %cst_45 = arith.constant dense<0.000000e+00> : vector<16xf32>
    %105 = vector.multi_reduction <add>, %104, %cst_45 [1] : vector<16x128xf32> to vector<16xf32>
    %106 = vector.shape_cast %105 : vector<16xf32> to vector<16x1xf32>
    %cst_46 = arith.constant 1.280000e+02 : f32
    %107 = vector.broadcast %cst_46 : f32 to vector<16x1xf32>
    %108 = arith.divf %106, %107 : vector<16x1xf32>
    %109 = vector.broadcast %101 : vector<16x1xf32> to vector<16x128xf32>
    %110 = arith.subf %97, %109 : vector<16x128xf32>
    %cst_47 = arith.constant 9.99999996E-13 : f32
    %111 = vector.broadcast %cst_47 : f32 to vector<16x1xf32>
    %112 = arith.addf %108, %111 : vector<16x1xf32>
    %113 = math.rsqrt %112 : vector<16x1xf32>
    %114 = vector.broadcast %113 : vector<16x1xf32> to vector<16x128xf32>
    %115 = arith.mulf %110, %114 : vector<16x128xf32>
    %116 = vector.broadcast %11 : vector<1x128xf32> to vector<16x128xf32>
    %117 = arith.mulf %115, %116 : vector<16x128xf32>
    %118 = vector.broadcast %12 : vector<1x128xf32> to vector<16x128xf32>
    %119 = arith.addf %117, %118 : vector<16x128xf32>
    %120 = arith.truncf %119 : vector<16x128xf32> to vector<16x128xbf16>
    %cst_48 = arith.constant dense<0.000000e+00> : vector<16x256xf32>
    %121 = tpu.matmul %120, %23, %cst_48 {dimension_numbers = #tpu.dot_dimension_numbers<[1], [0], [0], [1], [0, 0, 1, 1], [], []>} : vector<16x128xbf16>, vector<128x256xbf16>, vector<16x256xf32> -> vector<16x256xf32>
    %122 = vector.broadcast %17 : vector<1x256xf32> to vector<16x256xf32>
    %123 = arith.addf %121, %122 : vector<16x256xf32>
    %124 = arith.mulf %123, %123 : vector<16x256xf32>
    %125 = arith.mulf %123, %124 : vector<16x256xf32>
    %cst_49 = arith.constant 4.471500e-02 : f32
    %126 = vector.broadcast %cst_49 : f32 to vector<16x256xf32>
    %127 = arith.mulf %126, %125 : vector<16x256xf32>
    %128 = arith.addf %123, %127 : vector<16x256xf32>
    %cst_50 = arith.constant 0.797884583 : f32
    %129 = vector.broadcast %cst_50 : f32 to vector<16x256xf32>
    %130 = arith.mulf %129, %128 : vector<16x256xf32>
    %131 = math.tanh %130 : vector<16x256xf32>
    %cst_51 = arith.constant 1.000000e+00 : f32
    %132 = vector.broadcast %cst_51 : f32 to vector<16x256xf32>
    %133 = arith.addf %132, %131 : vector<16x256xf32>
    %cst_52 = arith.constant 5.000000e-01 : f32
    %134 = vector.broadcast %cst_52 : f32 to vector<16x256xf32>
    %135 = arith.mulf %134, %133 : vector<16x256xf32>
    %136 = arith.mulf %123, %135 : vector<16x256xf32>
    %137 = arith.truncf %136 : vector<16x256xf32> to vector<16x256xbf16>
    %cst_53 = arith.constant dense<0.000000e+00> : vector<16x128xf32>
    %138 = tpu.matmul %137, %25, %cst_53 {dimension_numbers = #tpu.dot_dimension_numbers<[1], [0], [0], [1], [0, 0, 1, 1], [], []>} : vector<16x256xbf16>, vector<256x128xbf16>, vector<16x128xf32> -> vector<16x128xf32>
    %139 = arith.addf %97, %138 : vector<16x128xf32>
    %140 = vector.broadcast %13 : vector<1x128xf32> to vector<16x128xf32>
    %141 = arith.addf %139, %140 : vector<16x128xf32>
    %c1 = arith.constant 1 : index
    %c0_54 = arith.constant 0 : index
    %c0_55 = arith.constant 0 : index
    %142 = vector.load %arg8[%c1, %c0_54, %c0_55] : memref<2x8x128xf32, #tpu.memory_space<vmem>>, vector<1x8x128xf32>
    %143 = vector.shape_cast %142 : vector<1x8x128xf32> to vector<8x128xf32>
    %144 = vector.extract_strided_slice %143 {offsets = [0, 0], sizes = [1, 128], strides = [1, 1]} : vector<8x128xf32> to vector<1x128xf32>
    %145 = vector.extract_strided_slice %143 {offsets = [1, 0], sizes = [1, 128], strides = [1, 1]} : vector<8x128xf32> to vector<1x128xf32>
    %146 = vector.extract_strided_slice %143 {offsets = [2, 0], sizes = [1, 128], strides = [1, 1]} : vector<8x128xf32> to vector<1x128xf32>
    %147 = vector.extract_strided_slice %143 {offsets = [3, 0], sizes = [1, 128], strides = [1, 1]} : vector<8x128xf32> to vector<1x128xf32>
    %148 = vector.extract_strided_slice %143 {offsets = [4, 0], sizes = [1, 128], strides = [1, 1]} : vector<8x128xf32> to vector<1x128xf32>
    %149 = vector.extract_strided_slice %143 {offsets = [5, 0], sizes = [1, 128], strides = [1, 1]} : vector<8x128xf32> to vector<1x128xf32>
    %c1_56 = arith.constant 1 : index
    %c0_57 = arith.constant 0 : index
    %c0_58 = arith.constant 0 : index
    %150 = vector.load %arg9[%c1_56, %c0_57, %c0_58] : memref<2x1x768xf32, #tpu.memory_space<vmem>>, vector<1x1x768xf32>
    %151 = vector.shape_cast %150 : vector<1x1x768xf32> to vector<1x768xf32>
    %c1_59 = arith.constant 1 : index
    %c0_60 = arith.constant 0 : index
    %c0_61 = arith.constant 0 : index
    %152 = vector.load %arg10[%c1_59, %c0_60, %c0_61] : memref<2x1x256xf32, #tpu.memory_space<vmem>>, vector<1x1x256xf32>
    %153 = vector.shape_cast %152 : vector<1x1x256xf32> to vector<1x256xf32>
    %c1_62 = arith.constant 1 : index
    %c0_63 = arith.constant 0 : index
    %c0_64 = arith.constant 0 : index
    %154 = vector.load %arg4[%c1_62, %c0_63, %c0_64] : memref<2x128x768xbf16, #tpu.memory_space<vmem>>, vector<1x128x768xbf16>
    %155 = vector.shape_cast %154 : vector<1x128x768xbf16> to vector<128x768xbf16>
    %c1_65 = arith.constant 1 : index
    %c0_66 = arith.constant 0 : index
    %c0_67 = arith.constant 0 : index
    %156 = vector.load %arg5[%c1_65, %c0_66, %c0_67] : memref<2x256x128xbf16, #tpu.memory_space<vmem>>, vector<1x256x128xbf16>
    %157 = vector.shape_cast %156 : vector<1x256x128xbf16> to vector<256x128xbf16>
    %c1_68 = arith.constant 1 : index
    %c0_69 = arith.constant 0 : index
    %c0_70 = arith.constant 0 : index
    %158 = vector.load %arg6[%c1_68, %c0_69, %c0_70] : memref<2x128x256xbf16, #tpu.memory_space<vmem>>, vector<1x128x256xbf16>
    %159 = vector.shape_cast %158 : vector<1x128x256xbf16> to vector<128x256xbf16>
    %c1_71 = arith.constant 1 : index
    %c0_72 = arith.constant 0 : index
    %c0_73 = arith.constant 0 : index
    %160 = vector.load %arg7[%c1_71, %c0_72, %c0_73] : memref<2x256x128xbf16, #tpu.memory_space<vmem>>, vector<1x256x128xbf16>
    %161 = vector.shape_cast %160 : vector<1x256x128xbf16> to vector<256x128xbf16>
    %cst_74 = arith.constant dense<0.000000e+00> : vector<16xf32>
    %162 = vector.multi_reduction <add>, %141, %cst_74 [1] : vector<16x128xf32> to vector<16xf32>
    %163 = vector.shape_cast %162 : vector<16xf32> to vector<16x1xf32>
    %cst_75 = arith.constant 1.280000e+02 : f32
    %164 = vector.broadcast %cst_75 : f32 to vector<16x1xf32>
    %165 = arith.divf %163, %164 : vector<16x1xf32>
    %166 = vector.broadcast %165 : vector<16x1xf32> to vector<16x128xf32>
    %167 = arith.subf %141, %166 : vector<16x128xf32>
    %168 = arith.mulf %167, %167 : vector<16x128xf32>
    %cst_76 = arith.constant dense<0.000000e+00> : vector<16xf32>
    %169 = vector.multi_reduction <add>, %168, %cst_76 [1] : vector<16x128xf32> to vector<16xf32>
    %170 = vector.shape_cast %169 : vector<16xf32> to vector<16x1xf32>
    %cst_77 = arith.constant 1.280000e+02 : f32
    %171 = vector.broadcast %cst_77 : f32 to vector<16x1xf32>
    %172 = arith.divf %170, %171 : vector<16x1xf32>
    %173 = vector.broadcast %165 : vector<16x1xf32> to vector<16x128xf32>
    %174 = arith.subf %141, %173 : vector<16x128xf32>
    %cst_78 = arith.constant 9.99999996E-13 : f32
    %175 = vector.broadcast %cst_78 : f32 to vector<16x1xf32>
    %176 = arith.addf %172, %175 : vector<16x1xf32>
    %177 = math.rsqrt %176 : vector<16x1xf32>
    %178 = vector.broadcast %177 : vector<16x1xf32> to vector<16x128xf32>
    %179 = arith.mulf %174, %178 : vector<16x128xf32>
    %180 = vector.broadcast %144 : vector<1x128xf32> to vector<16x128xf32>
    %181 = arith.mulf %179, %180 : vector<16x128xf32>
    %182 = vector.broadcast %145 : vector<1x128xf32> to vector<16x128xf32>
    %183 = arith.addf %181, %182 : vector<16x128xf32>
    %184 = arith.truncf %183 : vector<16x128xf32> to vector<16x128xbf16>
    %cst_79 = arith.constant dense<0.000000e+00> : vector<16x768xf32>
    %185 = tpu.matmul %184, %155, %cst_79 {dimension_numbers = #tpu.dot_dimension_numbers<[1], [0], [0], [1], [0, 0, 1, 1], [], []>} : vector<16x128xbf16>, vector<128x768xbf16>, vector<16x768xf32> -> vector<16x768xf32>
    %186 = vector.broadcast %151 : vector<1x768xf32> to vector<16x768xf32>
    %187 = arith.addf %185, %186 : vector<16x768xf32>
    %188 = vector.extract_strided_slice %187 {offsets = [0, 0], sizes = [16, 128], strides = [1, 1]} : vector<16x768xf32> to vector<16x128xf32>
    %189 = vector.extract_strided_slice %187 {offsets = [0, 128], sizes = [16, 128], strides = [1, 1]} : vector<16x768xf32> to vector<16x128xf32>
    %190 = vector.extract_strided_slice %187 {offsets = [0, 256], sizes = [16, 128], strides = [1, 1]} : vector<16x768xf32> to vector<16x128xf32>
    %191 = arith.truncf %188 : vector<16x128xf32> to vector<16x128xbf16>
    %192 = arith.truncf %189 : vector<16x128xf32> to vector<16x128xbf16>
    "tpu.trace_start"() <{level = 10 : i32, message = "qd,kd->qk"}> : () -> ()
    %cst_80 = arith.constant dense<0.000000e+00> : vector<16x16xf32>
    %193 = tpu.matmul %191, %192, %cst_80 {dimension_numbers = #tpu.dot_dimension_numbers<[1], [1], [0], [0], [0, 0, 1, 0], [], []>} : vector<16x128xbf16>, vector<16x128xbf16>, vector<16x16xf32> -> vector<16x16xf32>
    "tpu.trace_stop"() : () -> ()
    %194 = arith.addf %193, %5 : vector<16x16xf32>
    %cst_81 = arith.constant dense<0xFF800000> : vector<16xf32>
    %195 = vector.multi_reduction <maximumf>, %194, %cst_81 [1] : vector<16x16xf32> to vector<16xf32>
    %196 = vector.shape_cast %195 : vector<16xf32> to vector<16x1xf32>
    %197 = vector.broadcast %196 : vector<16x1xf32> to vector<16x16xf32>
    %198 = arith.subf %194, %197 : vector<16x16xf32>
    %199 = math.exp %198 : vector<16x16xf32>
    %cst_82 = arith.constant dense<0.000000e+00> : vector<16xf32>
    %200 = vector.multi_reduction <add>, %199, %cst_82 [1] : vector<16x16xf32> to vector<16xf32>
    %201 = vector.shape_cast %200 : vector<16xf32> to vector<16x1xf32>
    %202 = tpu.reciprocal %201 {approx = true} : vector<16x1xf32> -> vector<16x1xf32>
    %203 = vector.broadcast %202 : vector<16x1xf32> to vector<16x16xf32>
    %204 = arith.mulf %199, %203 : vector<16x16xf32>
    %205 = arith.truncf %204 : vector<16x16xf32> to vector<16x16xbf16>
    %206 = arith.truncf %190 : vector<16x128xf32> to vector<16x128xbf16>
    %cst_83 = arith.constant dense<0.000000e+00> : vector<16x128xf32>
    %207 = tpu.matmul %205, %206, %cst_83 {dimension_numbers = #tpu.dot_dimension_numbers<[1], [0], [0], [1], [0, 0, 1, 1], [], []>} : vector<16x16xbf16>, vector<16x128xbf16>, vector<16x128xf32> -> vector<16x128xf32>
    %208 = vector.extract_strided_slice %187 {offsets = [0, 384], sizes = [16, 128], strides = [1, 1]} : vector<16x768xf32> to vector<16x128xf32>
    %209 = vector.extract_strided_slice %187 {offsets = [0, 512], sizes = [16, 128], strides = [1, 1]} : vector<16x768xf32> to vector<16x128xf32>
    %210 = vector.extract_strided_slice %187 {offsets = [0, 640], sizes = [16, 128], strides = [1, 1]} : vector<16x768xf32> to vector<16x128xf32>
    %211 = arith.truncf %208 : vector<16x128xf32> to vector<16x128xbf16>
    %212 = arith.truncf %209 : vector<16x128xf32> to vector<16x128xbf16>
    "tpu.trace_start"() <{level = 10 : i32, message = "qd,kd->qk"}> : () -> ()
    %cst_84 = arith.constant dense<0.000000e+00> : vector<16x16xf32>
    %213 = tpu.matmul %211, %212, %cst_84 {dimension_numbers = #tpu.dot_dimension_numbers<[1], [1], [0], [0], [0, 0, 1, 0], [], []>} : vector<16x128xbf16>, vector<16x128xbf16>, vector<16x16xf32> -> vector<16x16xf32>
    "tpu.trace_stop"() : () -> ()
    %214 = arith.addf %213, %5 : vector<16x16xf32>
    %cst_85 = arith.constant dense<0xFF800000> : vector<16xf32>
    %215 = vector.multi_reduction <maximumf>, %214, %cst_85 [1] : vector<16x16xf32> to vector<16xf32>
    %216 = vector.shape_cast %215 : vector<16xf32> to vector<16x1xf32>
    %217 = vector.broadcast %216 : vector<16x1xf32> to vector<16x16xf32>
    %218 = arith.subf %214, %217 : vector<16x16xf32>
    %219 = math.exp %218 : vector<16x16xf32>
    %cst_86 = arith.constant dense<0.000000e+00> : vector<16xf32>
    %220 = vector.multi_reduction <add>, %219, %cst_86 [1] : vector<16x16xf32> to vector<16xf32>
    %221 = vector.shape_cast %220 : vector<16xf32> to vector<16x1xf32>
    %222 = tpu.reciprocal %221 {approx = true} : vector<16x1xf32> -> vector<16x1xf32>
    %223 = vector.broadcast %222 : vector<16x1xf32> to vector<16x16xf32>
    %224 = arith.mulf %219, %223 : vector<16x16xf32>
    %225 = arith.truncf %224 : vector<16x16xf32> to vector<16x16xbf16>
    %226 = arith.truncf %210 : vector<16x128xf32> to vector<16x128xbf16>
    %cst_87 = arith.constant dense<0.000000e+00> : vector<16x128xf32>
    %227 = tpu.matmul %225, %226, %cst_87 {dimension_numbers = #tpu.dot_dimension_numbers<[1], [0], [0], [1], [0, 0, 1, 1], [], []>} : vector<16x16xbf16>, vector<16x128xbf16>, vector<16x128xf32> -> vector<16x128xf32>
    %228 = tpu.concatenate %207, %227 in 1 : vector<16x128xf32>, vector<16x128xf32> -> vector<16x256xf32>
    %229 = arith.truncf %228 : vector<16x256xf32> to vector<16x256xbf16>
    %cst_88 = arith.constant dense<0.000000e+00> : vector<16x128xf32>
    %230 = tpu.matmul %229, %157, %cst_88 {dimension_numbers = #tpu.dot_dimension_numbers<[1], [0], [0], [1], [0, 0, 1, 1], [], []>} : vector<16x256xbf16>, vector<256x128xbf16>, vector<16x128xf32> -> vector<16x128xf32>
    %231 = vector.broadcast %146 : vector<1x128xf32> to vector<16x128xf32>
    %232 = arith.addf %230, %231 : vector<16x128xf32>
    %233 = arith.addf %141, %232 : vector<16x128xf32>
    %cst_89 = arith.constant dense<0.000000e+00> : vector<16xf32>
    %234 = vector.multi_reduction <add>, %233, %cst_89 [1] : vector<16x128xf32> to vector<16xf32>
    %235 = vector.shape_cast %234 : vector<16xf32> to vector<16x1xf32>
    %cst_90 = arith.constant 1.280000e+02 : f32
    %236 = vector.broadcast %cst_90 : f32 to vector<16x1xf32>
    %237 = arith.divf %235, %236 : vector<16x1xf32>
    %238 = vector.broadcast %237 : vector<16x1xf32> to vector<16x128xf32>
    %239 = arith.subf %233, %238 : vector<16x128xf32>
    %240 = arith.mulf %239, %239 : vector<16x128xf32>
    %cst_91 = arith.constant dense<0.000000e+00> : vector<16xf32>
    %241 = vector.multi_reduction <add>, %240, %cst_91 [1] : vector<16x128xf32> to vector<16xf32>
    %242 = vector.shape_cast %241 : vector<16xf32> to vector<16x1xf32>
    %cst_92 = arith.constant 1.280000e+02 : f32
    %243 = vector.broadcast %cst_92 : f32 to vector<16x1xf32>
    %244 = arith.divf %242, %243 : vector<16x1xf32>
    %245 = vector.broadcast %237 : vector<16x1xf32> to vector<16x128xf32>
    %246 = arith.subf %233, %245 : vector<16x128xf32>
    %cst_93 = arith.constant 9.99999996E-13 : f32
    %247 = vector.broadcast %cst_93 : f32 to vector<16x1xf32>
    %248 = arith.addf %244, %247 : vector<16x1xf32>
    %249 = math.rsqrt %248 : vector<16x1xf32>
    %250 = vector.broadcast %249 : vector<16x1xf32> to vector<16x128xf32>
    %251 = arith.mulf %246, %250 : vector<16x128xf32>
    %252 = vector.broadcast %147 : vector<1x128xf32> to vector<16x128xf32>
    %253 = arith.mulf %251, %252 : vector<16x128xf32>
    %254 = vector.broadcast %148 : vector<1x128xf32> to vector<16x128xf32>
    %255 = arith.addf %253, %254 : vector<16x128xf32>
    %256 = arith.truncf %255 : vector<16x128xf32> to vector<16x128xbf16>
    %cst_94 = arith.constant dense<0.000000e+00> : vector<16x256xf32>
    %257 = tpu.matmul %256, %159, %cst_94 {dimension_numbers = #tpu.dot_dimension_numbers<[1], [0], [0], [1], [0, 0, 1, 1], [], []>} : vector<16x128xbf16>, vector<128x256xbf16>, vector<16x256xf32> -> vector<16x256xf32>
    %258 = vector.broadcast %153 : vector<1x256xf32> to vector<16x256xf32>
    %259 = arith.addf %257, %258 : vector<16x256xf32>
    %260 = arith.mulf %259, %259 : vector<16x256xf32>
    %261 = arith.mulf %259, %260 : vector<16x256xf32>
    %cst_95 = arith.constant 4.471500e-02 : f32
    %262 = vector.broadcast %cst_95 : f32 to vector<16x256xf32>
    %263 = arith.mulf %262, %261 : vector<16x256xf32>
    %264 = arith.addf %259, %263 : vector<16x256xf32>
    %cst_96 = arith.constant 0.797884583 : f32
    %265 = vector.broadcast %cst_96 : f32 to vector<16x256xf32>
    %266 = arith.mulf %265, %264 : vector<16x256xf32>
    %267 = math.tanh %266 : vector<16x256xf32>
    %cst_97 = arith.constant 1.000000e+00 : f32
    %268 = vector.broadcast %cst_97 : f32 to vector<16x256xf32>
    %269 = arith.addf %268, %267 : vector<16x256xf32>
    %cst_98 = arith.constant 5.000000e-01 : f32
    %270 = vector.broadcast %cst_98 : f32 to vector<16x256xf32>
    %271 = arith.mulf %270, %269 : vector<16x256xf32>
    %272 = arith.mulf %259, %271 : vector<16x256xf32>
    %273 = arith.truncf %272 : vector<16x256xf32> to vector<16x256xbf16>
    %cst_99 = arith.constant dense<0.000000e+00> : vector<16x128xf32>
    %274 = tpu.matmul %273, %161, %cst_99 {dimension_numbers = #tpu.dot_dimension_numbers<[1], [0], [0], [1], [0, 0, 1, 1], [], []>} : vector<16x256xbf16>, vector<256x128xbf16>, vector<16x128xf32> -> vector<16x128xf32>
    %275 = arith.addf %233, %274 : vector<16x128xf32>
    %276 = vector.broadcast %149 : vector<1x128xf32> to vector<16x128xf32>
    %277 = arith.addf %275, %276 : vector<16x128xf32>
    %c0_100 = arith.constant 0 : index
    %c0_101 = arith.constant 0 : index
    %278 = vector.load %arg11[%c0_100, %c0_101] : memref<2x128xf32, #tpu.memory_space<vmem>>, vector<1x128xf32>
    %c1_102 = arith.constant 1 : index
    %c0_103 = arith.constant 0 : index
    %279 = vector.load %arg11[%c1_102, %c0_103] : memref<2x128xf32, #tpu.memory_space<vmem>>, vector<1x128xf32>
    %cst_104 = arith.constant dense<0.000000e+00> : vector<16xf32>
    %280 = vector.multi_reduction <add>, %277, %cst_104 [1] : vector<16x128xf32> to vector<16xf32>
    %281 = vector.shape_cast %280 : vector<16xf32> to vector<16x1xf32>
    %cst_105 = arith.constant 1.280000e+02 : f32
    %282 = vector.broadcast %cst_105 : f32 to vector<16x1xf32>
    %283 = arith.divf %281, %282 : vector<16x1xf32>
    %284 = vector.broadcast %283 : vector<16x1xf32> to vector<16x128xf32>
    %285 = arith.subf %277, %284 : vector<16x128xf32>
    %286 = arith.mulf %285, %285 : vector<16x128xf32>
    %cst_106 = arith.constant dense<0.000000e+00> : vector<16xf32>
    %287 = vector.multi_reduction <add>, %286, %cst_106 [1] : vector<16x128xf32> to vector<16xf32>
    %288 = vector.shape_cast %287 : vector<16xf32> to vector<16x1xf32>
    %cst_107 = arith.constant 1.280000e+02 : f32
    %289 = vector.broadcast %cst_107 : f32 to vector<16x1xf32>
    %290 = arith.divf %288, %289 : vector<16x1xf32>
    %291 = vector.broadcast %283 : vector<16x1xf32> to vector<16x128xf32>
    %292 = arith.subf %277, %291 : vector<16x128xf32>
    %cst_108 = arith.constant 9.99999996E-13 : f32
    %293 = vector.broadcast %cst_108 : f32 to vector<16x1xf32>
    %294 = arith.addf %290, %293 : vector<16x1xf32>
    %295 = math.rsqrt %294 : vector<16x1xf32>
    %296 = vector.broadcast %295 : vector<16x1xf32> to vector<16x128xf32>
    %297 = arith.mulf %292, %296 : vector<16x128xf32>
    %298 = vector.broadcast %278 : vector<1x128xf32> to vector<16x128xf32>
    %299 = arith.mulf %297, %298 : vector<16x128xf32>
    %300 = vector.broadcast %279 : vector<1x128xf32> to vector<16x128xf32>
    %301 = arith.addf %299, %300 : vector<16x128xf32>
    %302 = arith.truncf %301 : vector<16x128xf32> to vector<16x128xbf16>
    %c0_109 = arith.constant 0 : index
    %c0_110 = arith.constant 0 : index
    %303 = vector.load %arg12[%c0_109, %c0_110] : memref<128x128xbf16, #tpu.memory_space<vmem>>, vector<128x128xbf16>
    %cst_111 = arith.constant dense<0.000000e+00> : vector<16x128xf32>
    %304 = tpu.matmul %302, %303, %cst_111 {dimension_numbers = #tpu.dot_dimension_numbers<[1], [0], [0], [1], [0, 0, 1, 1], [], []>} : vector<16x128xbf16>, vector<128x128xbf16>, vector<16x128xf32> -> vector<16x128xf32>
    %c0_112 = arith.constant 0 : index
    %c0_113 = arith.constant 0 : index
    %305 = vector.load %arg13[%c0_112, %c0_113] : memref<1x128xf32, #tpu.memory_space<vmem>>, vector<1x128xf32>
    %306 = vector.broadcast %305 : vector<1x128xf32> to vector<16x128xf32>
    %307 = arith.addf %304, %306 : vector<16x128xf32>
    %c0_114 = arith.constant 0 : index
    %c0_115 = arith.constant 0 : index
    %308 = vector.load %arg14[%c0_114, %c0_115] : memref<16x128xf32, #tpu.memory_space<vmem>>, vector<16x128xf32>
    tpu.vector_store %arg14[%c0_114, %c0_115], %307 {strides = array<i32>} : memref<16x128xf32, #tpu.memory_space<vmem>>, vector<16x128xf32>,
    return
  }
}

</mosaic_0001>

<llo_original>
// kernel: encoder_vit_forward.1
$region0: #{encoder_vit_forward.1}
  #allocation0 [shape = 'u32[]', space=smem, size = 0x4, offset = 0x4, fixed_abs, tag = 'smem constant byte address 0x4 - core index']
  #allocation1 [shape = 'u32[72,128]{1,0:T(1,128)}', space=vmem, size = 0x9000, scoped, tag = 'internal scratch']
  %s0 = inlined_call_operand.vmem [shape: bf16[16,768], index: 0, kind: input, shape index: {}]
  %s1 = inlined_call_operand.vmem [shape: f32[16,128], index: 1, kind: input, shape index: {}]
  %s2 = inlined_call_operand.vmem [shape: f32[16,16], index: 2, kind: input, shape index: {}]
  %s3 = inlined_call_operand.vmem [shape: bf16[768,128], index: 3, kind: input, shape index: {}]
  %s4 = inlined_call_operand.vmem [shape: bf16[2,128,768], index: 4, kind: input, shape index: {}]
  %s5 = inlined_call_operand.hbm [shape: bf16[2,256,128], index: 5, kind: input, shape index: {}]
  %s6 = inlined_call_operand.hbm [shape: bf16[2,128,256], index: 6, kind: input, shape index: {}]
  %s7 = inlined_call_operand.hbm [shape: bf16[2,256,128], index: 7, kind: input, shape index: {}]
  %s8 = inlined_call_operand.hbm [shape: f32[2,8,128], index: 8, kind: input, shape index: {}]
  %s9 = inlined_call_operand.vmem [shape: f32[2,1,768], index: 9, kind: input, shape index: {}]
  %s10 = inlined_call_operand.hbm [shape: f32[2,1,256], index: 10, kind: input, shape index: {}]
  %s11 = inlined_call_operand.hbm [shape: f32[2,128], index: 11, kind: input, shape index: {}]
  %s12 = inlined_call_operand.vmem [shape: bf16[128,128], index: 12, kind: input, shape index: {}]
  %s13 = inlined_call_operand.vmem [shape: f32[1,128], index: 13, kind: input, shape index: {}]
  %s14 = inlined_call_operand.vmem [shape: f32[16,128], index: 14, kind: output, shape index: {}]
  %s15 = sld [smem:[#allocation0]]
  $region90: #{encoder_vit_forward.1} parent=0
    _
  %s17 = ssub.s32 1, %s15
  %s18 = scalar_select 0, %s17, %s15
  $region1: #{encoder_vit_forward.1} parent=0
    #allocation2 [shape = 'u8[131072]{0}', space=vmem, size = 0x20000, scoped, tag = 'input window, operand 5, single buffered']
    #allocation3 [shape = 's32[1]{0}', space=sflag, size = 0x4, scoped, tag = 'scoped memory for encoder_vit_forward.1']
    #allocation4 [shape = 'u8[131072]{0}', space=vmem, size = 0x20000, scoped, tag = 'input window, operand 6, single buffered']
    #allocation5 [shape = 's32[1]{0}', space=sflag, size = 0x4, scoped, tag = 'scoped memory for encoder_vit_forward.1']
    #allocation6 [shape = 'u8[131072]{0}', space=vmem, size = 0x20000, scoped, tag = 'input window, operand 7, single buffered']
    #allocation7 [shape = 'u8[8192]{0}', space=vmem, size = 0x2000, scoped, tag = 'input window, operand 8, single buffered']
    #allocation8 [shape = 's32[1]{0}', space=sflag, size = 0x4, scoped, tag = 'scoped memory for encoder_vit_forward.1']
    #allocation9 [shape = 'u8[2048]{0}', space=vmem, size = 0x800, scoped, tag = 'input window, operand 10, single buffered']
    #allocation10 [shape = 'u8[1024]{0}', space=vmem, size = 0x400, scoped, tag = 'input window, operand 11, single buffered']
    #allocation11 [shape = 's32[1]{0}', space=sflag, size = 0x4, scoped, tag = 'scoped memory for encoder_vit_forward.1']
    %19 = vsyncpa [#allocation3], 0
    %20 = vsyncpa [#allocation5], 0
    %21 = vsyncpa [#allocation8], 0
    %22 = vsyncpa [#allocation11], 0
    // Predicated region
    $region2: #{encoder_vit_forward.1} parent=1 // pred_check
      _
    $region3: #{encoder_vit_forward.1} parent=1 // pred_check_branch
      %24 = sbr.rel (0) target = $region5
    $region4: #{encoder_vit_forward.1} parent=1 // pred_region
      _
    $region5: #{encoder_vit_forward.1} parent=1 // pred_fallthru
      _
    // Predicated region
    $region6: #{encoder_vit_forward.1} parent=1 // pred_check
      _
    $region7: #{encoder_vit_forward.1} parent=1 // pred_check_branch
      %26 = sbr.rel (0) target = $region9
    $region8: #{encoder_vit_forward.1} parent=1 // pred_region
      _
    $region9: #{encoder_vit_forward.1} parent=1 // pred_fallthru
      _
    // Predicated region
    $region10: #{encoder_vit_forward.1} parent=1 // pred_check
      _
    $region11: #{encoder_vit_forward.1} parent=1 // pred_check_branch
      %28 = sbr.rel (0) target = $region13
    $region12: #{encoder_vit_forward.1} parent=1 // pred_region
      _
    $region13: #{encoder_vit_forward.1} parent=1 // pred_fallthru
      _
    // Predicated region
    $region14: #{encoder_vit_forward.1} parent=1 // pred_check
      _
    $region15: #{encoder_vit_forward.1} parent=1 // pred_check_branch
      %30 = sbr.rel (0) target = $region17
    $region16: #{encoder_vit_forward.1} parent=1 // pred_region
      _
    $region17: #{encoder_vit_forward.1} parent=1 // pred_fallthru
      _
    // Predicated region
    $region18: #{encoder_vit_forward.1} parent=1 // pred_check
      _
    $region19: #{encoder_vit_forward.1} parent=1 // pred_check_branch
      %32 = sbr.rel (0) target = $region21
    $region20: #{encoder_vit_forward.1} parent=1 // pred_region
      _
    $region21: #{encoder_vit_forward.1} parent=1 // pred_fallthru
      _
    // Predicated region
    $region22: #{encoder_vit_forward.1} parent=1 // pred_check
      _
    $region23: #{encoder_vit_forward.1} parent=1 // pred_check_branch
      %34 = sbr.rel (0) target = $region25
    $region24: #{encoder_vit_forward.1} parent=1 // pred_region
      %36 = vsyncadd [#allocation3], 0
      %s37 = sshll.u32 %s5, 4
      %s38 = int_to_ptr.hbm [resolvable:$true] %s37
      %s39 = sshll.u32 [#allocation2], 4
      %s40 = int_to_ptr.vmem [resolvable:$true] %s39
      %45 = dma.hbm_to_vmem [thread:$0]  %s38, 4096, %s40, [#allocation3], 64, 64, 4
    $region25: #{encoder_vit_forward.1} parent=1 // pred_fallthru
      _
    // Predicated region
    $region26: #{encoder_vit_forward.1} parent=1 // pred_check
      _
    $region27: #{encoder_vit_forward.1} parent=1 // pred_check_branch
      %47 = sbr.rel (0) target = $region29
    $region28: #{encoder_vit_forward.1} parent=1 // pred_region
      %49 = vsyncadd [#allocation5], 0
      %s50 = sshll.u32 %s6, 4
      %s51 = int_to_ptr.hbm [resolvable:$true] %s50
      %s52 = sshll.u32 [#allocation4], 4
      %s53 = int_to_ptr.vmem [resolvable:$true] %s52
      %58 = dma.hbm_to_vmem [thread:$0]  %s51, 4096, %s53, [#allocation5], 128, 128, 8
    $region29: #{encoder_vit_forward.1} parent=1 // pred_fallthru
      _
    // Predicated region
    $region30: #{encoder_vit_forward.1} parent=1 // pred_check
      _
    $region31: #{encoder_vit_forward.1} parent=1 // pred_check_branch
      %60 = sbr.rel (0) target = $region33
    $region32: #{encoder_vit_forward.1} parent=1 // pred_region
      %62 = vsyncadd [#allocation5], 0
      %s63 = sshll.u32 %s7, 4
      %s64 = int_to_ptr.hbm [resolvable:$true] %s63
      %s65 = sshll.u32 [#allocation6], 4
      %s66 = int_to_ptr.vmem [resolvable:$true] %s65
      %71 = dma.hbm_to_vmem [thread:$0]  %s64, 4096, %s66, [#allocation5], 64, 64, 4
    $region33: #{encoder_vit_forward.1} parent=1 // pred_fallthru
      _
    // Predicated region
    $region34: #{encoder_vit_forward.1} parent=1 // pred_check
      _
    $region35: #{encoder_vit_forward.1} parent=1 // pred_check_branch
      %73 = sbr.rel (0) target = $region37
    $region36: #{encoder_vit_forward.1} parent=1 // pred_region
      %75 = vsyncadd [#allocation8], 0
      %s76 = sshll.u32 %s8, 4
      %s77 = int_to_ptr.hbm [resolvable:$true] %s76
      %s78 = sshll.u32 [#allocation7], 4
      %s79 = int_to_ptr.vmem [resolvable:$true] %s78
      %84 = dma.hbm_to_vmem [thread:$0]  %s77, 256, %s79, [#allocation8], 128, 128, 8
    $region37: #{encoder_vit_forward.1} parent=1 // pred_fallthru
      _
    // Predicated region
    $region38: #{encoder_vit_forward.1} parent=1 // pred_check
      _
    $region39: #{encoder_vit_forward.1} parent=1 // pred_check_branch
      %86 = sbr.rel (0) target = $region41
    $region40: #{encoder_vit_forward.1} parent=1 // pred_region
      _
    $region41: #{encoder_vit_forward.1} parent=1 // pred_fallthru
      _
    // Predicated region
    $region42: #{encoder_vit_forward.1} parent=1 // pred_check
      _
    $region43: #{encoder_vit_forward.1} parent=1 // pred_check_branch
      %88 = sbr.rel (0) target = $region45
    $region44: #{encoder_vit_forward.1} parent=1 // pred_region
      %90 = vsyncadd [#allocation8], 0
      %s91 = sshll.u32 %s10, 4
      %s92 = int_to_ptr.hbm [resolvable:$true] %s91
      %s93 = sshll.u32 [#allocation9], 4
      %s94 = int_to_ptr.vmem [resolvable:$true] %s93
      %99 = dma.hbm_to_vmem [thread:$0]  %s92, 64, %s94, [#allocation8], 32, 32, 2
    $region45: #{encoder_vit_forward.1} parent=1 // pred_fallthru
      _
    // Predicated region
    $region46: #{encoder_vit_forward.1} parent=1 // pred_check
      _
    $region47: #{encoder_vit_forward.1} parent=1 // pred_check_branch
      %101 = sbr.rel (0) target = $region49
    $region48: #{encoder_vit_forward.1} parent=1 // pred_region
      %103 = vsyncadd [#allocation11], 0
      %s105 = sshll.u32 %s11, 4
      %s106 = int_to_ptr.hbm [resolvable:$true] %s105
      %s107 = sshll.u32 [#allocation10], 4
      %s108 = int_to_ptr.vmem [resolvable:$true] %s107
      %110 = dma.hbm_to_vmem [thread:$0]  %s106, 32, %s108, [#allocation11]
    $region49: #{encoder_vit_forward.1} parent=1 // pred_fallthru
      _
    // Predicated region
    $region50: #{encoder_vit_forward.1} parent=1 // pred_check
      _
    $region51: #{encoder_vit_forward.1} parent=1 // pred_check_branch
      %112 = sbr.rel (0) target = $region53
    $region52: #{encoder_vit_forward.1} parent=1 // pred_region
      _
    $region53: #{encoder_vit_forward.1} parent=1 // pred_fallthru
      _
    // Predicated region
    $region54: #{encoder_vit_forward.1} parent=1 // pred_check
      _
    $region55: #{encoder_vit_forward.1} parent=1 // pred_check_branch
      %114 = sbr.rel (0) target = $region57
    $region56: #{encoder_vit_forward.1} parent=1 // pred_region
      _
    $region57: #{encoder_vit_forward.1} parent=1 // pred_fallthru
      _
    // Predicated region
    $region58: #{encoder_vit_forward.1} parent=1 // pred_check
      _
    $region59: #{encoder_vit_forward.1} parent=1 // pred_check_branch
      %116 = sbr.rel (0) target = $region61
    $region60: #{encoder_vit_forward.1} parent=1 // pred_region
      %118 = dma.done [#allocation3], 4096
    $region61: #{encoder_vit_forward.1} parent=1 // pred_fallthru
      _
    // Predicated region
    $region62: #{encoder_vit_forward.1} parent=1 // pred_check
      _
    $region63: #{encoder_vit_forward.1} parent=1 // pred_check_branch
      %120 = sbr.rel (0) target = $region65
    $region64: #{encoder_vit_forward.1} parent=1 // pred_region
      %122 = dma.done [#allocation5], 4096
    $region65: #{encoder_vit_forward.1} parent=1 // pred_fallthru
      _
    // Predicated region
    $region66: #{encoder_vit_forward.1} parent=1 // pred_check
      _
    $region67: #{encoder_vit_forward.1} parent=1 // pred_check_branch
      %124 = sbr.rel (0) target = $region69
    $region68: #{encoder_vit_forward.1} parent=1 // pred_region
      %126 = dma.done [#allocation5], 4096
    $region69: #{encoder_vit_forward.1} parent=1 // pred_fallthru
      _
    // Predicated region
    $region70: #{encoder_vit_forward.1} parent=1 // pred_check
      _
    $region71: #{encoder_vit_forward.1} parent=1 // pred_check_branch
      %128 = sbr.rel (0) target = $region73
    $region72: #{encoder_vit_forward.1} parent=1 // pred_region
      %130 = dma.done [#allocation8], 256
    $region73: #{encoder_vit_forward.1} parent=1 // pred_fallthru
      _
    // Predicated region
    $region74: #{encoder_vit_forward.1} parent=1 // pred_check
      _
    $region75: #{encoder_vit_forward.1} parent=1 // pred_check_branch
      %132 = sbr.rel (0) target = $region77
    $region76: #{encoder_vit_forward.1} parent=1 // pred_region
      %134 = dma.done [#allocation8], 64
    $region77: #{encoder_vit_forward.1} parent=1 // pred_fallthru
      _
    // Predicated region
    $region78: #{encoder_vit_forward.1} parent=1 // pred_check
      _
    $region79: #{encoder_vit_forward.1} parent=1 // pred_check_branch
      %136 = sbr.rel (0) target = $region81
    $region80: #{encoder_vit_forward.1} parent=1 // pred_region
      %138 = dma.done [#allocation11], 32
    $region81: #{encoder_vit_forward.1} parent=1 // pred_fallthru
      _
    %v140 = vld [vmem:[%s0] sm:$0xff]
    %v141 = vld [vmem:[%s0 + $0x8] sm:$0xff]
    %v142 = vld [vmem:[%s0 + $0x10] sm:$0xff]
    %v143 = vld [vmem:[%s0 + $0x18] sm:$0xff]
    %v144 = vld [vmem:[%s0 + $0x20] sm:$0xff]
    %v145 = vld [vmem:[%s0 + $0x28] sm:$0xff]
    %v146 = vld [vmem:[%s3] sm:$0xf]
    %v147 = vld [vmem:[%s3 + $0x4] sm:$0xf]
    %v148 = vld [vmem:[%s3 + $0x8] sm:$0xf]
    %v149 = vld [vmem:[%s3 + $0xc] sm:$0xf]
    %v150 = vld [vmem:[%s3 + $0x10] sm:$0xf]
    %v151 = vld [vmem:[%s3 + $0x14] sm:$0xf]
    %v152 = vld [vmem:[%s3 + $0x18] sm:$0xf]
    %v153 = vld [vmem:[%s3 + $0x1c] sm:$0xf]
    %v154 = vld [vmem:[%s3 + $0x20] sm:$0xf]
    %v155 = vld [vmem:[%s3 + $0x24] sm:$0xf]
    %v156 = vld [vmem:[%s3 + $0x28] sm:$0xf]
    %v157 = vld [vmem:[%s3 + $0x2c] sm:$0xf]
    %v158 = vld [vmem:[%s3 + $0x30] sm:$0xf]
    %v159 = vld [vmem:[%s3 + $0x34] sm:$0xf]
    %v160 = vld [vmem:[%s3 + $0x38] sm:$0xf]
    %v161 = vld [vmem:[%s3 + $0x3c] sm:$0xf]
    %v162 = vld [vmem:[%s3 + $0x40] sm:$0xf]
    %v163 = vld [vmem:[%s3 + $0x44] sm:$0xf]
    %v164 = vld [vmem:[%s3 + $0x48] sm:$0xf]
    %v165 = vld [vmem:[%s3 + $0x4c] sm:$0xf]
    %v166 = vld [vmem:[%s3 + $0x50] sm:$0xf]
    %v167 = vld [vmem:[%s3 + $0x54] sm:$0xf]
    %v168 = vld [vmem:[%s3 + $0x58] sm:$0xf]
    %v169 = vld [vmem:[%s3 + $0x5c] sm:$0xf]
    %v170 = vld [vmem:[%s3 + $0x60] sm:$0xf]
    %v171 = vld [vmem:[%s3 + $0x64] sm:$0xf]
    %v172 = vld [vmem:[%s3 + $0x68] sm:$0xf]
    %v173 = vld [vmem:[%s3 + $0x6c] sm:$0xf]
    %v174 = vld [vmem:[%s3 + $0x70] sm:$0xf]
    %v175 = vld [vmem:[%s3 + $0x74] sm:$0xf]
    %v176 = vld [vmem:[%s3 + $0x78] sm:$0xf]
    %v177 = vld [vmem:[%s3 + $0x7c] sm:$0xf]
    %v178 = vld [vmem:[%s3 + $0x80] sm:$0xf]
    %v179 = vld [vmem:[%s3 + $0x84] sm:$0xf]
    %v180 = vld [vmem:[%s3 + $0x88] sm:$0xf]
    %v181 = vld [vmem:[%s3 + $0x8c] sm:$0xf]
    %v182 = vld [vmem:[%s3 + $0x90] sm:$0xf]
    %v183 = vld [vmem:[%s3 + $0x94] sm:$0xf]
    %v184 = vld [vmem:[%s3 + $0x98] sm:$0xf]
    %v185 = vld [vmem:[%s3 + $0x9c] sm:$0xf]
    %v186 = vld [vmem:[%s3 + $0xa0] sm:$0xf]
    %v187 = vld [vmem:[%s3 + $0xa4] sm:$0xf]
    %v188 = vld [vmem:[%s3 + $0xa8] sm:$0xf]
    %v189 = vld [vmem:[%s3 + $0xac] sm:$0xf]
    %v190 = vld [vmem:[%s3 + $0xb0] sm:$0xf]
    %v191 = vld [vmem:[%s3 + $0xb4] sm:$0xf]
    %v192 = vld [vmem:[%s3 + $0xb8] sm:$0xf]
    %v193 = vld [vmem:[%s3 + $0xbc] sm:$0xf]
    %v194 = vld [vmem:[%s3 + $0xc0] sm:$0xf]
    %v195 = vld [vmem:[%s3 + $0xc4] sm:$0xf]
    %v196 = vld [vmem:[%s3 + $0xc8] sm:$0xf]
    %v197 = vld [vmem:[%s3 + $0xcc] sm:$0xf]
    %v198 = vld [vmem:[%s3 + $0xd0] sm:$0xf]
    %v199 = vld [vmem:[%s3 + $0xd4] sm:$0xf]
    %v200 = vld [vmem:[%s3 + $0xd8] sm:$0xf]
    %v201 = vld [vmem:[%s3 + $0xdc] sm:$0xf]
    %v202 = vld [vmem:[%s3 + $0xe0] sm:$0xf]
    %v203 = vld [vmem:[%s3 + $0xe4] sm:$0xf]
    %v204 = vld [vmem:[%s3 + $0xe8] sm:$0xf]
    %v205 = vld [vmem:[%s3 + $0xec] sm:$0xf]
    %v206 = vld [vmem:[%s3 + $0xf0] sm:$0xf]
    %v207 = vld [vmem:[%s3 + $0xf4] sm:$0xf]
    %v208 = vld [vmem:[%s3 + $0xf8] sm:$0xf]
    %v209 = vld [vmem:[%s3 + $0xfc] sm:$0xf]
    %v210 = vld [vmem:[%s3 + $0x100] sm:$0xf]
    %v211 = vld [vmem:[%s3 + $0x104] sm:$0xf]
    %v212 = vld [vmem:[%s3 + $0x108] sm:$0xf]
    %v213 = vld [vmem:[%s3 + $0x10c] sm:$0xf]
    %v214 = vld [vmem:[%s3 + $0x110] sm:$0xf]
    %v215 = vld [vmem:[%s3 + $0x114] sm:$0xf]
    %v216 = vld [vmem:[%s3 + $0x118] sm:$0xf]
    %v217 = vld [vmem:[%s3 + $0x11c] sm:$0xf]
    %v218 = vld [vmem:[%s3 + $0x120] sm:$0xf]
    %v219 = vld [vmem:[%s3 + $0x124] sm:$0xf]
    %v220 = vld [vmem:[%s3 + $0x128] sm:$0xf]
    %v221 = vld [vmem:[%s3 + $0x12c] sm:$0xf]
    %v222 = vld [vmem:[%s3 + $0x130] sm:$0xf]
    %v223 = vld [vmem:[%s3 + $0x134] sm:$0xf]
    %v224 = vld [vmem:[%s3 + $0x138] sm:$0xf]
    %v225 = vld [vmem:[%s3 + $0x13c] sm:$0xf]
    %v226 = vld [vmem:[%s3 + $0x140] sm:$0xf]
    %v227 = vld [vmem:[%s3 + $0x144] sm:$0xf]
    %v228 = vld [vmem:[%s3 + $0x148] sm:$0xf]
    %v229 = vld [vmem:[%s3 + $0x14c] sm:$0xf]
    %v230 = vld [vmem:[%s3 + $0x150] sm:$0xf]
    %v231 = vld [vmem:[%s3 + $0x154] sm:$0xf]
    %v232 = vld [vmem:[%s3 + $0x158] sm:$0xf]
    %v233 = vld [vmem:[%s3 + $0x15c] sm:$0xf]
    %v234 = vld [vmem:[%s3 + $0x160] sm:$0xf]
    %v235 = vld [vmem:[%s3 + $0x164] sm:$0xf]
    %v236 = vld [vmem:[%s3 + $0x168] sm:$0xf]
    %v237 = vld [vmem:[%s3 + $0x16c] sm:$0xf]
    %v238 = vld [vmem:[%s3 + $0x170] sm:$0xf]
    %v239 = vld [vmem:[%s3 + $0x174] sm:$0xf]
    %v240 = vld [vmem:[%s3 + $0x178] sm:$0xf]
    %v241 = vld [vmem:[%s3 + $0x17c] sm:$0xf]
    %v242 = vld [vmem:[%s1] sm:$0xff]
    %v243 = vld [vmem:[%s1 + $0x8] sm:$0xff]
    %v250 = vunpack.c.l.b16 %v140
    %v251 = vunpack.c.h.b16 %v140
    %v252 = vunpack.c.l.b16 %v141
    %v253 = vunpack.c.h.b16 %v141
    %v254 = vunpack.c.l.b16 %v142
    %v255 = vunpack.c.h.b16 %v142
    %v256 = vunpack.c.l.b16 %v143
    %v257 = vunpack.c.h.b16 %v143
    %v258 = vunpack.c.l.b16 %v144
    %v259 = vunpack.c.h.b16 %v144
    %v260 = vunpack.c.l.b16 %v145
    %v261 = vunpack.c.h.b16 %v145
    %v262 = vpack.c.b16 %v256, %v250
    %v263 = vpack.c.b16 %v257, %v251
    %v264 = vpack.c.b16 %v258, %v252
    %v265 = vpack.c.b16 %v259, %v253
    %v266 = vpack.c.b16 %v260, %v254
    %v267 = vpack.c.b16 %v261, %v255
    %v370 = vunpack.c.l.b16 %v146
    %v371 = vunpack.c.l.b16 %v147
    %v372 = vunpack.c.l.b16 %v148
    %v373 = vunpack.c.l.b16 %v149
    %v374 = vunpack.c.l.b16 %v150
    %v375 = vunpack.c.l.b16 %v151
    %v376 = vunpack.c.l.b16 %v152
    %v377 = vunpack.c.l.b16 %v153
    %v378 = vunpack.c.l.b16 %v154
    %v379 = vunpack.c.l.b16 %v155
    %v380 = vunpack.c.l.b16 %v156
    %v381 = vunpack.c.l.b16 %v157
    %v382 = vunpack.c.l.b16 %v158
    %v383 = vunpack.c.l.b16 %v159
    %v384 = vunpack.c.l.b16 %v160
    %v385 = vunpack.c.l.b16 %v161
    %v386 = vunpack.c.l.b16 %v162
    %v387 = vunpack.c.l.b16 %v163
    %v388 = vunpack.c.l.b16 %v164
    %v389 = vunpack.c.l.b16 %v165
    %v390 = vunpack.c.l.b16 %v166
    %v391 = vunpack.c.l.b16 %v167
    %v392 = vunpack.c.l.b16 %v168
    %v393 = vunpack.c.l.b16 %v169
    %v394 = vunpack.c.l.b16 %v170
    %v395 = vunpack.c.l.b16 %v171
    %v396 = vunpack.c.l.b16 %v172
    %v397 = vunpack.c.l.b16 %v173
    %v398 = vunpack.c.l.b16 %v174
    %v399 = vunpack.c.l.b16 %v175
    %v400 = vunpack.c.l.b16 %v176
    %v401 = vunpack.c.l.b16 %v177
    %v402 = vunpack.c.l.b16 %v178
    %v403 = vunpack.c.l.b16 %v179
    %v404 = vunpack.c.l.b16 %v180
    %v405 = vunpack.c.l.b16 %v181
    %v406 = vunpack.c.l.b16 %v182
    %v407 = vunpack.c.l.b16 %v183
    %v408 = vunpack.c.l.b16 %v184
    %v409 = vunpack.c.l.b16 %v185
    %v410 = vunpack.c.l.b16 %v186
    %v411 = vunpack.c.l.b16 %v187
    %v412 = vunpack.c.l.b16 %v188
    %v413 = vunpack.c.l.b16 %v189
    %v414 = vunpack.c.l.b16 %v190
    %v415 = vunpack.c.l.b16 %v191
    %v416 = vunpack.c.l.b16 %v192
    %v417 = vunpack.c.l.b16 %v193
    %v418 = vunpack.c.l.b16 %v194
    %v419 = vunpack.c.l.b16 %v195
    %v420 = vunpack.c.l.b16 %v196
    %v421 = vunpack.c.l.b16 %v197
    %v422 = vunpack.c.l.b16 %v198
    %v423 = vunpack.c.l.b16 %v199
    %v424 = vunpack.c.l.b16 %v200
    %v425 = vunpack.c.l.b16 %v201
    %v426 = vunpack.c.l.b16 %v202
    %v427 = vunpack.c.l.b16 %v203
    %v428 = vunpack.c.l.b16 %v204
    %v429 = vunpack.c.l.b16 %v205
    %v430 = vunpack.c.l.b16 %v206
    %v431 = vunpack.c.l.b16 %v207
    %v432 = vunpack.c.l.b16 %v208
    %v433 = vunpack.c.l.b16 %v209
    %v434 = vunpack.c.l.b16 %v210
    %v435 = vunpack.c.l.b16 %v211
    %v436 = vunpack.c.l.b16 %v212
    %v437 = vunpack.c.l.b16 %v213
    %v438 = vunpack.c.l.b16 %v214
    %v439 = vunpack.c.l.b16 %v215
    %v440 = vunpack.c.l.b16 %v216
    %v441 = vunpack.c.l.b16 %v217
    %v442 = vunpack.c.l.b16 %v218
    %v443 = vunpack.c.l.b16 %v219
    %v444 = vunpack.c.l.b16 %v220
    %v445 = vunpack.c.l.b16 %v221
    %v446 = vunpack.c.l.b16 %v222
    %v447 = vunpack.c.l.b16 %v223
    %v448 = vunpack.c.l.b16 %v224
    %v449 = vunpack.c.l.b16 %v225
    %v450 = vunpack.c.l.b16 %v226
    %v451 = vunpack.c.l.b16 %v227
    %v452 = vunpack.c.l.b16 %v228
    %v453 = vunpack.c.l.b16 %v229
    %v454 = vunpack.c.l.b16 %v230
    %v455 = vunpack.c.l.b16 %v231
    %v456 = vunpack.c.l.b16 %v232
    %v457 = vunpack.c.l.b16 %v233
    %v458 = vunpack.c.l.b16 %v234
    %v459 = vunpack.c.l.b16 %v235
    %v460 = vunpack.c.l.b16 %v236
    %v461 = vunpack.c.l.b16 %v237
    %v462 = vunpack.c.l.b16 %v238
    %v463 = vunpack.c.l.b16 %v239
    %v464 = vunpack.c.l.b16 %v240
    %v465 = vunpack.c.l.b16 %v241
    %v466 = vpack.c.b16 %v371, %v370
    %v467 = vpack.c.b16 %v373, %v372
    %v468 = vpack.c.b16 %v375, %v374
    %v469 = vpack.c.b16 %v377, %v376
    %v470 = vpack.c.b16 %v379, %v378
    %v471 = vpack.c.b16 %v381, %v380
    %v472 = vpack.c.b16 %v383, %v382
    %v473 = vpack.c.b16 %v385, %v384
    %v474 = vpack.c.b16 %v387, %v386
    %v475 = vpack.c.b16 %v389, %v388
    %v476 = vpack.c.b16 %v391, %v390
    %v477 = vpack.c.b16 %v393, %v392
    %v478 = vpack.c.b16 %v395, %v394
    %v479 = vpack.c.b16 %v397, %v396
    %v480 = vpack.c.b16 %v399, %v398
    %v481 = vpack.c.b16 %v401, %v400
    %v482 = vpack.c.b16 %v403, %v402
    %v483 = vpack.c.b16 %v405, %v404
    %v484 = vpack.c.b16 %v407, %v406
    %v485 = vpack.c.b16 %v409, %v408
    %v486 = vpack.c.b16 %v411, %v410
    %v487 = vpack.c.b16 %v413, %v412
    %v488 = vpack.c.b16 %v415, %v414
    %v489 = vpack.c.b16 %v417, %v416
    %v490 = vpack.c.b16 %v419, %v418
    %v491 = vpack.c.b16 %v421, %v420
    %v492 = vpack.c.b16 %v423, %v422
    %v493 = vpack.c.b16 %v425, %v424
    %v494 = vpack.c.b16 %v427, %v426
    %v495 = vpack.c.b16 %v429, %v428
    %v496 = vpack.c.b16 %v431, %v430
    %v497 = vpack.c.b16 %v433, %v432
    %v498 = vpack.c.b16 %v435, %v434
    %v499 = vpack.c.b16 %v437, %v436
    %v500 = vpack.c.b16 %v439, %v438
    %v501 = vpack.c.b16 %v441, %v440
    %v502 = vpack.c.b16 %v443, %v442
    %v503 = vpack.c.b16 %v445, %v444
    %v504 = vpack.c.b16 %v447, %v446
    %v505 = vpack.c.b16 %v449, %v448
    %v506 = vpack.c.b16 %v451, %v450
    %v507 = vpack.c.b16 %v453, %v452
    %v508 = vpack.c.b16 %v455, %v454
    %v509 = vpack.c.b16 %v457, %v456
    %v510 = vpack.c.b16 %v459, %v458
    %v511 = vpack.c.b16 %v461, %v460
    %v512 = vpack.c.b16 %v463, %v462
    %v513 = vpack.c.b16 %v465, %v464
    %562 = vmatpush.bf16.msra.mxu0 %v473
    %563 = vmatpush.bf16.msra.mxu0 %v472
    %564 = vmatpush.bf16.msra.mxu0 %v471
    %565 = vmatpush.bf16.msra.mxu0 %v470
    %566 = vmatpush.bf16.msra.mxu0 %v469
    %567 = vmatpush.bf16.msra.mxu0 %v468
    %568 = vmatpush.bf16.msra.mxu0 %v467
    %569 = vmatpush.bf16.msra.mxu0 %v466
    %570 = vmatmul.bf16.gmra.mxu0 %v262
    %v571 = vpop.f32.mrf.mxu0
    %v572 = vadd.f32 %v242, %v571
    %v573 = vpop.f32.mrf.mxu0
    %v574 = vadd.f32 %v243, %v573
    %575 = vdwg.mxu0
    %576 = vmatpush.bf16.msra.mxu0 %v481
    %577 = vmatpush.bf16.msra.mxu0 %v480
    %578 = vmatpush.bf16.msra.mxu0 %v479
    %579 = vmatpush.bf16.msra.mxu0 %v478
    %580 = vmatpush.bf16.msra.mxu0 %v477
    %581 = vmatpush.bf16.msra.mxu0 %v476
    %582 = vmatpush.bf16.msra.mxu0 %v475
    %583 = vmatpush.bf16.msra.mxu0 %v474
    %584 = vmatmul.bf16.gmra.mxu0 %v263
    %v585 = vpop.f32.mrf.mxu0
    %v586 = vadd.f32 %v572, %v585
    %v587 = vpop.f32.mrf.mxu0
    %v588 = vadd.f32 %v574, %v587
    %589 = vdwg.mxu0
    %590 = vmatpush.bf16.msra.mxu0 %v489
    %591 = vmatpush.bf16.msra.mxu0 %v488
    %592 = vmatpush.bf16.msra.mxu0 %v487
    %593 = vmatpush.bf16.msra.mxu0 %v486
    %594 = vmatpush.bf16.msra.mxu0 %v485
    %595 = vmatpush.bf16.msra.mxu0 %v484
    %596 = vmatpush.bf16.msra.mxu0 %v483
    %597 = vmatpush.bf16.msra.mxu0 %v482
    %598 = vmatmul.bf16.gmra.mxu0 %v264
    %v599 = vpop.f32.mrf.mxu0
    %v600 = vadd.f32 %v586, %v599
    %v601 = vpop.f32.mrf.mxu0
    %v602 = vadd.f32 %v588, %v601
    %603 = vdwg.mxu0
    %604 = vmatpush.bf16.msra.mxu0 %v497
    %605 = vmatpush.bf16.msra.mxu0 %v496
    %606 = vmatpush.bf16.msra.mxu0 %v495
    %607 = vmatpush.bf16.msra.mxu0 %v494
    %608 = vmatpush.bf16.msra.mxu0 %v493
    %609 = vmatpush.bf16.msra.mxu0 %v492
    %610 = vmatpush.bf16.msra.mxu0 %v491
    %611 = vmatpush.bf16.msra.mxu0 %v490
    %612 = vmatmul.bf16.gmra.mxu0 %v265
    %v613 = vpop.f32.mrf.mxu0
    %v614 = vadd.f32 %v600, %v613
    %v615 = vpop.f32.mrf.mxu0
    %v616 = vadd.f32 %v602, %v615
    %617 = vdwg.mxu0
    %618 = vmatpush.bf16.msra.mxu0 %v505
    %619 = vmatpush.bf16.msra.mxu0 %v504
    %620 = vmatpush.bf16.msra.mxu0 %v503
    %621 = vmatpush.bf16.msra.mxu0 %v502
    %622 = vmatpush.bf16.msra.mxu0 %v501
    %623 = vmatpush.bf16.msra.mxu0 %v500
    %624 = vmatpush.bf16.msra.mxu0 %v499
    %625 = vmatpush.bf16.msra.mxu0 %v498
    %626 = vmatmul.bf16.gmra.mxu0 %v266
    %v627 = vpop.f32.mrf.mxu0
    %v628 = vadd.f32 %v614, %v627
    %v629 = vpop.f32.mrf.mxu0
    %v630 = vadd.f32 %v616, %v629
    %631 = vdwg.mxu0
    %632 = vmatpush.bf16.msra.mxu0 %v513
    %633 = vmatpush.bf16.msra.mxu0 %v512
    %634 = vmatpush.bf16.msra.mxu0 %v511
    %635 = vmatpush.bf16.msra.mxu0 %v510
    %636 = vmatpush.bf16.msra.mxu0 %v509
    %637 = vmatpush.bf16.msra.mxu0 %v508
    %638 = vmatpush.bf16.msra.mxu0 %v507
    %639 = vmatpush.bf16.msra.mxu0 %v506
    %640 = vmatmul.bf16.gmra.mxu0 %v267
    %v641 = vpop.f32.mrf.mxu0
    %v642 = vadd.f32 %v628, %v641
    %v643 = vpop.f32.mrf.mxu0
    %v644 = vadd.f32 %v630, %v643
    %645 = vdwg.mxu0
    %v646 = vld [vmem:[%s2] sm:$0xff]
    %v647 = vld [vmem:[%s2 + $0x8] sm:$0xff]
    %v648 = vld [vmem:[#allocation7] sm:$0xff]
    %v649 = vld [vmem:[%s9] sm:$0x3f]
    %v650 = vld [vmem:[#allocation9] sm:$0x3]
    %v651 = vld [vmem:[%s4] sm:$0xff]
    %v652 = vld [vmem:[%s4 + $0x8] sm:$0xff]
    %v653 = vld [vmem:[%s4 + $0x10] sm:$0xff]
    %v654 = vld [vmem:[%s4 + $0x18] sm:$0xff]
    %v655 = vld [vmem:[%s4 + $0x20] sm:$0xff]
    %v656 = vld [vmem:[%s4 + $0x28] sm:$0xff]
    %v657 = vld [vmem:[%s4 + $0x30] sm:$0xff]
    %v658 = vld [vmem:[%s4 + $0x38] sm:$0xff]
    %v659 = vld [vmem:[%s4 + $0x40] sm:$0xff]
    %v660 = vld [vmem:[%s4 + $0x48] sm:$0xff]
    %v661 = vld [vmem:[%s4 + $0x50] sm:$0xff]
    %v662 = vld [vmem:[%s4 + $0x58] sm:$0xff]
    %v663 = vld [vmem:[%s4 + $0x60] sm:$0xff]
    %v664 = vld [vmem:[%s4 + $0x68] sm:$0xff]
    %v665 = vld [vmem:[%s4 + $0x70] sm:$0xff]
    %v666 = vld [vmem:[%s4 + $0x78] sm:$0xff]
    %v667 = vld [vmem:[%s4 + $0x80] sm:$0xff]
    %v668 = vld [vmem:[%s4 + $0x88] sm:$0xff]
    %v669 = vld [vmem:[%s4 + $0x90] sm:$0xff]
    %v670 = vld [vmem:[%s4 + $0x98] sm:$0xff]
    %v671 = vld [vmem:[%s4 + $0xa0] sm:$0xff]
    %v672 = vld [vmem:[%s4 + $0xa8] sm:$0xff]
    %v673 = vld [vmem:[%s4 + $0xb0] sm:$0xff]
    %v674 = vld [vmem:[%s4 + $0xb8] sm:$0xff]
    %v675 = vld [vmem:[%s4 + $0xc0] sm:$0xff]
    %v676 = vld [vmem:[%s4 + $0xc8] sm:$0xff]
    %v677 = vld [vmem:[%s4 + $0xd0] sm:$0xff]
    %v678 = vld [vmem:[%s4 + $0xd8] sm:$0xff]
    %v679 = vld [vmem:[%s4 + $0xe0] sm:$0xff]
    %v680 = vld [vmem:[%s4 + $0xe8] sm:$0xff]
    %v681 = vld [vmem:[%s4 + $0xf0] sm:$0xff]
    %v682 = vld [vmem:[%s4 + $0xf8] sm:$0xff]
    %v683 = vld [vmem:[%s4 + $0x100] sm:$0xff]
    %v684 = vld [vmem:[%s4 + $0x108] sm:$0xff]
    %v685 = vld [vmem:[%s4 + $0x110] sm:$0xff]
    %v686 = vld [vmem:[%s4 + $0x118] sm:$0xff]
    %v687 = vld [vmem:[%s4 + $0x120] sm:$0xff]
    %v688 = vld [vmem:[%s4 + $0x128] sm:$0xff]
    %v689 = vld [vmem:[%s4 + $0x130] sm:$0xff]
    %v690 = vld [vmem:[%s4 + $0x138] sm:$0xff]
    %v691 = vld [vmem:[%s4 + $0x140] sm:$0xff]
    %v692 = vld [vmem:[%s4 + $0x148] sm:$0xff]
    %v693 = vld [vmem:[%s4 + $0x150] sm:$0xff]
    %v694 = vld [vmem:[%s4 + $0x158] sm:$0xff]
    %v695 = vld [vmem:[%s4 + $0x160] sm:$0xff]
    %v696 = vld [vmem:[%s4 + $0x168] sm:$0xff]
    %v697 = vld [vmem:[%s4 + $0x170] sm:$0xff]
    %v698 = vld [vmem:[%s4 + $0x178] sm:$0xff]
    %v699 = vld [vmem:[#allocation2] sm:$0xf]
    %v700 = vld [vmem:[#allocation2 + $0x4] sm:$0xf]
    %v701 = vld [vmem:[#allocation2 + $0x8] sm:$0xf]
    %v702 = vld [vmem:[#allocation2 + $0xc] sm:$0xf]
    %v703 = vld [vmem:[#allocation2 + $0x10] sm:$0xf]
    %v704 = vld [vmem:[#allocation2 + $0x14] sm:$0xf]
    %v705 = vld [vmem:[#allocation2 + $0x18] sm:$0xf]
    %v706 = vld [vmem:[#allocation2 + $0x1c] sm:$0xf]
    %v707 = vld [vmem:[#allocation2 + $0x20] sm:$0xf]
    %v708 = vld [vmem:[#allocation2 + $0x24] sm:$0xf]
    %v709 = vld [vmem:[#allocation2 + $0x28] sm:$0xf]
    %v710 = vld [vmem:[#allocation2 + $0x2c] sm:$0xf]
    %v711 = vld [vmem:[#allocation2 + $0x30] sm:$0xf]
    %v712 = vld [vmem:[#allocation2 + $0x34] sm:$0xf]
    %v713 = vld [vmem:[#allocation2 + $0x38] sm:$0xf]
    %v714 = vld [vmem:[#allocation2 + $0x3c] sm:$0xf]
    %v715 = vld [vmem:[#allocation2 + $0x40] sm:$0xf]
    %v716 = vld [vmem:[#allocation2 + $0x44] sm:$0xf]
    %v717 = vld [vmem:[#allocation2 + $0x48] sm:$0xf]
    %v718 = vld [vmem:[#allocation2 + $0x4c] sm:$0xf]
    %v719 = vld [vmem:[#allocation2 + $0x50] sm:$0xf]
    %v720 = vld [vmem:[#allocation2 + $0x54] sm:$0xf]
    %v721 = vld [vmem:[#allocation2 + $0x58] sm:$0xf]
    %v722 = vld [vmem:[#allocation2 + $0x5c] sm:$0xf]
    %v723 = vld [vmem:[#allocation2 + $0x60] sm:$0xf]
    %v724 = vld [vmem:[#allocation2 + $0x64] sm:$0xf]
    %v725 = vld [vmem:[#allocation2 + $0x68] sm:$0xf]
    %v726 = vld [vmem:[#allocation2 + $0x6c] sm:$0xf]
    %v727 = vld [vmem:[#allocation2 + $0x70] sm:$0xf]
    %v728 = vld [vmem:[#allocation2 + $0x74] sm:$0xf]
    %v729 = vld [vmem:[#allocation2 + $0x78] sm:$0xf]
    %v730 = vld [vmem:[#allocation2 + $0x7c] sm:$0xf]
    %v731 = vld [vmem:[#allocation4] sm:$0xff]
    %v732 = vld [vmem:[#allocation4 + $0x8] sm:$0xff]
    %v733 = vld [vmem:[#allocation4 + $0x10] sm:$0xff]
    %v734 = vld [vmem:[#allocation4 + $0x18] sm:$0xff]
    %v735 = vld [vmem:[#allocation4 + $0x20] sm:$0xff]
    %v736 = vld [vmem:[#allocation4 + $0x28] sm:$0xff]
    %v737 = vld [vmem:[#allocation4 + $0x30] sm:$0xff]
    %v738 = vld [vmem:[#allocation4 + $0x38] sm:$0xff]
    %v739 = vld [vmem:[#allocation4 + $0x40] sm:$0xff]
    %v740 = vld [vmem:[#allocation4 + $0x48] sm:$0xff]
    %v741 = vld [vmem:[#allocation4 + $0x50] sm:$0xff]
    %v742 = vld [vmem:[#allocation4 + $0x58] sm:$0xff]
    %v743 = vld [vmem:[#allocation4 + $0x60] sm:$0xff]
    %v744 = vld [vmem:[#allocation4 + $0x68] sm:$0xff]
    %v745 = vld [vmem:[#allocation4 + $0x70] sm:$0xff]
    %v746 = vld [vmem:[#allocation4 + $0x78] sm:$0xff]
    %v747 = vld [vmem:[#allocation6] sm:$0xf]
    %v748 = vld [vmem:[#allocation6 + $0x4] sm:$0xf]
    %v749 = vld [vmem:[#allocation6 + $0x8] sm:$0xf]
    %v750 = vld [vmem:[#allocation6 + $0xc] sm:$0xf]
    %v751 = vld [vmem:[#allocation6 + $0x10] sm:$0xf]
    %v752 = vld [vmem:[#allocation6 + $0x14] sm:$0xf]
    %v753 = vld [vmem:[#allocation6 + $0x18] sm:$0xf]
    %v754 = vld [vmem:[#allocation6 + $0x1c] sm:$0xf]
    %v755 = vld [vmem:[#allocation6 + $0x20] sm:$0xf]
    %v756 = vld [vmem:[#allocation6 + $0x24] sm:$0xf]
    %v757 = vld [vmem:[#allocation6 + $0x28] sm:$0xf]
    %v758 = vld [vmem:[#allocation6 + $0x2c] sm:$0xf]
    %v759 = vld [vmem:[#allocation6 + $0x30] sm:$0xf]
    %v760 = vld [vmem:[#allocation6 + $0x34] sm:$0xf]
    %v761 = vld [vmem:[#allocation6 + $0x38] sm:$0xf]
    %v762 = vld [vmem:[#allocation6 + $0x3c] sm:$0xf]
    %v763 = vld [vmem:[#allocation6 + $0x40] sm:$0xf]
    %v764 = vld [vmem:[#allocation6 + $0x44] sm:$0xf]
    %v765 = vld [vmem:[#allocation6 + $0x48] sm:$0xf]
    %v766 = vld [vmem:[#allocation6 + $0x4c] sm:$0xf]
    %v767 = vld [vmem:[#allocation6 + $0x50] sm:$0xf]
    %v768 = vld [vmem:[#allocation6 + $0x54] sm:$0xf]
    %v769 = vld [vmem:[#allocation6 + $0x58] sm:$0xf]
    %v770 = vld [vmem:[#allocation6 + $0x5c] sm:$0xf]
    %v771 = vld [vmem:[#allocation6 + $0x60] sm:$0xf]
    %v772 = vld [vmem:[#allocation6 + $0x64] sm:$0xf]
    %v773 = vld [vmem:[#allocation6 + $0x68] sm:$0xf]
    %v774 = vld [vmem:[#allocation6 + $0x6c] sm:$0xf]
    %v775 = vld [vmem:[#allocation6 + $0x70] sm:$0xf]
    %v776 = vld [vmem:[#allocation6 + $0x74] sm:$0xf]
    %v777 = vld [vmem:[#allocation6 + $0x78] sm:$0xf]
    %v778 = vld [vmem:[#allocation6 + $0x7c] sm:$0xf]
    %779 = vadd.xlane.f32.xlu0 %v642
    %v780 = vpop.xlane.xlu0 %779
    %781 = vadd.xlane.f32.xlu0 %v644
    %v782 = vpop.xlane.xlu0 %781
    %v783 = vrcp.pop 128.0
    %v784 = vmul.f32 128.0, %v783
    %v785 = vsub.f32 1.0, %v784
    %v786 = vmul.f32 %v783, %v785
    %v787 = vadd.f32 %v783, %v786
    %vm788 = vweird.f32 %v783
    %v789 = vsel %vm788, %v783, %v787
    %v790 = vmul.f32 %v780, %v789
    %v791 = vmul.f32 %v782, %v789
    %v792 = vsub.f32 %v642, %v790
    %v793 = vsub.f32 %v644, %v791
    %v794 = vmul.f32 %v792, %v792
    %v795 = vmul.f32 %v793, %v793
    %796 = vadd.xlane.f32.xlu0 %v794
    %v797 = vpop.xlane.xlu0 %796
    %798 = vadd.xlane.f32.xlu0 %v795
    %v799 = vpop.xlane.xlu0 %798
    %v800 = vmul.f32 %v797, %v789
    %v801 = vmul.f32 %v799, %v789
    %v802 = vadd.f32 %v800, 1e-12
    %v803 = vadd.f32 %v801, 1e-12
    %v804 = vrsqrt.pop %v802
    %v805 = vmul.f32 %v804, %v802
    %v806 = vmul.f32 %v805, %v804
    %v807 = vmul.f32 0.5, %v806
    %v808 = vsub.f32 1.5, %v807
    %v809 = vmul.f32 %v804, %v808
    %vm810 = vweird.f32 %v802
    %vm811 = vweird.f32 %v804
    %vm812 = vmor %vm810, %vm811
    %v813 = vsel %vm812, %v804, %v809
    %v814 = vrsqrt.pop %v803
    %v815 = vmul.f32 %v814, %v803
    %v816 = vmul.f32 %v815, %v814
    %v817 = vmul.f32 0.5, %v816
    %v818 = vsub.f32 1.5, %v817
    %v819 = vmul.f32 %v814, %v818
    %vm820 = vweird.f32 %v803
    %vm821 = vweird.f32 %v814
    %vm822 = vmor %vm820, %vm821
    %v823 = vsel %vm822, %v814, %v819
    %v824 = vmul.f32 %v792, %v813
    %v825 = vmul.f32 %v793, %v823
    %v826 = vperm.slane %v648, 0
    %v827 = vmul.f32 %v824, %v826
    %v828 = vmul.f32 %v825, %v826
    %v829 = vperm.slane %v648, 1
    %v830 = vadd.f32 %v827, %v829
    %v831 = vadd.f32 %v828, %v829
    %v832 = vpack.c.bf16 %v831, %v830
    %v834 = vperm.slane %v649, 0
    %v835 = vperm.slane %v649, 1
    %v836 = vperm.slane %v649, 2
    %v837 = vperm.slane %v649, 3
    %v838 = vperm.slane %v649, 4
    %v839 = vperm.slane %v649, 5
    %v894 = vunpack.c.l.b16 %v651
    %v895 = vunpack.c.h.b16 %v651
    %v896 = vunpack.c.l.b16 %v652
    %v897 = vunpack.c.h.b16 %v652
    %v898 = vunpack.c.l.b16 %v653
    %v899 = vunpack.c.h.b16 %v653
    %v900 = vunpack.c.l.b16 %v654
    %v901 = vunpack.c.h.b16 %v654
    %v902 = vunpack.c.l.b16 %v655
    %v903 = vunpack.c.h.b16 %v655
    %v904 = vunpack.c.l.b16 %v656
    %v905 = vunpack.c.h.b16 %v656
    %v906 = vunpack.c.l.b16 %v657
    %v907 = vunpack.c.h.b16 %v657
    %v908 = vunpack.c.l.b16 %v658
    %v909 = vunpack.c.h.b16 %v658
    %v910 = vunpack.c.l.b16 %v659
    %v911 = vunpack.c.h.b16 %v659
    %v912 = vunpack.c.l.b16 %v660
    %v913 = vunpack.c.h.b16 %v660
    %v914 = vunpack.c.l.b16 %v661
    %v915 = vunpack.c.h.b16 %v661
    %v916 = vunpack.c.l.b16 %v662
    %v917 = vunpack.c.h.b16 %v662
    %v918 = vunpack.c.l.b16 %v663
    %v919 = vunpack.c.h.b16 %v663
    %v920 = vunpack.c.l.b16 %v664
    %v921 = vunpack.c.h.b16 %v664
    %v922 = vunpack.c.l.b16 %v665
    %v923 = vunpack.c.h.b16 %v665
    %v924 = vunpack.c.l.b16 %v666
    %v925 = vunpack.c.h.b16 %v666
    %v926 = vunpack.c.l.b16 %v667
    %v927 = vunpack.c.h.b16 %v667
    %v928 = vunpack.c.l.b16 %v668
    %v929 = vunpack.c.h.b16 %v668
    %v930 = vunpack.c.l.b16 %v669
    %v931 = vunpack.c.h.b16 %v669
    %v932 = vunpack.c.l.b16 %v670
    %v933 = vunpack.c.h.b16 %v670
    %v934 = vunpack.c.l.b16 %v671
    %v935 = vunpack.c.h.b16 %v671
    %v936 = vunpack.c.l.b16 %v672
    %v937 = vunpack.c.h.b16 %v672
    %v938 = vunpack.c.l.b16 %v673
    %v939 = vunpack.c.h.b16 %v673
    %v940 = vunpack.c.l.b16 %v674
    %v941 = vunpack.c.h.b16 %v674
    %v942 = vunpack.c.l.b16 %v675
    %v943 = vunpack.c.h.b16 %v675
    %v944 = vunpack.c.l.b16 %v676
    %v945 = vunpack.c.h.b16 %v676
    %v946 = vunpack.c.l.b16 %v677
    %v947 = vunpack.c.h.b16 %v677
    %v948 = vunpack.c.l.b16 %v678
    %v949 = vunpack.c.h.b16 %v678
    %v950 = vunpack.c.l.b16 %v679
    %v951 = vunpack.c.h.b16 %v679
    %v952 = vunpack.c.l.b16 %v680
    %v953 = vunpack.c.h.b16 %v680
    %v954 = vunpack.c.l.b16 %v681
    %v955 = vunpack.c.h.b16 %v681
    %v956 = vunpack.c.l.b16 %v682
    %v957 = vunpack.c.h.b16 %v682
    %v958 = vunpack.c.l.b16 %v683
    %v959 = vunpack.c.h.b16 %v683
    %v960 = vunpack.c.l.b16 %v684
    %v961 = vunpack.c.h.b16 %v684
    %v962 = vunpack.c.l.b16 %v685
    %v963 = vunpack.c.h.b16 %v685
    %v964 = vunpack.c.l.b16 %v686
    %v965 = vunpack.c.h.b16 %v686
    %v966 = vunpack.c.l.b16 %v687
    %v967 = vunpack.c.h.b16 %v687
    %v968 = vunpack.c.l.b16 %v688
    %v969 = vunpack.c.h.b16 %v688
    %v970 = vunpack.c.l.b16 %v689
    %v971 = vunpack.c.h.b16 %v689
    %v972 = vunpack.c.l.b16 %v690
    %v973 = vunpack.c.h.b16 %v690
    %v974 = vunpack.c.l.b16 %v691
    %v975 = vunpack.c.h.b16 %v691
    %v976 = vunpack.c.l.b16 %v692
    %v977 = vunpack.c.h.b16 %v692
    %v978 = vunpack.c.l.b16 %v693
    %v979 = vunpack.c.h.b16 %v693
    %v980 = vunpack.c.l.b16 %v694
    %v981 = vunpack.c.h.b16 %v694
    %v982 = vunpack.c.l.b16 %v695
    %v983 = vunpack.c.h.b16 %v695
    %v984 = vunpack.c.l.b16 %v696
    %v985 = vunpack.c.h.b16 %v696
    %v986 = vunpack.c.l.b16 %v697
    %v987 = vunpack.c.h.b16 %v697
    %v988 = vunpack.c.l.b16 %v698
    %v989 = vunpack.c.h.b16 %v698
    %v990 = vpack.c.b16 %v900, %v894
    %v991 = vpack.c.b16 %v901, %v895
    %v992 = vpack.c.b16 %v902, %v896
    %v993 = vpack.c.b16 %v903, %v897
    %v994 = vpack.c.b16 %v904, %v898
    %v995 = vpack.c.b16 %v905, %v899
    %v996 = vpack.c.b16 %v912, %v906
    %v997 = vpack.c.b16 %v913, %v907
    %v998 = vpack.c.b16 %v914, %v908
    %v999 = vpack.c.b16 %v915, %v909
    %v1000 = vpack.c.b16 %v916, %v910
    %v1001 = vpack.c.b16 %v917, %v911
    %v1002 = vpack.c.b16 %v924, %v918
    %v1003 = vpack.c.b16 %v925, %v919
    %v1004 = vpack.c.b16 %v926, %v920
    %v1005 = vpack.c.b16 %v927, %v921
    %v1006 = vpack.c.b16 %v928, %v922
    %v1007 = vpack.c.b16 %v929, %v923
    %v1008 = vpack.c.b16 %v936, %v930
    %v1009 = vpack.c.b16 %v937, %v931
    %v1010 = vpack.c.b16 %v938, %v932
    %v1011 = vpack.c.b16 %v939, %v933
    %v1012 = vpack.c.b16 %v940, %v934
    %v1013 = vpack.c.b16 %v941, %v935
    %v1014 = vpack.c.b16 %v948, %v942
    %v1015 = vpack.c.b16 %v949, %v943
    %v1016 = vpack.c.b16 %v950, %v944
    %v1017 = vpack.c.b16 %v951, %v945
    %v1018 = vpack.c.b16 %v952, %v946
    %v1019 = vpack.c.b16 %v953, %v947
    %v1020 = vpack.c.b16 %v960, %v954
    %v1021 = vpack.c.b16 %v961, %v955
    %v1022 = vpack.c.b16 %v962, %v956
    %v1023 = vpack.c.b16 %v963, %v957
    %v1024 = vpack.c.b16 %v964, %v958
    %v1025 = vpack.c.b16 %v965, %v959
    %v1026 = vpack.c.b16 %v972, %v966
    %v1027 = vpack.c.b16 %v973, %v967
    %v1028 = vpack.c.b16 %v974, %v968
    %v1029 = vpack.c.b16 %v975, %v969
    %v1030 = vpack.c.b16 %v976, %v970
    %v1031 = vpack.c.b16 %v977, %v971
    %v1032 = vpack.c.b16 %v984, %v978
    %v1033 = vpack.c.b16 %v985, %v979
    %v1034 = vpack.c.b16 %v986, %v980
    %v1035 = vpack.c.b16 %v987, %v981
    %v1036 = vpack.c.b16 %v988, %v982
    %v1037 = vpack.c.b16 %v989, %v983
    %1086 = vmatpush.bf16.msra.mxu0 %v1032
    %1087 = vmatpush.bf16.msra.mxu0 %v1026
    %1088 = vmatpush.bf16.msra.mxu0 %v1020
    %1089 = vmatpush.bf16.msra.mxu0 %v1014
    %1090 = vmatpush.bf16.msra.mxu0 %v1008
    %1091 = vmatpush.bf16.msra.mxu0 %v1002
    %1092 = vmatpush.bf16.msra.mxu0 %v996
    %1093 = vmatpush.bf16.msra.mxu0 %v990
    %1094 = vmatmul.bf16.gmra.mxu0 %v832
    %v1095 = vpop.f32.mrf.mxu0
    %v1096 = vadd.f32 %v834, %v1095
    %v1097 = vpop.f32.mrf.mxu0
    %v1098 = vadd.f32 %v834, %v1097
    %1099 = vdwg.mxu0
    %1100 = vmatpush.bf16.msra.mxu0 %v1033
    %1101 = vmatpush.bf16.msra.mxu0 %v1027
    %1102 = vmatpush.bf16.msra.mxu0 %v1021
    %1103 = vmatpush.bf16.msra.mxu0 %v1015
    %1104 = vmatpush.bf16.msra.mxu0 %v1009
    %1105 = vmatpush.bf16.msra.mxu0 %v1003
    %1106 = vmatpush.bf16.msra.mxu0 %v997
    %1107 = vmatpush.bf16.msra.mxu0 %v991
    %1108 = vmatmul.bf16.gmra.mxu0 %v832
    %v1109 = vpop.f32.mrf.mxu0
    %v1110 = vadd.f32 %v835, %v1109
    %v1111 = vpop.f32.mrf.mxu0
    %v1112 = vadd.f32 %v835, %v1111
    %1113 = vdwg.mxu0
    %1114 = vmatpush.bf16.msra.mxu0 %v1034
    %1115 = vmatpush.bf16.msra.mxu0 %v1028
    %1116 = vmatpush.bf16.msra.mxu0 %v1022
    %1117 = vmatpush.bf16.msra.mxu0 %v1016
    %1118 = vmatpush.bf16.msra.mxu0 %v1010
    %1119 = vmatpush.bf16.msra.mxu0 %v1004
    %1120 = vmatpush.bf16.msra.mxu0 %v998
    %1121 = vmatpush.bf16.msra.mxu0 %v992
    %1122 = vmatmul.bf16.gmra.mxu0 %v832
    %v1123 = vpop.f32.mrf.mxu0
    %v1124 = vadd.f32 %v836, %v1123
    %v1125 = vpop.f32.mrf.mxu0
    %v1126 = vadd.f32 %v836, %v1125
    %1127 = vdwg.mxu0
    %1128 = vmatpush.bf16.msra.mxu0 %v1035
    %1129 = vmatpush.bf16.msra.mxu0 %v1029
    %1130 = vmatpush.bf16.msra.mxu0 %v1023
    %1131 = vmatpush.bf16.msra.mxu0 %v1017
    %1132 = vmatpush.bf16.msra.mxu0 %v1011
    %1133 = vmatpush.bf16.msra.mxu0 %v1005
    %1134 = vmatpush.bf16.msra.mxu0 %v999
    %1135 = vmatpush.bf16.msra.mxu0 %v993
    %1136 = vmatmul.bf16.gmra.mxu0 %v832
    %v1137 = vpop.f32.mrf.mxu0
    %v1138 = vadd.f32 %v837, %v1137
    %v1139 = vpop.f32.mrf.mxu0
    %v1140 = vadd.f32 %v837, %v1139
    %1141 = vdwg.mxu0
    %1142 = vmatpush.bf16.msra.mxu0 %v1036
    %1143 = vmatpush.bf16.msra.mxu0 %v1030
    %1144 = vmatpush.bf16.msra.mxu0 %v1024
    %1145 = vmatpush.bf16.msra.mxu0 %v1018
    %1146 = vmatpush.bf16.msra.mxu0 %v1012
    %1147 = vmatpush.bf16.msra.mxu0 %v1006
    %1148 = vmatpush.bf16.msra.mxu0 %v1000
    %1149 = vmatpush.bf16.msra.mxu0 %v994
    %1150 = vmatmul.bf16.gmra.mxu0 %v832
    %v1151 = vpop.f32.mrf.mxu0
    %v1152 = vadd.f32 %v838, %v1151
    %v1153 = vpop.f32.mrf.mxu0
    %v1154 = vadd.f32 %v838, %v1153
    %1155 = vdwg.mxu0
    %1156 = vmatpush.bf16.msra.mxu0 %v1037
    %1157 = vmatpush.bf16.msra.mxu0 %v1031
    %1158 = vmatpush.bf16.msra.mxu0 %v1025
    %1159 = vmatpush.bf16.msra.mxu0 %v1019
    %1160 = vmatpush.bf16.msra.mxu0 %v1013
    %1161 = vmatpush.bf16.msra.mxu0 %v1007
    %1162 = vmatpush.bf16.msra.mxu0 %v1001
    %1163 = vmatpush.bf16.msra.mxu0 %v995
    %1164 = vmatmul.bf16.gmra.mxu0 %v832
    %v1165 = vpop.f32.mrf.mxu0
    %v1166 = vadd.f32 %v839, %v1165
    %v1167 = vpop.f32.mrf.mxu0
    %v1168 = vadd.f32 %v839, %v1167
    %1169 = vdwg.mxu0
    %v1170 = vpack.c.bf16 %v1098, %v1096
    %v1171 = vpack.c.bf16 %v1112, %v1110
    %1172 = vmatpush.bf16.xpose.msra.mxu0 0
    %1173 = vmatpush.bf16.xpose.msra.mxu0 0
    %1174 = vmatpush.bf16.xpose.msra.mxu0 0
    %1175 = vmatpush.bf16.xpose.msra.mxu0 0
    %1176 = vmatpush.bf16.xpose.msra.mxu0 0
    %1177 = vmatpush.bf16.xpose.msra.mxu0 0
    %1178 = vmatpush.bf16.xpose.msra.mxu0 0
    %1179 = vmatpush.bf16.xpose.msra.mxu0 %v1171
    %1180 = vmatmul.bf16.gmra.mxu0 %v1170
    %v1181 = vpop.f32.mrf.mxu0
    %v1182 = vadd.f32 %v646, %v1181
    %v1183 = vpop.f32.mrf.mxu0
    %v1184 = vadd.f32 %v647, %v1183
    %1185 = vdwg.mxu0
    %vm1186 = vcmask 130048
    %v1187 = vsel %vm1186, %v1182, -inf
    %1188 = vmax.xlane.f32.xlu0 %v1187
    %v1189 = vpop.xlane.xlu0 %1188
    %v1190 = vsel %vm1186, %v1184, -inf
    %1191 = vmax.xlane.f32.xlu0 %v1190
    %v1192 = vpop.xlane.xlu0 %1191
    %v1193 = vsub.f32 %v1182, %v1189
    %v1194 = vsub.f32 %v1184, %v1192
    %v1195 = vmul.f32 %v1193, 1.442695
    %v1196 = vpow.pop %v1195
    %v1197 = vmul.f32 %v1194, 1.442695
    %v1198 = vpow.pop %v1197
    %v1199 = vsel %vm1186, %v1196, 0.0
    %1200 = vadd.xlane.f32.xlu0 %v1199
    %v1201 = vpop.xlane.xlu0 %1200
    %v1202 = vsel %vm1186, %v1198, 0.0
    %1203 = vadd.xlane.f32.xlu0 %v1202
    %v1204 = vpop.xlane.xlu0 %1203
    %v1205 = vrcp.pop %v1201
    %v1206 = vrcp.pop %v1204
    %v1207 = vmul.f32 %v1196, %v1205
    %v1208 = vmul.f32 %v1198, %v1206
    %v1209 = vpack.c.bf16 %v1208, %v1207
    %v1210 = vpack.c.bf16 %v1126, %v1124
    %v1212 = vsel %vm1186, %v1209, 0
    %1214 = vmatpush.bf16.msra.mxu0 0
    %1215 = vmatpush.bf16.msra.mxu0 0
    %1216 = vmatpush.bf16.msra.mxu0 0
    %1217 = vmatpush.bf16.msra.mxu0 0
    %1218 = vmatpush.bf16.msra.mxu0 0
    %1219 = vmatpush.bf16.msra.mxu0 0
    %1220 = vmatpush.bf16.msra.mxu0 0
    %1221 = vmatpush.bf16.msra.mxu0 %v1210
    %1222 = vmatmul.bf16.gmra.mxu0 %v1212
    %v1223 = vpop.f32.mrf.mxu0
    %v1224 = vadd.f32 0.0, %v1223
    %v1225 = vpop.f32.mrf.mxu0
    %v1226 = vadd.f32 0.0, %v1225
    %1227 = vdwg.mxu0
    %v1228 = vpack.c.bf16 %v1140, %v1138
    %v1229 = vpack.c.bf16 %v1154, %v1152
    %1230 = vmatpush.bf16.xpose.msra.mxu0 0
    %1231 = vmatpush.bf16.xpose.msra.mxu0 0
    %1232 = vmatpush.bf16.xpose.msra.mxu0 0
    %1233 = vmatpush.bf16.xpose.msra.mxu0 0
    %1234 = vmatpush.bf16.xpose.msra.mxu0 0
    %1235 = vmatpush.bf16.xpose.msra.mxu0 0
    %1236 = vmatpush.bf16.xpose.msra.mxu0 0
    %1237 = vmatpush.bf16.xpose.msra.mxu0 %v1229
    %1238 = vmatmul.bf16.gmra.mxu0 %v1228
    %v1239 = vpop.f32.mrf.mxu0
    %v1240 = vadd.f32 %v646, %v1239
    %v1241 = vpop.f32.mrf.mxu0
    %v1242 = vadd.f32 %v647, %v1241
    %1243 = vdwg.mxu0
    %v1244 = vsel %vm1186, %v1240, -inf
    %1245 = vmax.xlane.f32.xlu0 %v1244
    %v1246 = vpop.xlane.xlu0 %1245
    %v1247 = vsel %vm1186, %v1242, -inf
    %1248 = vmax.xlane.f32.xlu0 %v1247
    %v1249 = vpop.xlane.xlu0 %1248
    %v1250 = vsub.f32 %v1240, %v1246
    %v1251 = vsub.f32 %v1242, %v1249
    %v1252 = vmul.f32 %v1250, 1.442695
    %v1253 = vpow.pop %v1252
    %v1254 = vmul.f32 %v1251, 1.442695
    %v1255 = vpow.pop %v1254
    %v1256 = vsel %vm1186, %v1253, 0.0
    %1257 = vadd.xlane.f32.xlu0 %v1256
    %v1258 = vpop.xlane.xlu0 %1257
    %v1259 = vsel %vm1186, %v1255, 0.0
    %1260 = vadd.xlane.f32.xlu0 %v1259
    %v1261 = vpop.xlane.xlu0 %1260
    %v1262 = vrcp.pop %v1258
    %v1263 = vrcp.pop %v1261
    %v1264 = vmul.f32 %v1253, %v1262
    %v1265 = vmul.f32 %v1255, %v1263
    %v1266 = vpack.c.bf16 %v1265, %v1264
    %v1267 = vpack.c.bf16 %v1168, %v1166
    %v1269 = vsel %vm1186, %v1266, 0
    %1271 = vmatpush.bf16.msra.mxu0 0
    %1272 = vmatpush.bf16.msra.mxu0 0
    %1273 = vmatpush.bf16.msra.mxu0 0
    %1274 = vmatpush.bf16.msra.mxu0 0
    %1275 = vmatpush.bf16.msra.mxu0 0
    %1276 = vmatpush.bf16.msra.mxu0 0
    %1277 = vmatpush.bf16.msra.mxu0 0
    %1278 = vmatpush.bf16.msra.mxu0 %v1267
    %1279 = vmatmul.bf16.gmra.mxu0 %v1269
    %v1280 = vpop.f32.mrf.mxu0
    %v1281 = vadd.f32 0.0, %v1280
    %v1282 = vpop.f32.mrf.mxu0
    %v1283 = vadd.f32 0.0, %v1282
    %1284 = vdwg.mxu0
    %v1285 = vpack.c.bf16 %v1226, %v1224
    %v1286 = vpack.c.bf16 %v1283, %v1281
    %v1287 = vperm.slane %v648, 2
    %v1320 = vunpack.c.l.b16 %v699
    %v1321 = vunpack.c.l.b16 %v700
    %v1322 = vunpack.c.l.b16 %v701
    %v1323 = vunpack.c.l.b16 %v702
    %v1324 = vunpack.c.l.b16 %v703
    %v1325 = vunpack.c.l.b16 %v704
    %v1326 = vunpack.c.l.b16 %v705
    %v1327 = vunpack.c.l.b16 %v706
    %v1328 = vunpack.c.l.b16 %v707
    %v1329 = vunpack.c.l.b16 %v708
    %v1330 = vunpack.c.l.b16 %v709
    %v1331 = vunpack.c.l.b16 %v710
    %v1332 = vunpack.c.l.b16 %v711
    %v1333 = vunpack.c.l.b16 %v712
    %v1334 = vunpack.c.l.b16 %v713
    %v1335 = vunpack.c.l.b16 %v714
    %v1336 = vunpack.c.l.b16 %v715
    %v1337 = vunpack.c.l.b16 %v716
    %v1338 = vunpack.c.l.b16 %v717
    %v1339 = vunpack.c.l.b16 %v718
    %v1340 = vunpack.c.l.b16 %v719
    %v1341 = vunpack.c.l.b16 %v720
    %v1342 = vunpack.c.l.b16 %v721
    %v1343 = vunpack.c.l.b16 %v722
    %v1344 = vunpack.c.l.b16 %v723
    %v1345 = vunpack.c.l.b16 %v724
    %v1346 = vunpack.c.l.b16 %v725
    %v1347 = vunpack.c.l.b16 %v726
    %v1348 = vunpack.c.l.b16 %v727
    %v1349 = vunpack.c.l.b16 %v728
    %v1350 = vunpack.c.l.b16 %v729
    %v1351 = vunpack.c.l.b16 %v730
    %v1352 = vpack.c.b16 %v1321, %v1320
    %v1353 = vpack.c.b16 %v1323, %v1322
    %v1354 = vpack.c.b16 %v1325, %v1324
    %v1355 = vpack.c.b16 %v1327, %v1326
    %v1356 = vpack.c.b16 %v1329, %v1328
    %v1357 = vpack.c.b16 %v1331, %v1330
    %v1358 = vpack.c.b16 %v1333, %v1332
    %v1359 = vpack.c.b16 %v1335, %v1334
    %v1360 = vpack.c.b16 %v1337, %v1336
    %v1361 = vpack.c.b16 %v1339, %v1338
    %v1362 = vpack.c.b16 %v1341, %v1340
    %v1363 = vpack.c.b16 %v1343, %v1342
    %v1364 = vpack.c.b16 %v1345, %v1344
    %v1365 = vpack.c.b16 %v1347, %v1346
    %v1366 = vpack.c.b16 %v1349, %v1348
    %v1367 = vpack.c.b16 %v1351, %v1350
    %1384 = vmatpush.bf16.msra.mxu0 %v1359
    %1385 = vmatpush.bf16.msra.mxu0 %v1358
    %1386 = vmatpush.bf16.msra.mxu0 %v1357
    %1387 = vmatpush.bf16.msra.mxu0 %v1356
    %1388 = vmatpush.bf16.msra.mxu0 %v1355
    %1389 = vmatpush.bf16.msra.mxu0 %v1354
    %1390 = vmatpush.bf16.msra.mxu0 %v1353
    %1391 = vmatpush.bf16.msra.mxu0 %v1352
    %1392 = vmatmul.bf16.gmra.mxu0 %v1285
    %v1393 = vpop.f32.mrf.mxu0
    %v1394 = vadd.f32 %v1287, %v1393
    %v1395 = vpop.f32.mrf.mxu0
    %v1396 = vadd.f32 %v1287, %v1395
    %1397 = vdwg.mxu0
    %1398 = vmatpush.bf16.msra.mxu0 %v1367
    %1399 = vmatpush.bf16.msra.mxu0 %v1366
    %1400 = vmatpush.bf16.msra.mxu0 %v1365
    %1401 = vmatpush.bf16.msra.mxu0 %v1364
    %1402 = vmatpush.bf16.msra.mxu0 %v1363
    %1403 = vmatpush.bf16.msra.mxu0 %v1362
    %1404 = vmatpush.bf16.msra.mxu0 %v1361
    %1405 = vmatpush.bf16.msra.mxu0 %v1360
    %1406 = vmatmul.bf16.gmra.mxu0 %v1286
    %v1407 = vpop.f32.mrf.mxu0
    %v1408 = vadd.f32 %v1394, %v1407
    %v1409 = vpop.f32.mrf.mxu0
    %v1410 = vadd.f32 %v1396, %v1409
    %1411 = vdwg.mxu0
    %v1412 = vadd.f32 %v642, %v1408
    %v1413 = vadd.f32 %v644, %v1410
    %1414 = vadd.xlane.f32.xlu0 %v1412
    %v1415 = vpop.xlane.xlu0 %1414
    %1416 = vadd.xlane.f32.xlu0 %v1413
    %v1417 = vpop.xlane.xlu0 %1416
    %v1418 = vmul.f32 %v1415, %v789
    %v1419 = vmul.f32 %v1417, %v789
    %v1420 = vsub.f32 %v1412, %v1418
    %v1421 = vsub.f32 %v1413, %v1419
    %v1422 = vmul.f32 %v1420, %v1420
    %v1423 = vmul.f32 %v1421, %v1421
    %1424 = vadd.xlane.f32.xlu0 %v1422
    %v1425 = vpop.xlane.xlu0 %1424
    %1426 = vadd.xlane.f32.xlu0 %v1423
    %v1427 = vpop.xlane.xlu0 %1426
    %v1428 = vmul.f32 %v1425, %v789
    %v1429 = vmul.f32 %v1427, %v789
    %v1430 = vadd.f32 %v1428, 1e-12
    %v1431 = vadd.f32 %v1429, 1e-12
    %v1432 = vrsqrt.pop %v1430
    %v1433 = vmul.f32 %v1432, %v1430
    %v1434 = vmul.f32 %v1433, %v1432
    %v1435 = vmul.f32 0.5, %v1434
    %v1436 = vsub.f32 1.5, %v1435
    %v1437 = vmul.f32 %v1432, %v1436
    %vm1438 = vweird.f32 %v1430
    %vm1439 = vweird.f32 %v1432
    %vm1440 = vmor %vm1438, %vm1439
    %v1441 = vsel %vm1440, %v1432, %v1437
    %v1442 = vrsqrt.pop %v1431
    %v1443 = vmul.f32 %v1442, %v1431
    %v1444 = vmul.f32 %v1443, %v1442
    %v1445 = vmul.f32 0.5, %v1444
    %v1446 = vsub.f32 1.5, %v1445
    %v1447 = vmul.f32 %v1442, %v1446
    %vm1448 = vweird.f32 %v1431
    %vm1449 = vweird.f32 %v1442
    %vm1450 = vmor %vm1448, %vm1449
    %v1451 = vsel %vm1450, %v1442, %v1447
    %v1452 = vmul.f32 %v1420, %v1441
    %v1453 = vmul.f32 %v1421, %v1451
    %v1454 = vperm.slane %v648, 3
    %v1455 = vmul.f32 %v1452, %v1454
    %v1456 = vmul.f32 %v1453, %v1454
    %v1457 = vperm.slane %v648, 4
    %v1458 = vadd.f32 %v1455, %v1457
    %v1459 = vadd.f32 %v1456, %v1457
    %v1460 = vpack.c.bf16 %v1459, %v1458
    %v1462 = vperm.slane %v650, 0
    %v1463 = vperm.slane %v650, 1
    %v1482 = vunpack.c.l.b16 %v731
    %v1483 = vunpack.c.h.b16 %v731
    %v1484 = vunpack.c.l.b16 %v732
    %v1485 = vunpack.c.h.b16 %v732
    %v1486 = vunpack.c.l.b16 %v733
    %v1487 = vunpack.c.h.b16 %v733
    %v1488 = vunpack.c.l.b16 %v734
    %v1489 = vunpack.c.h.b16 %v734
    %v1490 = vunpack.c.l.b16 %v735
    %v1491 = vunpack.c.h.b16 %v735
    %v1492 = vunpack.c.l.b16 %v736
    %v1493 = vunpack.c.h.b16 %v736
    %v1494 = vunpack.c.l.b16 %v737
    %v1495 = vunpack.c.h.b16 %v737
    %v1496 = vunpack.c.l.b16 %v738
    %v1497 = vunpack.c.h.b16 %v738
    %v1498 = vunpack.c.l.b16 %v739
    %v1499 = vunpack.c.h.b16 %v739
    %v1500 = vunpack.c.l.b16 %v740
    %v1501 = vunpack.c.h.b16 %v740
    %v1502 = vunpack.c.l.b16 %v741
    %v1503 = vunpack.c.h.b16 %v741
    %v1504 = vunpack.c.l.b16 %v742
    %v1505 = vunpack.c.h.b16 %v742
    %v1506 = vunpack.c.l.b16 %v743
    %v1507 = vunpack.c.h.b16 %v743
    %v1508 = vunpack.c.l.b16 %v744
    %v1509 = vunpack.c.h.b16 %v744
    %v1510 = vunpack.c.l.b16 %v745
    %v1511 = vunpack.c.h.b16 %v745
    %v1512 = vunpack.c.l.b16 %v746
    %v1513 = vunpack.c.h.b16 %v746
    %v1514 = vpack.c.b16 %v1484, %v1482
    %v1515 = vpack.c.b16 %v1485, %v1483
    %v1516 = vpack.c.b16 %v1488, %v1486
    %v1517 = vpack.c.b16 %v1489, %v1487
    %v1518 = vpack.c.b16 %v1492, %v1490
    %v1519 = vpack.c.b16 %v1493, %v1491
    %v1520 = vpack.c.b16 %v1496, %v1494
    %v1521 = vpack.c.b16 %v1497, %v1495
    %v1522 = vpack.c.b16 %v1500, %v1498
    %v1523 = vpack.c.b16 %v1501, %v1499
    %v1524 = vpack.c.b16 %v1504, %v1502
    %v1525 = vpack.c.b16 %v1505, %v1503
    %v1526 = vpack.c.b16 %v1508, %v1506
    %v1527 = vpack.c.b16 %v1509, %v1507
    %v1528 = vpack.c.b16 %v1512, %v1510
    %v1529 = vpack.c.b16 %v1513, %v1511
    %1546 = vmatpush.bf16.msra.mxu0 %v1528
    %1547 = vmatpush.bf16.msra.mxu0 %v1526
    %1548 = vmatpush.bf16.msra.mxu0 %v1524
    %1549 = vmatpush.bf16.msra.mxu0 %v1522
    %1550 = vmatpush.bf16.msra.mxu0 %v1520
    %1551 = vmatpush.bf16.msra.mxu0 %v1518
    %1552 = vmatpush.bf16.msra.mxu0 %v1516
    %1553 = vmatpush.bf16.msra.mxu0 %v1514
    %1554 = vmatmul.bf16.gmra.mxu0 %v1460
    %v1555 = vpop.f32.mrf.mxu0
    %v1556 = vadd.f32 %v1462, %v1555
    %v1557 = vpop.f32.mrf.mxu0
    %v1558 = vadd.f32 %v1462, %v1557
    %1559 = vdwg.mxu0
    %1560 = vmatpush.bf16.msra.mxu0 %v1529
    %1561 = vmatpush.bf16.msra.mxu0 %v1527
    %1562 = vmatpush.bf16.msra.mxu0 %v1525
    %1563 = vmatpush.bf16.msra.mxu0 %v1523
    %1564 = vmatpush.bf16.msra.mxu0 %v1521
    %1565 = vmatpush.bf16.msra.mxu0 %v1519
    %1566 = vmatpush.bf16.msra.mxu0 %v1517
    %1567 = vmatpush.bf16.msra.mxu0 %v1515
    %1568 = vmatmul.bf16.gmra.mxu0 %v1460
    %v1569 = vpop.f32.mrf.mxu0
    %v1570 = vadd.f32 %v1463, %v1569
    %v1571 = vpop.f32.mrf.mxu0
    %v1572 = vadd.f32 %v1463, %v1571
    %1573 = vdwg.mxu0
    %v1574 = vmul.f32 %v1556, %v1556
    %v1575 = vmul.f32 %v1570, %v1570
    %v1576 = vmul.f32 %v1558, %v1558
    %v1577 = vmul.f32 %v1572, %v1572
    %v1578 = vmul.f32 %v1556, %v1574
    %v1579 = vmul.f32 %v1570, %v1575
    %v1580 = vmul.f32 %v1558, %v1576
    %v1581 = vmul.f32 %v1572, %v1577
    %v1582 = vmul.f32 %v1578, 0.044715
    %v1583 = vmul.f32 %v1579, 0.044715
    %v1584 = vmul.f32 %v1580, 0.044715
    %v1585 = vmul.f32 %v1581, 0.044715
    %v1586 = vadd.f32 %v1556, %v1582
    %v1587 = vadd.f32 %v1570, %v1583
    %v1588 = vadd.f32 %v1558, %v1584
    %v1589 = vadd.f32 %v1572, %v1585
    %v1590 = vmul.f32 %v1586, 0.7978846
    %v1591 = vmul.f32 %v1587, 0.7978846
    %v1592 = vmul.f32 %v1588, 0.7978846
    %v1593 = vmul.f32 %v1589, 0.7978846
    %v1594 = vtanh.pop %v1590
    %v1595 = vtanh.pop %v1591
    %v1596 = vtanh.pop %v1592
    %v1597 = vtanh.pop %v1593
    %v1598 = vadd.f32 %v1594, 1.0
    %v1599 = vadd.f32 %v1595, 1.0
    %v1600 = vadd.f32 %v1596, 1.0
    %v1601 = vadd.f32 %v1597, 1.0
    %v1602 = vmul.f32 %v1598, 0.5
    %v1603 = vmul.f32 %v1599, 0.5
    %v1604 = vmul.f32 %v1600, 0.5
    %v1605 = vmul.f32 %v1601, 0.5
    %v1606 = vmul.f32 %v1556, %v1602
    %v1607 = vmul.f32 %v1570, %v1603
    %v1608 = vmul.f32 %v1558, %v1604
    %v1609 = vmul.f32 %v1572, %v1605
    %v1610 = vpack.c.bf16 %v1608, %v1606
    %v1611 = vpack.c.bf16 %v1609, %v1607
    %v1644 = vunpack.c.l.b16 %v747
    %v1645 = vunpack.c.l.b16 %v748
    %v1646 = vunpack.c.l.b16 %v749
    %v1647 = vunpack.c.l.b16 %v750
    %v1648 = vunpack.c.l.b16 %v751
    %v1649 = vunpack.c.l.b16 %v752
    %v1650 = vunpack.c.l.b16 %v753
    %v1651 = vunpack.c.l.b16 %v754
    %v1652 = vunpack.c.l.b16 %v755
    %v1653 = vunpack.c.l.b16 %v756
    %v1654 = vunpack.c.l.b16 %v757
    %v1655 = vunpack.c.l.b16 %v758
    %v1656 = vunpack.c.l.b16 %v759
    %v1657 = vunpack.c.l.b16 %v760
    %v1658 = vunpack.c.l.b16 %v761
    %v1659 = vunpack.c.l.b16 %v762
    %v1660 = vunpack.c.l.b16 %v763
    %v1661 = vunpack.c.l.b16 %v764
    %v1662 = vunpack.c.l.b16 %v765
    %v1663 = vunpack.c.l.b16 %v766
    %v1664 = vunpack.c.l.b16 %v767
    %v1665 = vunpack.c.l.b16 %v768
    %v1666 = vunpack.c.l.b16 %v769
    %v1667 = vunpack.c.l.b16 %v770
    %v1668 = vunpack.c.l.b16 %v771
    %v1669 = vunpack.c.l.b16 %v772
    %v1670 = vunpack.c.l.b16 %v773
    %v1671 = vunpack.c.l.b16 %v774
    %v1672 = vunpack.c.l.b16 %v775
    %v1673 = vunpack.c.l.b16 %v776
    %v1674 = vunpack.c.l.b16 %v777
    %v1675 = vunpack.c.l.b16 %v778
    %v1676 = vpack.c.b16 %v1645, %v1644
    %v1677 = vpack.c.b16 %v1647, %v1646
    %v1678 = vpack.c.b16 %v1649, %v1648
    %v1679 = vpack.c.b16 %v1651, %v1650
    %v1680 = vpack.c.b16 %v1653, %v1652
    %v1681 = vpack.c.b16 %v1655, %v1654
    %v1682 = vpack.c.b16 %v1657, %v1656
    %v1683 = vpack.c.b16 %v1659, %v1658
    %v1684 = vpack.c.b16 %v1661, %v1660
    %v1685 = vpack.c.b16 %v1663, %v1662
    %v1686 = vpack.c.b16 %v1665, %v1664
    %v1687 = vpack.c.b16 %v1667, %v1666
    %v1688 = vpack.c.b16 %v1669, %v1668
    %v1689 = vpack.c.b16 %v1671, %v1670
    %v1690 = vpack.c.b16 %v1673, %v1672
    %v1691 = vpack.c.b16 %v1675, %v1674
    %1708 = vmatpush.bf16.msra.mxu0 %v1683
    %1709 = vmatpush.bf16.msra.mxu0 %v1682
    %1710 = vmatpush.bf16.msra.mxu0 %v1681
    %1711 = vmatpush.bf16.msra.mxu0 %v1680
    %1712 = vmatpush.bf16.msra.mxu0 %v1679
    %1713 = vmatpush.bf16.msra.mxu0 %v1678
    %1714 = vmatpush.bf16.msra.mxu0 %v1677
    %1715 = vmatpush.bf16.msra.mxu0 %v1676
    %1716 = vmatmul.bf16.gmra.mxu0 %v1610
    %v1717 = vpop.f32.mrf.mxu0
    %v1718 = vadd.f32 0.0, %v1717
    %v1719 = vpop.f32.mrf.mxu0
    %v1720 = vadd.f32 0.0, %v1719
    %1721 = vdwg.mxu0
    %1722 = vmatpush.bf16.msra.mxu0 %v1691
    %1723 = vmatpush.bf16.msra.mxu0 %v1690
    %1724 = vmatpush.bf16.msra.mxu0 %v1689
    %1725 = vmatpush.bf16.msra.mxu0 %v1688
    %1726 = vmatpush.bf16.msra.mxu0 %v1687
    %1727 = vmatpush.bf16.msra.mxu0 %v1686
    %1728 = vmatpush.bf16.msra.mxu0 %v1685
    %1729 = vmatpush.bf16.msra.mxu0 %v1684
    %1730 = vmatmul.bf16.gmra.mxu0 %v1611
    %v1731 = vpop.f32.mrf.mxu0
    %v1732 = vadd.f32 %v1718, %v1731
    %v1733 = vpop.f32.mrf.mxu0
    %v1734 = vadd.f32 %v1720, %v1733
    %1735 = vdwg.mxu0
    %v1736 = vadd.f32 %v1412, %v1732
    %v1737 = vadd.f32 %v1413, %v1734
    %v1738 = vperm.slane %v648, 5
    %v1739 = vadd.f32 %v1736, %v1738
    %v1740 = vadd.f32 %v1737, %v1738
    %s1741 = scalar_lea.vmem [#allocation7], 8
    %v1742 = vld [vmem:[%s1741] sm:$0xff]
    %s1743 = scalar_lea.vmem %s9, 6
    %v1744 = vld [vmem:[%s1743] sm:$0x3f]
    %s1745 = scalar_lea.vmem [#allocation9], 2
    %v1746 = vld [vmem:[%s1745] sm:$0x3]
    %s1747 = scalar_lea.vmem %s4, 384
    %v1748 = vld [vmem:[%s1747] sm:$0xff]
    %v1749 = vld [vmem:[%s1747 + $0x8] sm:$0xff]
    %v1750 = vld [vmem:[%s1747 + $0x10] sm:$0xff]
    %v1751 = vld [vmem:[%s1747 + $0x18] sm:$0xff]
    %v1752 = vld [vmem:[%s1747 + $0x20] sm:$0xff]
    %v1753 = vld [vmem:[%s1747 + $0x28] sm:$0xff]
    %v1754 = vld [vmem:[%s1747 + $0x30] sm:$0xff]
    %v1755 = vld [vmem:[%s1747 + $0x38] sm:$0xff]
    %v1756 = vld [vmem:[%s1747 + $0x40] sm:$0xff]
    %v1757 = vld [vmem:[%s1747 + $0x48] sm:$0xff]
    %v1758 = vld [vmem:[%s1747 + $0x50] sm:$0xff]
    %v1759 = vld [vmem:[%s1747 + $0x58] sm:$0xff]
    %v1760 = vld [vmem:[%s1747 + $0x60] sm:$0xff]
    %v1761 = vld [vmem:[%s1747 + $0x68] sm:$0xff]
    %v1762 = vld [vmem:[%s1747 + $0x70] sm:$0xff]
    %v1763 = vld [vmem:[%s1747 + $0x78] sm:$0xff]
    %v1764 = vld [vmem:[%s1747 + $0x80] sm:$0xff]
    %v1765 = vld [vmem:[%s1747 + $0x88] sm:$0xff]
    %v1766 = vld [vmem:[%s1747 + $0x90] sm:$0xff]
    %v1767 = vld [vmem:[%s1747 + $0x98] sm:$0xff]
    %v1768 = vld [vmem:[%s1747 + $0xa0] sm:$0xff]
    %v1769 = vld [vmem:[%s1747 + $0xa8] sm:$0xff]
    %v1770 = vld [vmem:[%s1747 + $0xb0] sm:$0xff]
    %v1771 = vld [vmem:[%s1747 + $0xb8] sm:$0xff]
    %v1772 = vld [vmem:[%s1747 + $0xc0] sm:$0xff]
    %v1773 = vld [vmem:[%s1747 + $0xc8] sm:$0xff]
    %v1774 = vld [vmem:[%s1747 + $0xd0] sm:$0xff]
    %v1775 = vld [vmem:[%s1747 + $0xd8] sm:$0xff]
    %v1776 = vld [vmem:[%s1747 + $0xe0] sm:$0xff]
    %v1777 = vld [vmem:[%s1747 + $0xe8] sm:$0xff]
    %v1778 = vld [vmem:[%s1747 + $0xf0] sm:$0xff]
    %v1779 = vld [vmem:[%s1747 + $0xf8] sm:$0xff]
    %v1780 = vld [vmem:[%s1747 + $0x100] sm:$0xff]
    %v1781 = vld [vmem:[%s1747 + $0x108] sm:$0xff]
    %v1782 = vld [vmem:[%s1747 + $0x110] sm:$0xff]
    %v1783 = vld [vmem:[%s1747 + $0x118] sm:$0xff]
    %v1784 = vld [vmem:[%s1747 + $0x120] sm:$0xff]
    %v1785 = vld [vmem:[%s1747 + $0x128] sm:$0xff]
    %v1786 = vld [vmem:[%s1747 + $0x130] sm:$0xff]
    %v1787 = vld [vmem:[%s1747 + $0x138] sm:$0xff]
    %v1788 = vld [vmem:[%s1747 + $0x140] sm:$0xff]
    %v1789 = vld [vmem:[%s1747 + $0x148] sm:$0xff]
    %v1790 = vld [vmem:[%s1747 + $0x150] sm:$0xff]
    %v1791 = vld [vmem:[%s1747 + $0x158] sm:$0xff]
    %v1792 = vld [vmem:[%s1747 + $0x160] sm:$0xff]
    %v1793 = vld [vmem:[%s1747 + $0x168] sm:$0xff]
    %v1794 = vld [vmem:[%s1747 + $0x170] sm:$0xff]
    %v1795 = vld [vmem:[%s1747 + $0x178] sm:$0xff]
    %s1796 = scalar_lea.vmem [#allocation2], 128
    %v1797 = vld [vmem:[%s1796] sm:$0xf]
    %v1798 = vld [vmem:[%s1796 + $0x4] sm:$0xf]
    %v1799 = vld [vmem:[%s1796 + $0x8] sm:$0xf]
    %v1800 = vld [vmem:[%s1796 + $0xc] sm:$0xf]
    %v1801 = vld [vmem:[%s1796 + $0x10] sm:$0xf]
    %v1802 = vld [vmem:[%s1796 + $0x14] sm:$0xf]
    %v1803 = vld [vmem:[%s1796 + $0x18] sm:$0xf]
    %v1804 = vld [vmem:[%s1796 + $0x1c] sm:$0xf]
    %v1805 = vld [vmem:[%s1796 + $0x20] sm:$0xf]
    %v1806 = vld [vmem:[%s1796 + $0x24] sm:$0xf]
    %v1807 = vld [vmem:[%s1796 + $0x28] sm:$0xf]
    %v1808 = vld [vmem:[%s1796 + $0x2c] sm:$0xf]
    %v1809 = vld [vmem:[%s1796 + $0x30] sm:$0xf]
    %v1810 = vld [vmem:[%s1796 + $0x34] sm:$0xf]
    %v1811 = vld [vmem:[%s1796 + $0x38] sm:$0xf]
    %v1812 = vld [vmem:[%s1796 + $0x3c] sm:$0xf]
    %v1813 = vld [vmem:[%s1796 + $0x40] sm:$0xf]
    %v1814 = vld [vmem:[%s1796 + $0x44] sm:$0xf]
    %v1815 = vld [vmem:[%s1796 + $0x48] sm:$0xf]
    %v1816 = vld [vmem:[%s1796 + $0x4c] sm:$0xf]
    %v1817 = vld [vmem:[%s1796 + $0x50] sm:$0xf]
    %v1818 = vld [vmem:[%s1796 + $0x54] sm:$0xf]
    %v1819 = vld [vmem:[%s1796 + $0x58] sm:$0xf]
    %v1820 = vld [vmem:[%s1796 + $0x5c] sm:$0xf]
    %v1821 = vld [vmem:[%s1796 + $0x60] sm:$0xf]
    %v1822 = vld [vmem:[%s1796 + $0x64] sm:$0xf]
    %v1823 = vld [vmem:[%s1796 + $0x68] sm:$0xf]
    %v1824 = vld [vmem:[%s1796 + $0x6c] sm:$0xf]
    %v1825 = vld [vmem:[%s1796 + $0x70] sm:$0xf]
    %v1826 = vld [vmem:[%s1796 + $0x74] sm:$0xf]
    %v1827 = vld [vmem:[%s1796 + $0x78] sm:$0xf]
    %v1828 = vld [vmem:[%s1796 + $0x7c] sm:$0xf]
    %s1829 = scalar_lea.vmem [#allocation4], 128
    %v1830 = vld [vmem:[%s1829] sm:$0xff]
    %v1831 = vld [vmem:[%s1829 + $0x8] sm:$0xff]
    %v1832 = vld [vmem:[%s1829 + $0x10] sm:$0xff]
    %v1833 = vld [vmem:[%s1829 + $0x18] sm:$0xff]
    %v1834 = vld [vmem:[%s1829 + $0x20] sm:$0xff]
    %v1835 = vld [vmem:[%s1829 + $0x28] sm:$0xff]
    %v1836 = vld [vmem:[%s1829 + $0x30] sm:$0xff]
    %v1837 = vld [vmem:[%s1829 + $0x38] sm:$0xff]
    %v1838 = vld [vmem:[%s1829 + $0x40] sm:$0xff]
    %v1839 = vld [vmem:[%s1829 + $0x48] sm:$0xff]
    %v1840 = vld [vmem:[%s1829 + $0x50] sm:$0xff]
    %v1841 = vld [vmem:[%s1829 + $0x58] sm:$0xff]
    %v1842 = vld [vmem:[%s1829 + $0x60] sm:$0xff]
    %v1843 = vld [vmem:[%s1829 + $0x68] sm:$0xff]
    %v1844 = vld [vmem:[%s1829 + $0x70] sm:$0xff]
    %v1845 = vld [vmem:[%s1829 + $0x78] sm:$0xff]
    %s1846 = scalar_lea.vmem [#allocation6], 128
    %v1847 = vld [vmem:[%s1846] sm:$0xf]
    %v1848 = vld [vmem:[%s1846 + $0x4] sm:$0xf]
    %v1849 = vld [vmem:[%s1846 + $0x8] sm:$0xf]
    %v1850 = vld [vmem:[%s1846 + $0xc] sm:$0xf]
    %v1851 = vld [vmem:[%s1846 + $0x10] sm:$0xf]
    %v1852 = vld [vmem:[%s1846 + $0x14] sm:$0xf]
    %v1853 = vld [vmem:[%s1846 + $0x18] sm:$0xf]
    %v1854 = vld [vmem:[%s1846 + $0x1c] sm:$0xf]
    %v1855 = vld [vmem:[%s1846 + $0x20] sm:$0xf]
    %v1856 = vld [vmem:[%s1846 + $0x24] sm:$0xf]
    %v1857 = vld [vmem:[%s1846 + $0x28] sm:$0xf]
    %v1858 = vld [vmem:[%s1846 + $0x2c] sm:$0xf]
    %v1859 = vld [vmem:[%s1846 + $0x30] sm:$0xf]
    %v1860 = vld [vmem:[%s1846 + $0x34] sm:$0xf]
    %v1861 = vld [vmem:[%s1846 + $0x38] sm:$0xf]
    %v1862 = vld [vmem:[%s1846 + $0x3c] sm:$0xf]
    %v1863 = vld [vmem:[%s1846 + $0x40] sm:$0xf]
    %v1864 = vld [vmem:[%s1846 + $0x44] sm:$0xf]
    %v1865 = vld [vmem:[%s1846 + $0x48] sm:$0xf]
    %v1866 = vld [vmem:[%s1846 + $0x4c] sm:$0xf]
    %v1867 = vld [vmem:[%s1846 + $0x50] sm:$0xf]
    %v1868 = vld [vmem:[%s1846 + $0x54] sm:$0xf]
    %v1869 = vld [vmem:[%s1846 + $0x58] sm:$0xf]
    %v1870 = vld [vmem:[%s1846 + $0x5c] sm:$0xf]
    %v1871 = vld [vmem:[%s1846 + $0x60] sm:$0xf]
    %v1872 = vld [vmem:[%s1846 + $0x64] sm:$0xf]
    %v1873 = vld [vmem:[%s1846 + $0x68] sm:$0xf]
    %v1874 = vld [vmem:[%s1846 + $0x6c] sm:$0xf]
    %v1875 = vld [vmem:[%s1846 + $0x70] sm:$0xf]
    %v1876 = vld [vmem:[%s1846 + $0x74] sm:$0xf]
    %v1877 = vld [vmem:[%s1846 + $0x78] sm:$0xf]
    %v1878 = vld [vmem:[%s1846 + $0x7c] sm:$0xf]
    %1879 = vadd.xlane.f32.xlu0 %v1739
    %v1880 = vpop.xlane.xlu0 %1879
    %1881 = vadd.xlane.f32.xlu0 %v1740
    %v1882 = vpop.xlane.xlu0 %1881
    %v1883 = vmul.f32 %v1880, %v789
    %v1884 = vmul.f32 %v1882, %v789
    %v1885 = vsub.f32 %v1739, %v1883
    %v1886 = vsub.f32 %v1740, %v1884
    %v1887 = vmul.f32 %v1885, %v1885
    %v1888 = vmul.f32 %v1886, %v1886
    %1889 = vadd.xlane.f32.xlu0 %v1887
    %v1890 = vpop.xlane.xlu0 %1889
    %1891 = vadd.xlane.f32.xlu0 %v1888
    %v1892 = vpop.xlane.xlu0 %1891
    %v1893 = vmul.f32 %v1890, %v789
    %v1894 = vmul.f32 %v1892, %v789
    %v1895 = vadd.f32 %v1893, 1e-12
    %v1896 = vadd.f32 %v1894, 1e-12
    %v1897 = vrsqrt.pop %v1895
    %v1898 = vmul.f32 %v1897, %v1895
    %v1899 = vmul.f32 %v1898, %v1897
    %v1900 = vmul.f32 0.5, %v1899
    %v1901 = vsub.f32 1.5, %v1900
    %v1902 = vmul.f32 %v1897, %v1901
    %vm1903 = vweird.f32 %v1895
    %vm1904 = vweird.f32 %v1897
    %vm1905 = vmor %vm1903, %vm1904
    %v1906 = vsel %vm1905, %v1897, %v1902
    %v1907 = vrsqrt.pop %v1896
    %v1908 = vmul.f32 %v1907, %v1896
    %v1909 = vmul.f32 %v1908, %v1907
    %v1910 = vmul.f32 0.5, %v1909
    %v1911 = vsub.f32 1.5, %v1910
    %v1912 = vmul.f32 %v1907, %v1911
    %vm1913 = vweird.f32 %v1896
    %vm1914 = vweird.f32 %v1907
    %vm1915 = vmor %vm1913, %vm1914
    %v1916 = vsel %vm1915, %v1907, %v1912
    %v1917 = vmul.f32 %v1885, %v1906
    %v1918 = vmul.f32 %v1886, %v1916
    %v1919 = vperm.slane %v1742, 0
    %v1920 = vmul.f32 %v1917, %v1919
    %v1921 = vmul.f32 %v1918, %v1919
    %v1922 = vperm.slane %v1742, 1
    %v1923 = vadd.f32 %v1920, %v1922
    %v1924 = vadd.f32 %v1921, %v1922
    %v1925 = vpack.c.bf16 %v1924, %v1923
    %v1927 = vperm.slane %v1744, 0
    %v1928 = vperm.slane %v1744, 1
    %v1929 = vperm.slane %v1744, 2
    %v1930 = vperm.slane %v1744, 3
    %v1931 = vperm.slane %v1744, 4
    %v1932 = vperm.slane %v1744, 5
    %v1987 = vunpack.c.l.b16 %v1748
    %v1988 = vunpack.c.h.b16 %v1748
    %v1989 = vunpack.c.l.b16 %v1749
    %v1990 = vunpack.c.h.b16 %v1749
    %v1991 = vunpack.c.l.b16 %v1750
    %v1992 = vunpack.c.h.b16 %v1750
    %v1993 = vunpack.c.l.b16 %v1751
    %v1994 = vunpack.c.h.b16 %v1751
    %v1995 = vunpack.c.l.b16 %v1752
    %v1996 = vunpack.c.h.b16 %v1752
    %v1997 = vunpack.c.l.b16 %v1753
    %v1998 = vunpack.c.h.b16 %v1753
    %v1999 = vunpack.c.l.b16 %v1754
    %v2000 = vunpack.c.h.b16 %v1754
    %v2001 = vunpack.c.l.b16 %v1755
    %v2002 = vunpack.c.h.b16 %v1755
    %v2003 = vunpack.c.l.b16 %v1756
    %v2004 = vunpack.c.h.b16 %v1756
    %v2005 = vunpack.c.l.b16 %v1757
    %v2006 = vunpack.c.h.b16 %v1757
    %v2007 = vunpack.c.l.b16 %v1758
    %v2008 = vunpack.c.h.b16 %v1758
    %v2009 = vunpack.c.l.b16 %v1759
    %v2010 = vunpack.c.h.b16 %v1759
    %v2011 = vunpack.c.l.b16 %v1760
    %v2012 = vunpack.c.h.b16 %v1760
    %v2013 = vunpack.c.l.b16 %v1761
    %v2014 = vunpack.c.h.b16 %v1761
    %v2015 = vunpack.c.l.b16 %v1762
    %v2016 = vunpack.c.h.b16 %v1762
    %v2017 = vunpack.c.l.b16 %v1763
    %v2018 = vunpack.c.h.b16 %v1763
    %v2019 = vunpack.c.l.b16 %v1764
    %v2020 = vunpack.c.h.b16 %v1764
    %v2021 = vunpack.c.l.b16 %v1765
    %v2022 = vunpack.c.h.b16 %v1765
    %v2023 = vunpack.c.l.b16 %v1766
    %v2024 = vunpack.c.h.b16 %v1766
    %v2025 = vunpack.c.l.b16 %v1767
    %v2026 = vunpack.c.h.b16 %v1767
    %v2027 = vunpack.c.l.b16 %v1768
    %v2028 = vunpack.c.h.b16 %v1768
    %v2029 = vunpack.c.l.b16 %v1769
    %v2030 = vunpack.c.h.b16 %v1769
    %v2031 = vunpack.c.l.b16 %v1770
    %v2032 = vunpack.c.h.b16 %v1770
    %v2033 = vunpack.c.l.b16 %v1771
    %v2034 = vunpack.c.h.b16 %v1771
    %v2035 = vunpack.c.l.b16 %v1772
    %v2036 = vunpack.c.h.b16 %v1772
    %v2037 = vunpack.c.l.b16 %v1773
    %v2038 = vunpack.c.h.b16 %v1773
    %v2039 = vunpack.c.l.b16 %v1774
    %v2040 = vunpack.c.h.b16 %v1774
    %v2041 = vunpack.c.l.b16 %v1775
    %v2042 = vunpack.c.h.b16 %v1775
    %v2043 = vunpack.c.l.b16 %v1776
    %v2044 = vunpack.c.h.b16 %v1776
    %v2045 = vunpack.c.l.b16 %v1777
    %v2046 = vunpack.c.h.b16 %v1777
    %v2047 = vunpack.c.l.b16 %v1778
    %v2048 = vunpack.c.h.b16 %v1778
    %v2049 = vunpack.c.l.b16 %v1779
    %v2050 = vunpack.c.h.b16 %v1779
    %v2051 = vunpack.c.l.b16 %v1780
    %v2052 = vunpack.c.h.b16 %v1780
    %v2053 = vunpack.c.l.b16 %v1781
    %v2054 = vunpack.c.h.b16 %v1781
    %v2055 = vunpack.c.l.b16 %v1782
    %v2056 = vunpack.c.h.b16 %v1782
    %v2057 = vunpack.c.l.b16 %v1783
    %v2058 = vunpack.c.h.b16 %v1783
    %v2059 = vunpack.c.l.b16 %v1784
    %v2060 = vunpack.c.h.b16 %v1784
    %v2061 = vunpack.c.l.b16 %v1785
    %v2062 = vunpack.c.h.b16 %v1785
    %v2063 = vunpack.c.l.b16 %v1786
    %v2064 = vunpack.c.h.b16 %v1786
    %v2065 = vunpack.c.l.b16 %v1787
    %v2066 = vunpack.c.h.b16 %v1787
    %v2067 = vunpack.c.l.b16 %v1788
    %v2068 = vunpack.c.h.b16 %v1788
    %v2069 = vunpack.c.l.b16 %v1789
    %v2070 = vunpack.c.h.b16 %v1789
    %v2071 = vunpack.c.l.b16 %v1790
    %v2072 = vunpack.c.h.b16 %v1790
    %v2073 = vunpack.c.l.b16 %v1791
    %v2074 = vunpack.c.h.b16 %v1791
    %v2075 = vunpack.c.l.b16 %v1792
    %v2076 = vunpack.c.h.b16 %v1792
    %v2077 = vunpack.c.l.b16 %v1793
    %v2078 = vunpack.c.h.b16 %v1793
    %v2079 = vunpack.c.l.b16 %v1794
    %v2080 = vunpack.c.h.b16 %v1794
    %v2081 = vunpack.c.l.b16 %v1795
    %v2082 = vunpack.c.h.b16 %v1795
    %v2083 = vpack.c.b16 %v1993, %v1987
    %v2084 = vpack.c.b16 %v1994, %v1988
    %v2085 = vpack.c.b16 %v1995, %v1989
    %v2086 = vpack.c.b16 %v1996, %v1990
    %v2087 = vpack.c.b16 %v1997, %v1991
    %v2088 = vpack.c.b16 %v1998, %v1992
    %v2089 = vpack.c.b16 %v2005, %v1999
    %v2090 = vpack.c.b16 %v2006, %v2000
    %v2091 = vpack.c.b16 %v2007, %v2001
    %v2092 = vpack.c.b16 %v2008, %v2002
    %v2093 = vpack.c.b16 %v2009, %v2003
    %v2094 = vpack.c.b16 %v2010, %v2004
    %v2095 = vpack.c.b16 %v2017, %v2011
    %v2096 = vpack.c.b16 %v2018, %v2012
    %v2097 = vpack.c.b16 %v2019, %v2013
    %v2098 = vpack.c.b16 %v2020, %v2014
    %v2099 = vpack.c.b16 %v2021, %v2015
    %v2100 = vpack.c.b16 %v2022, %v2016
    %v2101 = vpack.c.b16 %v2029, %v2023
    %v2102 = vpack.c.b16 %v2030, %v2024
    %v2103 = vpack.c.b16 %v2031, %v2025
    %v2104 = vpack.c.b16 %v2032, %v2026
    %v2105 = vpack.c.b16 %v2033, %v2027
    %v2106 = vpack.c.b16 %v2034, %v2028
    %v2107 = vpack.c.b16 %v2041, %v2035
    %v2108 = vpack.c.b16 %v2042, %v2036
    %v2109 = vpack.c.b16 %v2043, %v2037
    %v2110 = vpack.c.b16 %v2044, %v2038
    %v2111 = vpack.c.b16 %v2045, %v2039
    %v2112 = vpack.c.b16 %v2046, %v2040
    %v2113 = vpack.c.b16 %v2053, %v2047
    %v2114 = vpack.c.b16 %v2054, %v2048
    %v2115 = vpack.c.b16 %v2055, %v2049
    %v2116 = vpack.c.b16 %v2056, %v2050
    %v2117 = vpack.c.b16 %v2057, %v2051
    %v2118 = vpack.c.b16 %v2058, %v2052
    %v2119 = vpack.c.b16 %v2065, %v2059
    %v2120 = vpack.c.b16 %v2066, %v2060
    %v2121 = vpack.c.b16 %v2067, %v2061
    %v2122 = vpack.c.b16 %v2068, %v2062
    %v2123 = vpack.c.b16 %v2069, %v2063
    %v2124 = vpack.c.b16 %v2070, %v2064
    %v2125 = vpack.c.b16 %v2077, %v2071
    %v2126 = vpack.c.b16 %v2078, %v2072
    %v2127 = vpack.c.b16 %v2079, %v2073
    %v2128 = vpack.c.b16 %v2080, %v2074
    %v2129 = vpack.c.b16 %v2081, %v2075
    %v2130 = vpack.c.b16 %v2082, %v2076
    %2179 = vmatpush.bf16.msra.mxu0 %v2125
    %2180 = vmatpush.bf16.msra.mxu0 %v2119
    %2181 = vmatpush.bf16.msra.mxu0 %v2113
    %2182 = vmatpush.bf16.msra.mxu0 %v2107
    %2183 = vmatpush.bf16.msra.mxu0 %v2101
    %2184 = vmatpush.bf16.msra.mxu0 %v2095
    %2185 = vmatpush.bf16.msra.mxu0 %v2089
    %2186 = vmatpush.bf16.msra.mxu0 %v2083
    %2187 = vmatmul.bf16.gmra.mxu0 %v1925
    %v2188 = vpop.f32.mrf.mxu0
    %v2189 = vadd.f32 %v1927, %v2188
    %v2190 = vpop.f32.mrf.mxu0
    %v2191 = vadd.f32 %v1927, %v2190
    %2192 = vdwg.mxu0
    %2193 = vmatpush.bf16.msra.mxu0 %v2126
    %2194 = vmatpush.bf16.msra.mxu0 %v2120
    %2195 = vmatpush.bf16.msra.mxu0 %v2114
    %2196 = vmatpush.bf16.msra.mxu0 %v2108
    %2197 = vmatpush.bf16.msra.mxu0 %v2102
    %2198 = vmatpush.bf16.msra.mxu0 %v2096
    %2199 = vmatpush.bf16.msra.mxu0 %v2090
    %2200 = vmatpush.bf16.msra.mxu0 %v2084
    %2201 = vmatmul.bf16.gmra.mxu0 %v1925
    %v2202 = vpop.f32.mrf.mxu0
    %v2203 = vadd.f32 %v1928, %v2202
    %v2204 = vpop.f32.mrf.mxu0
    %v2205 = vadd.f32 %v1928, %v2204
    %2206 = vdwg.mxu0
    %2207 = vmatpush.bf16.msra.mxu0 %v2127
    %2208 = vmatpush.bf16.msra.mxu0 %v2121
    %2209 = vmatpush.bf16.msra.mxu0 %v2115
    %2210 = vmatpush.bf16.msra.mxu0 %v2109
    %2211 = vmatpush.bf16.msra.mxu0 %v2103
    %2212 = vmatpush.bf16.msra.mxu0 %v2097
    %2213 = vmatpush.bf16.msra.mxu0 %v2091
    %2214 = vmatpush.bf16.msra.mxu0 %v2085
    %2215 = vmatmul.bf16.gmra.mxu0 %v1925
    %v2216 = vpop.f32.mrf.mxu0
    %v2217 = vadd.f32 %v1929, %v2216
    %v2218 = vpop.f32.mrf.mxu0
    %v2219 = vadd.f32 %v1929, %v2218
    %2220 = vdwg.mxu0
    %2221 = vmatpush.bf16.msra.mxu0 %v2128
    %2222 = vmatpush.bf16.msra.mxu0 %v2122
    %2223 = vmatpush.bf16.msra.mxu0 %v2116
    %2224 = vmatpush.bf16.msra.mxu0 %v2110
    %2225 = vmatpush.bf16.msra.mxu0 %v2104
    %2226 = vmatpush.bf16.msra.mxu0 %v2098
    %2227 = vmatpush.bf16.msra.mxu0 %v2092
    %2228 = vmatpush.bf16.msra.mxu0 %v2086
    %2229 = vmatmul.bf16.gmra.mxu0 %v1925
    %v2230 = vpop.f32.mrf.mxu0
    %v2231 = vadd.f32 %v1930, %v2230
    %v2232 = vpop.f32.mrf.mxu0
    %v2233 = vadd.f32 %v1930, %v2232
    %2234 = vdwg.mxu0
    %2235 = vmatpush.bf16.msra.mxu0 %v2129
    %2236 = vmatpush.bf16.msra.mxu0 %v2123
    %2237 = vmatpush.bf16.msra.mxu0 %v2117
    %2238 = vmatpush.bf16.msra.mxu0 %v2111
    %2239 = vmatpush.bf16.msra.mxu0 %v2105
    %2240 = vmatpush.bf16.msra.mxu0 %v2099
    %2241 = vmatpush.bf16.msra.mxu0 %v2093
    %2242 = vmatpush.bf16.msra.mxu0 %v2087
    %2243 = vmatmul.bf16.gmra.mxu0 %v1925
    %v2244 = vpop.f32.mrf.mxu0
    %v2245 = vadd.f32 %v1931, %v2244
    %v2246 = vpop.f32.mrf.mxu0
    %v2247 = vadd.f32 %v1931, %v2246
    %2248 = vdwg.mxu0
    %2249 = vmatpush.bf16.msra.mxu0 %v2130
    %2250 = vmatpush.bf16.msra.mxu0 %v2124
    %2251 = vmatpush.bf16.msra.mxu0 %v2118
    %2252 = vmatpush.bf16.msra.mxu0 %v2112
    %2253 = vmatpush.bf16.msra.mxu0 %v2106
    %2254 = vmatpush.bf16.msra.mxu0 %v2100
    %2255 = vmatpush.bf16.msra.mxu0 %v2094
    %2256 = vmatpush.bf16.msra.mxu0 %v2088
    %2257 = vmatmul.bf16.gmra.mxu0 %v1925
    %v2258 = vpop.f32.mrf.mxu0
    %v2259 = vadd.f32 %v1932, %v2258
    %v2260 = vpop.f32.mrf.mxu0
    %v2261 = vadd.f32 %v1932, %v2260
    %2262 = vdwg.mxu0
    %v2263 = vpack.c.bf16 %v2191, %v2189
    %v2264 = vpack.c.bf16 %v2205, %v2203
    %2265 = vmatpush.bf16.xpose.msra.mxu0 0
    %2266 = vmatpush.bf16.xpose.msra.mxu0 0
    %2267 = vmatpush.bf16.xpose.msra.mxu0 0
    %2268 = vmatpush.bf16.xpose.msra.mxu0 0
    %2269 = vmatpush.bf16.xpose.msra.mxu0 0
    %2270 = vmatpush.bf16.xpose.msra.mxu0 0
    %2271 = vmatpush.bf16.xpose.msra.mxu0 0
    %2272 = vmatpush.bf16.xpose.msra.mxu0 %v2264
    %2273 = vmatmul.bf16.gmra.mxu0 %v2263
    %v2274 = vpop.f32.mrf.mxu0
    %v2275 = vadd.f32 %v646, %v2274
    %v2276 = vpop.f32.mrf.mxu0
    %v2277 = vadd.f32 %v647, %v2276
    %2278 = vdwg.mxu0
    %v2279 = vsel %vm1186, %v2275, -inf
    %2280 = vmax.xlane.f32.xlu0 %v2279
    %v2281 = vpop.xlane.xlu0 %2280
    %v2282 = vsel %vm1186, %v2277, -inf
    %2283 = vmax.xlane.f32.xlu0 %v2282
    %v2284 = vpop.xlane.xlu0 %2283
    %v2285 = vsub.f32 %v2275, %v2281
    %v2286 = vsub.f32 %v2277, %v2284
    %v2287 = vmul.f32 %v2285, 1.442695
    %v2288 = vpow.pop %v2287
    %v2289 = vmul.f32 %v2286, 1.442695
    %v2290 = vpow.pop %v2289
    %v2291 = vsel %vm1186, %v2288, 0.0
    %2292 = vadd.xlane.f32.xlu0 %v2291
    %v2293 = vpop.xlane.xlu0 %2292
    %v2294 = vsel %vm1186, %v2290, 0.0
    %2295 = vadd.xlane.f32.xlu0 %v2294
    %v2296 = vpop.xlane.xlu0 %2295
    %v2297 = vrcp.pop %v2293
    %v2298 = vrcp.pop %v2296
    %v2299 = vmul.f32 %v2288, %v2297
    %v2300 = vmul.f32 %v2290, %v2298
    %v2301 = vpack.c.bf16 %v2300, %v2299
    %v2302 = vpack.c.bf16 %v2219, %v2217
    %v2304 = vsel %vm1186, %v2301, 0
    %2306 = vmatpush.bf16.msra.mxu0 0
    %2307 = vmatpush.bf16.msra.mxu0 0
    %2308 = vmatpush.bf16.msra.mxu0 0
    %2309 = vmatpush.bf16.msra.mxu0 0
    %2310 = vmatpush.bf16.msra.mxu0 0
    %2311 = vmatpush.bf16.msra.mxu0 0
    %2312 = vmatpush.bf16.msra.mxu0 0
    %2313 = vmatpush.bf16.msra.mxu0 %v2302
    %2314 = vmatmul.bf16.gmra.mxu0 %v2304
    %v2315 = vpop.f32.mrf.mxu0
    %v2316 = vadd.f32 0.0, %v2315
    %v2317 = vpop.f32.mrf.mxu0
    %v2318 = vadd.f32 0.0, %v2317
    %2319 = vdwg.mxu0
    %v2320 = vpack.c.bf16 %v2233, %v2231
    %v2321 = vpack.c.bf16 %v2247, %v2245
    %2322 = vmatpush.bf16.xpose.msra.mxu0 0
    %2323 = vmatpush.bf16.xpose.msra.mxu0 0
    %2324 = vmatpush.bf16.xpose.msra.mxu0 0
    %2325 = vmatpush.bf16.xpose.msra.mxu0 0
    %2326 = vmatpush.bf16.xpose.msra.mxu0 0
    %2327 = vmatpush.bf16.xpose.msra.mxu0 0
    %2328 = vmatpush.bf16.xpose.msra.mxu0 0
    %2329 = vmatpush.bf16.xpose.msra.mxu0 %v2321
    %2330 = vmatmul.bf16.gmra.mxu0 %v2320
    %v2331 = vpop.f32.mrf.mxu0
    %v2332 = vadd.f32 %v646, %v2331
    %v2333 = vpop.f32.mrf.mxu0
    %v2334 = vadd.f32 %v647, %v2333
    %2335 = vdwg.mxu0
    %v2336 = vsel %vm1186, %v2332, -inf
    %2337 = vmax.xlane.f32.xlu0 %v2336
    %v2338 = vpop.xlane.xlu0 %2337
    %v2339 = vsel %vm1186, %v2334, -inf
    %2340 = vmax.xlane.f32.xlu0 %v2339
    %v2341 = vpop.xlane.xlu0 %2340
    %v2342 = vsub.f32 %v2332, %v2338
    %v2343 = vsub.f32 %v2334, %v2341
    %v2344 = vmul.f32 %v2342, 1.442695
    %v2345 = vpow.pop %v2344
    %v2346 = vmul.f32 %v2343, 1.442695
    %v2347 = vpow.pop %v2346
    %v2348 = vsel %vm1186, %v2345, 0.0
    %2349 = vadd.xlane.f32.xlu0 %v2348
    %v2350 = vpop.xlane.xlu0 %2349
    %v2351 = vsel %vm1186, %v2347, 0.0
    %2352 = vadd.xlane.f32.xlu0 %v2351
    %v2353 = vpop.xlane.xlu0 %2352
    %v2354 = vrcp.pop %v2350
    %v2355 = vrcp.pop %v2353
    %v2356 = vmul.f32 %v2345, %v2354
    %v2357 = vmul.f32 %v2347, %v2355
    %v2358 = vpack.c.bf16 %v2357, %v2356
    %v2359 = vpack.c.bf16 %v2261, %v2259
    %v2361 = vsel %vm1186, %v2358, 0
    %2363 = vmatpush.bf16.msra.mxu0 0
    %2364 = vmatpush.bf16.msra.mxu0 0
    %2365 = vmatpush.bf16.msra.mxu0 0
    %2366 = vmatpush.bf16.msra.mxu0 0
    %2367 = vmatpush.bf16.msra.mxu0 0
    %2368 = vmatpush.bf16.msra.mxu0 0
    %2369 = vmatpush.bf16.msra.mxu0 0
    %2370 = vmatpush.bf16.msra.mxu0 %v2359
    %2371 = vmatmul.bf16.gmra.mxu0 %v2361
    %v2372 = vpop.f32.mrf.mxu0
    %v2373 = vadd.f32 0.0, %v2372
    %v2374 = vpop.f32.mrf.mxu0
    %v2375 = vadd.f32 0.0, %v2374
    %2376 = vdwg.mxu0
    %v2377 = vpack.c.bf16 %v2318, %v2316
    %v2378 = vpack.c.bf16 %v2375, %v2373
    %v2379 = vperm.slane %v1742, 2
    %v2412 = vunpack.c.l.b16 %v1797
    %v2413 = vunpack.c.l.b16 %v1798
    %v2414 = vunpack.c.l.b16 %v1799
    %v2415 = vunpack.c.l.b16 %v1800
    %v2416 = vunpack.c.l.b16 %v1801
    %v2417 = vunpack.c.l.b16 %v1802
    %v2418 = vunpack.c.l.b16 %v1803
    %v2419 = vunpack.c.l.b16 %v1804
    %v2420 = vunpack.c.l.b16 %v1805
    %v2421 = vunpack.c.l.b16 %v1806
    %v2422 = vunpack.c.l.b16 %v1807
    %v2423 = vunpack.c.l.b16 %v1808
    %v2424 = vunpack.c.l.b16 %v1809
    %v2425 = vunpack.c.l.b16 %v1810
    %v2426 = vunpack.c.l.b16 %v1811
    %v2427 = vunpack.c.l.b16 %v1812
    %v2428 = vunpack.c.l.b16 %v1813
    %v2429 = vunpack.c.l.b16 %v1814
    %v2430 = vunpack.c.l.b16 %v1815
    %v2431 = vunpack.c.l.b16 %v1816
    %v2432 = vunpack.c.l.b16 %v1817
    %v2433 = vunpack.c.l.b16 %v1818
    %v2434 = vunpack.c.l.b16 %v1819
    %v2435 = vunpack.c.l.b16 %v1820
    %v2436 = vunpack.c.l.b16 %v1821
    %v2437 = vunpack.c.l.b16 %v1822
    %v2438 = vunpack.c.l.b16 %v1823
    %v2439 = vunpack.c.l.b16 %v1824
    %v2440 = vunpack.c.l.b16 %v1825
    %v2441 = vunpack.c.l.b16 %v1826
    %v2442 = vunpack.c.l.b16 %v1827
    %v2443 = vunpack.c.l.b16 %v1828
    %v2444 = vpack.c.b16 %v2413, %v2412
    %v2445 = vpack.c.b16 %v2415, %v2414
    %v2446 = vpack.c.b16 %v2417, %v2416
    %v2447 = vpack.c.b16 %v2419, %v2418
    %v2448 = vpack.c.b16 %v2421, %v2420
    %v2449 = vpack.c.b16 %v2423, %v2422
    %v2450 = vpack.c.b16 %v2425, %v2424
    %v2451 = vpack.c.b16 %v2427, %v2426
    %v2452 = vpack.c.b16 %v2429, %v2428
    %v2453 = vpack.c.b16 %v2431, %v2430
    %v2454 = vpack.c.b16 %v2433, %v2432
    %v2455 = vpack.c.b16 %v2435, %v2434
    %v2456 = vpack.c.b16 %v2437, %v2436
    %v2457 = vpack.c.b16 %v2439, %v2438
    %v2458 = vpack.c.b16 %v2441, %v2440
    %v2459 = vpack.c.b16 %v2443, %v2442
    %2476 = vmatpush.bf16.msra.mxu0 %v2451
    %2477 = vmatpush.bf16.msra.mxu0 %v2450
    %2478 = vmatpush.bf16.msra.mxu0 %v2449
    %2479 = vmatpush.bf16.msra.mxu0 %v2448
    %2480 = vmatpush.bf16.msra.mxu0 %v2447
    %2481 = vmatpush.bf16.msra.mxu0 %v2446
    %2482 = vmatpush.bf16.msra.mxu0 %v2445
    %2483 = vmatpush.bf16.msra.mxu0 %v2444
    %2484 = vmatmul.bf16.gmra.mxu0 %v2377
    %v2485 = vpop.f32.mrf.mxu0
    %v2486 = vadd.f32 %v2379, %v2485
    %v2487 = vpop.f32.mrf.mxu0
    %v2488 = vadd.f32 %v2379, %v2487
    %2489 = vdwg.mxu0
    %2490 = vmatpush.bf16.msra.mxu0 %v2459
    %2491 = vmatpush.bf16.msra.mxu0 %v2458
    %2492 = vmatpush.bf16.msra.mxu0 %v2457
    %2493 = vmatpush.bf16.msra.mxu0 %v2456
    %2494 = vmatpush.bf16.msra.mxu0 %v2455
    %2495 = vmatpush.bf16.msra.mxu0 %v2454
    %2496 = vmatpush.bf16.msra.mxu0 %v2453
    %2497 = vmatpush.bf16.msra.mxu0 %v2452
    %2498 = vmatmul.bf16.gmra.mxu0 %v2378
    %v2499 = vpop.f32.mrf.mxu0
    %v2500 = vadd.f32 %v2486, %v2499
    %v2501 = vpop.f32.mrf.mxu0
    %v2502 = vadd.f32 %v2488, %v2501
    %2503 = vdwg.mxu0
    %v2504 = vadd.f32 %v1739, %v2500
    %v2505 = vadd.f32 %v1740, %v2502
    %2506 = vadd.xlane.f32.xlu0 %v2504
    %v2507 = vpop.xlane.xlu0 %2506
    %2508 = vadd.xlane.f32.xlu0 %v2505
    %v2509 = vpop.xlane.xlu0 %2508
    %v2510 = vmul.f32 %v2507, %v789
    %v2511 = vmul.f32 %v2509, %v789
    %v2512 = vsub.f32 %v2504, %v2510
    %v2513 = vsub.f32 %v2505, %v2511
    %v2514 = vmul.f32 %v2512, %v2512
    %v2515 = vmul.f32 %v2513, %v2513
    %2516 = vadd.xlane.f32.xlu0 %v2514
    %v2517 = vpop.xlane.xlu0 %2516
    %2518 = vadd.xlane.f32.xlu0 %v2515
    %v2519 = vpop.xlane.xlu0 %2518
    %v2520 = vmul.f32 %v2517, %v789
    %v2521 = vmul.f32 %v2519, %v789
    %v2522 = vadd.f32 %v2520, 1e-12
    %v2523 = vadd.f32 %v2521, 1e-12
    %v2524 = vrsqrt.pop %v2522
    %v2525 = vmul.f32 %v2524, %v2522
    %v2526 = vmul.f32 %v2525, %v2524
    %v2527 = vmul.f32 0.5, %v2526
    %v2528 = vsub.f32 1.5, %v2527
    %v2529 = vmul.f32 %v2524, %v2528
    %vm2530 = vweird.f32 %v2522
    %vm2531 = vweird.f32 %v2524
    %vm2532 = vmor %vm2530, %vm2531
    %v2533 = vsel %vm2532, %v2524, %v2529
    %v2534 = vrsqrt.pop %v2523
    %v2535 = vmul.f32 %v2534, %v2523
    %v2536 = vmul.f32 %v2535, %v2534
    %v2537 = vmul.f32 0.5, %v2536
    %v2538 = vsub.f32 1.5, %v2537
    %v2539 = vmul.f32 %v2534, %v2538
    %vm2540 = vweird.f32 %v2523
    %vm2541 = vweird.f32 %v2534
    %vm2542 = vmor %vm2540, %vm2541
    %v2543 = vsel %vm2542, %v2534, %v2539
    %v2544 = vmul.f32 %v2512, %v2533
    %v2545 = vmul.f32 %v2513, %v2543
    %v2546 = vperm.slane %v1742, 3
    %v2547 = vmul.f32 %v2544, %v2546
    %v2548 = vmul.f32 %v2545, %v2546
    %v2549 = vperm.slane %v1742, 4
    %v2550 = vadd.f32 %v2547, %v2549
    %v2551 = vadd.f32 %v2548, %v2549
    %v2552 = vpack.c.bf16 %v2551, %v2550
    %v2554 = vperm.slane %v1746, 0
    %v2555 = vperm.slane %v1746, 1
    %v2574 = vunpack.c.l.b16 %v1830
    %v2575 = vunpack.c.h.b16 %v1830
    %v2576 = vunpack.c.l.b16 %v1831
    %v2577 = vunpack.c.h.b16 %v1831
    %v2578 = vunpack.c.l.b16 %v1832
    %v2579 = vunpack.c.h.b16 %v1832
    %v2580 = vunpack.c.l.b16 %v1833
    %v2581 = vunpack.c.h.b16 %v1833
    %v2582 = vunpack.c.l.b16 %v1834
    %v2583 = vunpack.c.h.b16 %v1834
    %v2584 = vunpack.c.l.b16 %v1835
    %v2585 = vunpack.c.h.b16 %v1835
    %v2586 = vunpack.c.l.b16 %v1836
    %v2587 = vunpack.c.h.b16 %v1836
    %v2588 = vunpack.c.l.b16 %v1837
    %v2589 = vunpack.c.h.b16 %v1837
    %v2590 = vunpack.c.l.b16 %v1838
    %v2591 = vunpack.c.h.b16 %v1838
    %v2592 = vunpack.c.l.b16 %v1839
    %v2593 = vunpack.c.h.b16 %v1839
    %v2594 = vunpack.c.l.b16 %v1840
    %v2595 = vunpack.c.h.b16 %v1840
    %v2596 = vunpack.c.l.b16 %v1841
    %v2597 = vunpack.c.h.b16 %v1841
    %v2598 = vunpack.c.l.b16 %v1842
    %v2599 = vunpack.c.h.b16 %v1842
    %v2600 = vunpack.c.l.b16 %v1843
    %v2601 = vunpack.c.h.b16 %v1843
    %v2602 = vunpack.c.l.b16 %v1844
    %v2603 = vunpack.c.h.b16 %v1844
    %v2604 = vunpack.c.l.b16 %v1845
    %v2605 = vunpack.c.h.b16 %v1845
    %v2606 = vpack.c.b16 %v2576, %v2574
    %v2607 = vpack.c.b16 %v2577, %v2575
    %v2608 = vpack.c.b16 %v2580, %v2578
    %v2609 = vpack.c.b16 %v2581, %v2579
    %v2610 = vpack.c.b16 %v2584, %v2582
    %v2611 = vpack.c.b16 %v2585, %v2583
    %v2612 = vpack.c.b16 %v2588, %v2586
    %v2613 = vpack.c.b16 %v2589, %v2587
    %v2614 = vpack.c.b16 %v2592, %v2590
    %v2615 = vpack.c.b16 %v2593, %v2591
    %v2616 = vpack.c.b16 %v2596, %v2594
    %v2617 = vpack.c.b16 %v2597, %v2595
    %v2618 = vpack.c.b16 %v2600, %v2598
    %v2619 = vpack.c.b16 %v2601, %v2599
    %v2620 = vpack.c.b16 %v2604, %v2602
    %v2621 = vpack.c.b16 %v2605, %v2603
    %2638 = vmatpush.bf16.msra.mxu0 %v2620
    %2639 = vmatpush.bf16.msra.mxu0 %v2618
    %2640 = vmatpush.bf16.msra.mxu0 %v2616
    %2641 = vmatpush.bf16.msra.mxu0 %v2614
    %2642 = vmatpush.bf16.msra.mxu0 %v2612
    %2643 = vmatpush.bf16.msra.mxu0 %v2610
    %2644 = vmatpush.bf16.msra.mxu0 %v2608
    %2645 = vmatpush.bf16.msra.mxu0 %v2606
    %2646 = vmatmul.bf16.gmra.mxu0 %v2552
    %v2647 = vpop.f32.mrf.mxu0
    %v2648 = vadd.f32 %v2554, %v2647
    %v2649 = vpop.f32.mrf.mxu0
    %v2650 = vadd.f32 %v2554, %v2649
    %2651 = vdwg.mxu0
    %2652 = vmatpush.bf16.msra.mxu0 %v2621
    %2653 = vmatpush.bf16.msra.mxu0 %v2619
    %2654 = vmatpush.bf16.msra.mxu0 %v2617
    %2655 = vmatpush.bf16.msra.mxu0 %v2615
    %2656 = vmatpush.bf16.msra.mxu0 %v2613
    %2657 = vmatpush.bf16.msra.mxu0 %v2611
    %2658 = vmatpush.bf16.msra.mxu0 %v2609
    %2659 = vmatpush.bf16.msra.mxu0 %v2607
    %2660 = vmatmul.bf16.gmra.mxu0 %v2552
    %v2661 = vpop.f32.mrf.mxu0
    %v2662 = vadd.f32 %v2555, %v2661
    %v2663 = vpop.f32.mrf.mxu0
    %v2664 = vadd.f32 %v2555, %v2663
    %2665 = vdwg.mxu0
    %v2666 = vmul.f32 %v2648, %v2648
    %v2667 = vmul.f32 %v2662, %v2662
    %v2668 = vmul.f32 %v2650, %v2650
    %v2669 = vmul.f32 %v2664, %v2664
    %v2670 = vmul.f32 %v2648, %v2666
    %v2671 = vmul.f32 %v2662, %v2667
    %v2672 = vmul.f32 %v2650, %v2668
    %v2673 = vmul.f32 %v2664, %v2669
    %v2674 = vmul.f32 %v2670, 0.044715
    %v2675 = vmul.f32 %v2671, 0.044715
    %v2676 = vmul.f32 %v2672, 0.044715
    %v2677 = vmul.f32 %v2673, 0.044715
    %v2678 = vadd.f32 %v2648, %v2674
    %v2679 = vadd.f32 %v2662, %v2675
    %v2680 = vadd.f32 %v2650, %v2676
    %v2681 = vadd.f32 %v2664, %v2677
    %v2682 = vmul.f32 %v2678, 0.7978846
    %v2683 = vmul.f32 %v2679, 0.7978846
    %v2684 = vmul.f32 %v2680, 0.7978846
    %v2685 = vmul.f32 %v2681, 0.7978846
    %v2686 = vtanh.pop %v2682
    %v2687 = vtanh.pop %v2683
    %v2688 = vtanh.pop %v2684
    %v2689 = vtanh.pop %v2685
    %v2690 = vadd.f32 %v2686, 1.0
    %v2691 = vadd.f32 %v2687, 1.0
    %v2692 = vadd.f32 %v2688, 1.0
    %v2693 = vadd.f32 %v2689, 1.0
    %v2694 = vmul.f32 %v2690, 0.5
    %v2695 = vmul.f32 %v2691, 0.5
    %v2696 = vmul.f32 %v2692, 0.5
    %v2697 = vmul.f32 %v2693, 0.5
    %v2698 = vmul.f32 %v2648, %v2694
    %v2699 = vmul.f32 %v2662, %v2695
    %v2700 = vmul.f32 %v2650, %v2696
    %v2701 = vmul.f32 %v2664, %v2697
    %v2702 = vpack.c.bf16 %v2700, %v2698
    %v2703 = vpack.c.bf16 %v2701, %v2699
    %v2736 = vunpack.c.l.b16 %v1847
    %v2737 = vunpack.c.l.b16 %v1848
    %v2738 = vunpack.c.l.b16 %v1849
    %v2739 = vunpack.c.l.b16 %v1850
    %v2740 = vunpack.c.l.b16 %v1851
    %v2741 = vunpack.c.l.b16 %v1852
    %v2742 = vunpack.c.l.b16 %v1853
    %v2743 = vunpack.c.l.b16 %v1854
    %v2744 = vunpack.c.l.b16 %v1855
    %v2745 = vunpack.c.l.b16 %v1856
    %v2746 = vunpack.c.l.b16 %v1857
    %v2747 = vunpack.c.l.b16 %v1858
    %v2748 = vunpack.c.l.b16 %v1859
    %v2749 = vunpack.c.l.b16 %v1860
    %v2750 = vunpack.c.l.b16 %v1861
    %v2751 = vunpack.c.l.b16 %v1862
    %v2752 = vunpack.c.l.b16 %v1863
    %v2753 = vunpack.c.l.b16 %v1864
    %v2754 = vunpack.c.l.b16 %v1865
    %v2755 = vunpack.c.l.b16 %v1866
    %v2756 = vunpack.c.l.b16 %v1867
    %v2757 = vunpack.c.l.b16 %v1868
    %v2758 = vunpack.c.l.b16 %v1869
    %v2759 = vunpack.c.l.b16 %v1870
    %v2760 = vunpack.c.l.b16 %v1871
    %v2761 = vunpack.c.l.b16 %v1872
    %v2762 = vunpack.c.l.b16 %v1873
    %v2763 = vunpack.c.l.b16 %v1874
    %v2764 = vunpack.c.l.b16 %v1875
    %v2765 = vunpack.c.l.b16 %v1876
    %v2766 = vunpack.c.l.b16 %v1877
    %v2767 = vunpack.c.l.b16 %v1878
    %v2768 = vpack.c.b16 %v2737, %v2736
    %v2769 = vpack.c.b16 %v2739, %v2738
    %v2770 = vpack.c.b16 %v2741, %v2740
    %v2771 = vpack.c.b16 %v2743, %v2742
    %v2772 = vpack.c.b16 %v2745, %v2744
    %v2773 = vpack.c.b16 %v2747, %v2746
    %v2774 = vpack.c.b16 %v2749, %v2748
    %v2775 = vpack.c.b16 %v2751, %v2750
    %v2776 = vpack.c.b16 %v2753, %v2752
    %v2777 = vpack.c.b16 %v2755, %v2754
    %v2778 = vpack.c.b16 %v2757, %v2756
    %v2779 = vpack.c.b16 %v2759, %v2758
    %v2780 = vpack.c.b16 %v2761, %v2760
    %v2781 = vpack.c.b16 %v2763, %v2762
    %v2782 = vpack.c.b16 %v2765, %v2764
    %v2783 = vpack.c.b16 %v2767, %v2766
    %2800 = vmatpush.bf16.msra.mxu0 %v2775
    %2801 = vmatpush.bf16.msra.mxu0 %v2774
    %2802 = vmatpush.bf16.msra.mxu0 %v2773
    %2803 = vmatpush.bf16.msra.mxu0 %v2772
    %2804 = vmatpush.bf16.msra.mxu0 %v2771
    %2805 = vmatpush.bf16.msra.mxu0 %v2770
    %2806 = vmatpush.bf16.msra.mxu0 %v2769
    %2807 = vmatpush.bf16.msra.mxu0 %v2768
    %2808 = vmatmul.bf16.gmra.mxu0 %v2702
    %v2809 = vpop.f32.mrf.mxu0
    %v2810 = vadd.f32 0.0, %v2809
    %v2811 = vpop.f32.mrf.mxu0
    %v2812 = vadd.f32 0.0, %v2811
    %2813 = vdwg.mxu0
    %2814 = vmatpush.bf16.msra.mxu0 %v2783
    %2815 = vmatpush.bf16.msra.mxu0 %v2782
    %2816 = vmatpush.bf16.msra.mxu0 %v2781
    %2817 = vmatpush.bf16.msra.mxu0 %v2780
    %2818 = vmatpush.bf16.msra.mxu0 %v2779
    %2819 = vmatpush.bf16.msra.mxu0 %v2778
    %2820 = vmatpush.bf16.msra.mxu0 %v2777
    %2821 = vmatpush.bf16.msra.mxu0 %v2776
    %2822 = vmatmul.bf16.gmra.mxu0 %v2703
    %v2823 = vpop.f32.mrf.mxu0
    %v2824 = vadd.f32 %v2810, %v2823
    %v2825 = vpop.f32.mrf.mxu0
    %v2826 = vadd.f32 %v2812, %v2825
    %2827 = vdwg.mxu0
    %v2828 = vadd.f32 %v2504, %v2824
    %v2829 = vadd.f32 %v2505, %v2826
    %v2830 = vperm.slane %v1742, 5
    %v2831 = vadd.f32 %v2828, %v2830
    %v2832 = vadd.f32 %v2829, %v2830
    %v2833 = vld [vmem:[#allocation10] sm:$0x1]
    %v2834 = vld [vmem:[#allocation10 + $0x1] sm:$0x1]
    %2835 = vadd.xlane.f32.xlu0 %v2831
    %v2836 = vpop.xlane.xlu0 %2835
    %2837 = vadd.xlane.f32.xlu0 %v2832
    %v2838 = vpop.xlane.xlu0 %2837
    %v2839 = vmul.f32 %v2836, %v789
    %v2840 = vmul.f32 %v2838, %v789
    %v2841 = vsub.f32 %v2831, %v2839
    %v2842 = vsub.f32 %v2832, %v2840
    %v2843 = vmul.f32 %v2841, %v2841
    %v2844 = vmul.f32 %v2842, %v2842
    %2845 = vadd.xlane.f32.xlu0 %v2843
    %v2846 = vpop.xlane.xlu0 %2845
    %2847 = vadd.xlane.f32.xlu0 %v2844
    %v2848 = vpop.xlane.xlu0 %2847
    %v2849 = vmul.f32 %v2846, %v789
    %v2850 = vmul.f32 %v2848, %v789
    %v2851 = vadd.f32 %v2849, 1e-12
    %v2852 = vadd.f32 %v2850, 1e-12
    %v2853 = vrsqrt.pop %v2851
    %v2854 = vmul.f32 %v2853, %v2851
    %v2855 = vmul.f32 %v2854, %v2853
    %v2856 = vmul.f32 0.5, %v2855
    %v2857 = vsub.f32 1.5, %v2856
    %v2858 = vmul.f32 %v2853, %v2857
    %vm2859 = vweird.f32 %v2851
    %vm2860 = vweird.f32 %v2853
    %vm2861 = vmor %vm2859, %vm2860
    %v2862 = vsel %vm2861, %v2853, %v2858
    %v2863 = vrsqrt.pop %v2852
    %v2864 = vmul.f32 %v2863, %v2852
    %v2865 = vmul.f32 %v2864, %v2863
    %v2866 = vmul.f32 0.5, %v2865
    %v2867 = vsub.f32 1.5, %v2866
    %v2868 = vmul.f32 %v2863, %v2867
    %vm2869 = vweird.f32 %v2852
    %vm2870 = vweird.f32 %v2863
    %vm2871 = vmor %vm2869, %vm2870
    %v2872 = vsel %vm2871, %v2863, %v2868
    %v2873 = vmul.f32 %v2841, %v2862
    %v2874 = vmul.f32 %v2842, %v2872
    %v2875 = vperm.slane %v2833, 0
    %v2876 = vmul.f32 %v2873, %v2875
    %v2877 = vmul.f32 %v2874, %v2875
    %v2878 = vperm.slane %v2834, 0
    %v2879 = vadd.f32 %v2876, %v2878
    %v2880 = vadd.f32 %v2877, %v2878
    %v2881 = vpack.c.bf16 %v2880, %v2879
    %v2882 = vld [vmem:[%s12] sm:$0xf]
    %v2883 = vld [vmem:[%s12 + $0x4] sm:$0xf]
    %v2884 = vld [vmem:[%s12 + $0x8] sm:$0xf]
    %v2885 = vld [vmem:[%s12 + $0xc] sm:$0xf]
    %v2886 = vld [vmem:[%s12 + $0x10] sm:$0xf]
    %v2887 = vld [vmem:[%s12 + $0x14] sm:$0xf]
    %v2888 = vld [vmem:[%s12 + $0x18] sm:$0xf]
    %v2889 = vld [vmem:[%s12 + $0x1c] sm:$0xf]
    %v2890 = vld [vmem:[%s12 + $0x20] sm:$0xf]
    %v2891 = vld [vmem:[%s12 + $0x24] sm:$0xf]
    %v2892 = vld [vmem:[%s12 + $0x28] sm:$0xf]
    %v2893 = vld [vmem:[%s12 + $0x2c] sm:$0xf]
    %v2894 = vld [vmem:[%s12 + $0x30] sm:$0xf]
    %v2895 = vld [vmem:[%s12 + $0x34] sm:$0xf]
    %v2896 = vld [vmem:[%s12 + $0x38] sm:$0xf]
    %v2897 = vld [vmem:[%s12 + $0x3c] sm:$0xf]
    %v2898 = vld [vmem:[%s13] sm:$0x1]
    %v2900 = vperm.slane %v2898, 0
    %v2918 = vunpack.c.l.b16 %v2882
    %v2919 = vunpack.c.l.b16 %v2883
    %v2920 = vunpack.c.l.b16 %v2884
    %v2921 = vunpack.c.l.b16 %v2885
    %v2922 = vunpack.c.l.b16 %v2886
    %v2923 = vunpack.c.l.b16 %v2887
    %v2924 = vunpack.c.l.b16 %v2888
    %v2925 = vunpack.c.l.b16 %v2889
    %v2926 = vunpack.c.l.b16 %v2890
    %v2927 = vunpack.c.l.b16 %v2891
    %v2928 = vunpack.c.l.b16 %v2892
    %v2929 = vunpack.c.l.b16 %v2893
    %v2930 = vunpack.c.l.b16 %v2894
    %v2931 = vunpack.c.l.b16 %v2895
    %v2932 = vunpack.c.l.b16 %v2896
    %v2933 = vunpack.c.l.b16 %v2897
    %v2934 = vpack.c.b16 %v2919, %v2918
    %v2935 = vpack.c.b16 %v2921, %v2920
    %v2936 = vpack.c.b16 %v2923, %v2922
    %v2937 = vpack.c.b16 %v2925, %v2924
    %v2938 = vpack.c.b16 %v2927, %v2926
    %v2939 = vpack.c.b16 %v2929, %v2928
    %v2940 = vpack.c.b16 %v2931, %v2930
    %v2941 = vpack.c.b16 %v2933, %v2932
    %2950 = vmatpush.bf16.msra.mxu0 %v2941
    %2951 = vmatpush.bf16.msra.mxu0 %v2940
    %2952 = vmatpush.bf16.msra.mxu0 %v2939
    %2953 = vmatpush.bf16.msra.mxu0 %v2938
    %2954 = vmatpush.bf16.msra.mxu0 %v2937
    %2955 = vmatpush.bf16.msra.mxu0 %v2936
    %2956 = vmatpush.bf16.msra.mxu0 %v2935
    %2957 = vmatpush.bf16.msra.mxu0 %v2934
    %2958 = vmatmul.bf16.gmra.mxu0 %v2881
    %v2959 = vpop.f32.mrf.mxu0
    %v2960 = vadd.f32 %v2900, %v2959
    %v2961 = vpop.f32.mrf.mxu0
    %v2962 = vadd.f32 %v2900, %v2961
    %2963 = vdwg.mxu0
    %2964 = vst [vmem:[%s14] sm:$0xff] %v2960
    %2965 = vst [vmem:[%s14 + $0x8] sm:$0xff] %v2962
    // Predicated region
    $region82: #{encoder_vit_forward.1} parent=1 // pred_check
      _
    $region83: #{encoder_vit_forward.1} parent=1 // pred_check_branch
      %2967 = sbr.rel (0) target = $region85
    $region84: #{encoder_vit_forward.1} parent=1 // pred_region
      _
    $region85: #{encoder_vit_forward.1} parent=1 // pred_fallthru
      _
    // Predicated region
    $region86: #{encoder_vit_forward.1} parent=1 // pred_check
      _
    $region87: #{encoder_vit_forward.1} parent=1 // pred_check_branch
      %2969 = sbr.rel (0) target = $region89
    $region88: #{encoder_vit_forward.1} parent=1 // pred_region
      _
    $region89: #{encoder_vit_forward.1} parent=1 // pred_fallthru
      _
    %2970 = vsyncpa [#allocation3], 1
    %2971 = vsyncpa [#allocation5], 1
    %2972 = vsyncpa [#allocation8], 1
    %2973 = vsyncpa [#allocation11], 1

</llo_original>
